<compile_context>
chip_gen: v7x
topology: tpu7x:2x2x1
jax: 0.10.0
libtpu: 0.0.40
codegen_flags: <defaults>
</compile_context>

<pallas_src>
from functools import partial

import jax
import jax.numpy as jnp
from jax.experimental import pallas as pl
from jax.experimental.pallas import tpu as pltpu

BN_EPS = 1e-5
LANE = 128

TAPS_3X3 = tuple((i, j) for i in range(3) for j in range(3))
TAPS_2X2 = ((0, 0), (0, 1), (1, 0), (1, 1))
TAPS_1X1 = ((0, 0),)


def _round_up(x, m):
    return (x + m - 1) // m * m


def _vmem_limit_bytes():
    """Per-generation VMEM budget: ~half of physical (v5e/v6e: 64 MiB of 128,
    v7x: 32 MiB of 64). Conservative 32 MiB if the query is unavailable."""
    try:
        cap = int(getattr(pltpu.get_tpu_info(), "vmem_capacity_bytes", 0) or 0)
    except Exception:
        cap = 0
    if cap <= 0:
        cap = 64 * 1024 * 1024
    return min(max(cap // 2, 32 * 1024 * 1024), 96 * 1024 * 1024)


def _mosaic_params(vmem_limit):
    return pltpu.CompilerParams(
        dimension_semantics=("parallel",),   # every grid step is independent
        vmem_limit_bytes=vmem_limit,
    )


def _largest_batch_block(n, per_image_bytes, resident_bytes, budget):
    """Largest divisor of n whose per-grid-step VMEM estimate fits the budget."""
    best = 1
    for d in range(1, n + 1):
        if n % d == 0 and d * per_image_bytes + resident_bytes <= budget:
            best = d
    return best


# ----------------------------------------------------------------------------
# Pallas kernels
# ----------------------------------------------------------------------------
def conv_taps_stats_kernel(x_ref, w_ref, y_ref, s_ref, ss_ref, *, taps, ho, wo):
    """Implicit-im2col conv for one block of images.

    For each static tap (di, dj) slice a [nb, ho, wo, K] window out of the
    (spatially padded) activation block resident in VMEM and accumulate a
    bf16 x bf16 -> f32 MXU matmul against that tap's [K, Coutp] weight slab.
    The activation is read from HBM exactly once (no 9x im2col traffic).
    Batch-norm sum / sum-of-squares are emitted from the f32 accumulator and
    the conv output is stored as bf16.
    """
    nb = y_ref.shape[0]
    kc = x_ref.shape[3]
    coutp = y_ref.shape[3]
    rows = nb * ho * wo
    acc = None
    for t, (di, dj) in enumerate(taps):
        # cast -> reshape -> cast keeps the (nb,ho,wo)->rows collapse on f32's
        # (8,128) layout (clean vreg renumbering when wo % 8 == 0) instead of a
        # packed-bf16 shape-cast.
        win = x_ref[:, di:di + ho, dj:dj + wo, :].astype(jnp.float32)
        win = win.reshape(rows, kc).astype(jnp.bfloat16)
        part = jnp.dot(win, w_ref[t], preferred_element_type=jnp.float32)
        acc = part if acc is None else acc + part
    y_ref[...] = acc.reshape(nb, ho, wo, coutp).astype(y_ref.dtype)
    s_ref[...] = jnp.sum(acc, axis=0, keepdims=True).reshape(1, 1, -1)
    ss_ref[...] = jnp.sum(acc * acc, axis=0, keepdims=True).reshape(1, 1, -1)


def bn_relu_kernel(y_ref, sc_ref, sh_ref, o_ref):
    """Folded BatchNorm (per-channel scale/shift) + ReLU, bf16 out."""
    y = y_ref[...].astype(jnp.float32)
    o_ref[...] = jnp.maximum(y * sc_ref[...] + sh_ref[...], 0.0).astype(o_ref.dtype)


def bn_add_bn_relu_kernel(y_ref, sc1_ref, sh1_ref, r_ref, sc2_ref, sh2_ref, o_ref):
    """Fused epilogue: BN(main) + BN(projection residual) + add + final ReLU."""
    main = y_ref[...].astype(jnp.float32) * sc1_ref[...] + sh1_ref[...]
    res = r_ref[...].astype(jnp.float32) * sc2_ref[...] + sh2_ref[...]
    o_ref[...] = jnp.maximum(main + res, 0.0)


def bn_add_identity_relu_kernel(y_ref, sc_ref, sh_ref, x_ref, o_ref):
    """Fused epilogue, identity shortcut: BN(main) + x + final ReLU (no dead FMA)."""
    main = y_ref[...].astype(jnp.float32) * sc_ref[...] + sh_ref[...]
    o_ref[...] = jnp.maximum(main + x_ref[...], 0.0)


# ----------------------------------------------------------------------------
# pallas_call wrappers (batch-blocked grid, whole padded image resident)
# ----------------------------------------------------------------------------
def conv_taps_stats(xin, w, taps, ho, wo):
    """xin [N, Hin, Win, K] bf16, w [T, K, Coutp] bf16 ->
    y [N, ho, wo, Coutp] bf16, per-step sum / sumsq [steps, 1, Coutp] f32."""
    n, hin, win, kc = xin.shape
    t, _, coutp = w.shape
    budget = _vmem_limit_bytes()
    per_image = (2 * hin * win * kc * 2        # double-buffered bf16 input block
                 + 2 * ho * wo * coutp * 2     # double-buffered bf16 output block
                 + ho * wo * coutp * 4)        # f32 accumulator
    resident = 2 * t * kc * coutp * 2 + (2 << 20)   # weights (x2 buffers) + slack
    nb = _largest_batch_block(n, per_image, resident, budget)
    steps = n // nb
    kern = partial(conv_taps_stats_kernel, taps=tuple(taps), ho=ho, wo=wo)
    return pl.pallas_call(
        kern,
        grid=(steps,),
        in_specs=[
            pl.BlockSpec((nb, hin, win, kc), lambda i: (i, 0, 0, 0)),
            pl.BlockSpec((t, kc, coutp), lambda i: (0, 0, 0)),   # resident weights
        ],
        out_specs=[
            pl.BlockSpec((nb, ho, wo, coutp), lambda i: (i, 0, 0, 0)),
            pl.BlockSpec((1, 1, coutp), lambda i: (i, 0, 0)),
            pl.BlockSpec((1, 1, coutp), lambda i: (i, 0, 0)),
        ],
        out_shape=[
            jax.ShapeDtypeStruct((n, ho, wo, coutp), jnp.bfloat16),
            jax.ShapeDtypeStruct((steps, 1, coutp), jnp.float32),
            jax.ShapeDtypeStruct((steps, 1, coutp), jnp.float32),
        ],
        compiler_params=_mosaic_params(budget),
    )(xin, w)


def _elementwise_grid(n, ho, wo, coutp, bytes_per_elem_total):
    budget = _vmem_limit_bytes()
    per_image = 2 * ho * wo * coutp * bytes_per_elem_total   # x2 double-buffer
    nb = _largest_batch_block(n, per_image, 2 << 20, budget)
    return nb, n // nb, budget


def bn_relu_apply(y, scale, shift):
    n, ho, wo, coutp = y.shape
    nb, steps, budget = _elementwise_grid(n, ho, wo, coutp, 2 + 2)
    full = lambda i: (i, 0, 0, 0)
    bcast = lambda i: (0, 0, 0, 0)
    return pl.pallas_call(
        bn_relu_kernel,
        grid=(steps,),
        in_specs=[
            pl.BlockSpec((nb, ho, wo, coutp), full),
            pl.BlockSpec((1, 1, 1, coutp), bcast),
            pl.BlockSpec((1, 1, 1, coutp), bcast),
        ],
        out_specs=pl.BlockSpec((nb, ho, wo, coutp), full),
        out_shape=jax.ShapeDtypeStruct((n, ho, wo, coutp), jnp.bfloat16),
        compiler_params=_mosaic_params(budget),
    )(y, scale.reshape(1, 1, 1, coutp), shift.reshape(1, 1, 1, coutp))


def bn_add_bn_relu(y, sc1, sh1, r, sc2, sh2):
    n, ho, wo, coutp = y.shape
    nb, steps, budget = _elementwise_grid(n, ho, wo, coutp, 2 + 2 + 4)
    full = lambda i: (i, 0, 0, 0)
    bcast = lambda i: (0, 0, 0, 0)
    r4 = lambda v: v.reshape(1, 1, 1, coutp)
    return pl.pallas_call(
        bn_add_bn_relu_kernel,
        grid=(steps,),
        in_specs=[
            pl.BlockSpec((nb, ho, wo, coutp), full),
            pl.BlockSpec((1, 1, 1, coutp), bcast),
            pl.BlockSpec((1, 1, 1, coutp), bcast),
            pl.BlockSpec((nb, ho, wo, coutp), full),
            pl.BlockSpec((1, 1, 1, coutp), bcast),
            pl.BlockSpec((1, 1, 1, coutp), bcast),
        ],
        out_specs=pl.BlockSpec((nb, ho, wo, coutp), full),
        out_shape=jax.ShapeDtypeStruct((n, ho, wo, coutp), jnp.float32),
        compiler_params=_mosaic_params(budget),
    )(y, r4(sc1), r4(sh1), r, r4(sc2), r4(sh2))


def bn_add_identity_relu(y, sc, sh, x_res):
    n, ho, wo, coutp = y.shape
    nb, steps, budget = _elementwise_grid(n, ho, wo, coutp, 2 + 4 + 4)
    full = lambda i: (i, 0, 0, 0)
    bcast = lambda i: (0, 0, 0, 0)
    return pl.pallas_call(
        bn_add_identity_relu_kernel,
        grid=(steps,),
        in_specs=[
            pl.BlockSpec((nb, ho, wo, coutp), full),
            pl.BlockSpec((1, 1, 1, coutp), bcast),
            pl.BlockSpec((1, 1, 1, coutp), bcast),
            pl.BlockSpec((nb, ho, wo, coutp), full),
        ],
        out_specs=pl.BlockSpec((nb, ho, wo, coutp), full),
        out_shape=jax.ShapeDtypeStruct((n, ho, wo, coutp), jnp.float32),
        compiler_params=_mosaic_params(budget),
    )(y, sc.reshape(1, 1, 1, coutp), sh.reshape(1, 1, 1, coutp), x_res)


# ----------------------------------------------------------------------------
# Glue: padding, space-to-depth, weight slabs, BN fold, layer wiring
# ----------------------------------------------------------------------------
def _pad_last(a, to, value=0.0):
    pad = to - a.shape[-1]
    if pad == 0:
        return a
    cfg = [(0, 0)] * (a.ndim - 1) + [(0, pad)]
    return jnp.pad(a, cfg, constant_values=value)


def _pad_ring1(x_nhwc):
    """'same' padding ring of 1 in H and W."""
    return jnp.pad(x_nhwc, ((0, 0), (1, 1), (1, 1), (0, 0)))


def _space_to_depth2(x_nhwc):
    """[N,H,W,C] -> [N,(H+2+..)/2,(W+2+..)/2,4C]: pad-1 'same' ring (+ even-ing
    pad), then 2x2 phase stacking on channels (phase = 2*row_parity+col_parity)."""
    n, h, w, c = x_nhwc.shape
    xp = jnp.pad(x_nhwc, ((0, 0), (1, 1 + h % 2), (1, 1 + w % 2), (0, 0)))
    hp, wp = xp.shape[1], xp.shape[2]
    xs = xp.reshape(n, hp // 2, 2, wp // 2, 2, c)
    xs = jnp.transpose(xs, (0, 1, 3, 2, 4, 5)).reshape(n, hp // 2, wp // 2, 4 * c)
    return xs


def _w_taps_3x3(w_oihw, kin_pad, coutp):
    """PyTorch [Cout,Cin,3,3] -> bf16 [9, kin_pad, Coutp] tap slabs (row-major taps)."""
    cout, cin = w_oihw.shape[0], w_oihw.shape[1]
    w = jnp.transpose(w_oihw, (2, 3, 1, 0)).reshape(9, cin, cout)
    w = jnp.pad(w, ((0, 0), (0, kin_pad - cin), (0, coutp - cout)))
    return w.astype(jnp.bfloat16)


def _w_taps_s2d(w_oihw, kin_pad, coutp):
    """Stride-2 3x3 conv as stride-1 2x2 conv over a 2x2 space-to-depth input:
    returns bf16 [4, kin_pad, Coutp] slabs for taps (0,0),(0,1),(1,0),(1,1)."""
    cout, cin = w_oihw.shape[0], w_oihw.shape[1]
    wt = jnp.transpose(w_oihw, (2, 3, 1, 0))          # [3,3,Cin,Cout]
    slabs = []
    for qi in (0, 1):
        for qj in (0, 1):
            slab = jnp.zeros((4 * cin, cout), w_oihw.dtype)
            for pi in (0, 1):
                di = 2 * qi + pi
                if di > 2:
                    continue
                for pj in (0, 1):
                    dj = 2 * qj + pj
                    if dj > 2:
                        continue
                    phase = 2 * pi + pj
                    slab = slab.at[phase * cin:(phase + 1) * cin, :].set(wt[di, dj])
            slabs.append(slab)
    w = jnp.stack(slabs, axis=0)                      # [4, 4*Cin, Cout]
    w = jnp.pad(w, ((0, 0), (0, kin_pad - 4 * cin), (0, coutp - cout)))
    return w.astype(jnp.bfloat16)


def _w_taps_1x1(w_oihw, kin_pad, coutp):
    cout, cin = w_oihw.shape[0], w_oihw.shape[1]
    w = jnp.transpose(w_oihw[:, :, 0, 0])             # [Cin, Cout]
    w = jnp.pad(w, ((0, kin_pad - cin), (0, coutp - cout)))
    return w.astype(jnp.bfloat16)[None]               # [1, kin_pad, Coutp]


def _fold_bn(s, ss, m_true, gamma, beta):
    """Fold training-mode batch statistics + affine params into scale/shift.
    gamma/beta are zero-padded, so padded channels get scale = shift = 0."""
    total = jnp.sum(s, axis=(0, 1))
    total_sq = jnp.sum(ss, axis=(0, 1))
    mean = total / m_true
    # Note: E[y^2]-E[y]^2 in f32 is cancellation-prone at very large M; fine at
    # these scales / tolerance (compensated variance would fix it otherwise).
    var = jnp.maximum(total_sq / m_true - mean * mean, 0.0)
    scale = gamma * jax.lax.rsqrt(var + BN_EPS)
    shift = beta - mean * scale
    return scale, shift


def init_params(key, in_ch, out_ch):
    k1, k2, k3 = jax.random.split(key, 3)
    scale = 0.1
    params = {
        "w1": jax.random.normal(k1, (out_ch, in_ch, 3, 3), jnp.float32) * scale,
        "g1": jnp.ones((1, out_ch), jnp.float32),
        "b1": jnp.zeros((1, out_ch), jnp.float32),
        "w2": jax.random.normal(k2, (out_ch, out_ch, 3, 3), jnp.float32) * scale,
        "g2": jnp.ones((1, out_ch), jnp.float32),
        "b2": jnp.zeros((1, out_ch), jnp.float32),
    }
    if in_ch != out_ch:
        params["ws"] = jax.random.normal(k3, (out_ch, in_ch, 1, 1), jnp.float32) * scale
        params["gs"] = jnp.ones((1, out_ch), jnp.float32)
        params["bs"] = jnp.zeros((1, out_ch), jnp.float32)
    return params


@partial(jax.jit, static_argnums=(2, 3))
def resnet_layer_forward(x_nchw, params, in_ch, out_ch):
    """ResNetLayer(in_ch, out_ch, n=1) forward. NCHW in / NCHW out like PyTorch.
    (An NHWC-native model should drop both transposes - each is a full HBM pass.)"""
    ds = 2 if in_ch != out_ch else 1
    x = jnp.transpose(x_nchw, (0, 2, 3, 1)).astype(jnp.float32)   # NHWC
    xb = x.astype(jnp.bfloat16)
    n, h, wid, _ = x.shape
    coutp = _round_up(out_ch, LANE)

    # zero-padded gamma/beta -> padded channels end up exactly 0 everywhere
    gpad = lambda name: _pad_last(params[name].reshape(-1), coutp)

    # ---- conv1: 3x3, stride ds, + BN + ReLU -------------------------------
    if ds == 1:
        ho, wo = h, wid
        cin_p = coutp                              # in_ch == out_ch on this path
        xin1 = _pad_ring1(_pad_last(xb, cin_p))
        w1 = _w_taps_3x3(params["w1"], cin_p, coutp)
        taps1 = TAPS_3X3
    else:
        ho, wo = (h - 1) // 2 + 1, (wid - 1) // 2 + 1
        kc1 = _round_up(4 * in_ch, LANE)
        xin1 = _pad_last(_space_to_depth2(xb), kc1)
        w1 = _w_taps_s2d(params["w1"], kc1, coutp)
        taps1 = TAPS_2X2
    m_true = n * ho * wo
    y1, s1, ss1 = conv_taps_stats(xin1, w1, taps1, ho, wo)
    sc1, sh1 = _fold_bn(s1, ss1, m_true, gpad("g1"), gpad("b1"))
    a1 = bn_relu_apply(y1, sc1, sh1)               # [N,ho,wo,Coutp] bf16, lane-padded

    # ---- conv2: 3x3 stride 1 (its BN folded into the fused epilogue) ------
    w2 = _w_taps_3x3(params["w2"], coutp, coutp)   # K2 = Coutp (lane-aligned)
    y2, s2, ss2 = conv_taps_stats(_pad_ring1(a1), w2, TAPS_3X3, ho, wo)
    sc2, sh2 = _fold_bn(s2, ss2, m_true, gpad("g2"), gpad("b2"))

    # ---- shortcut + fused BN/add/ReLU epilogue -----------------------------
    if in_ch != out_ch:
        cin_s = _round_up(in_ch, LANE)
        xs = _pad_last(xb[:, ::ds, ::ds, :][:, :ho, :wo, :], cin_s)
        wsc = _w_taps_1x1(params["ws"], cin_s, coutp)
        yr, sr, ssr = conv_taps_stats(xs, wsc, TAPS_1X1, ho, wo)
        scr, shr = _fold_bn(sr, ssr, m_true, gpad("gs"), gpad("bs"))
        out = bn_add_bn_relu(y2, sc2, sh2, yr, scr, shr)
    else:
        res = _pad_last(x, coutp)                  # identity residual, f32
        out = bn_add_identity_relu(y2, sc2, sh2, res)

    out = out[..., :out_ch]
    return jnp.transpose(out, (0, 3, 1, 2))        # back to NCHW


# ----------------------------------------------------------------------------
# Pure-JAX reference (same bf16-input / f32-accumulate convention) for checking
# ----------------------------------------------------------------------------
def _bn_ref(y, gamma, beta):
    mean = jnp.mean(y, axis=(0, 1, 2), keepdims=True)
    var = jnp.mean(jnp.square(y - mean), axis=(0, 1, 2), keepdims=True)
    return (y - mean) * jax.lax.rsqrt(var + BN_EPS) * gamma + beta


def _conv_ref(x_nhwc, w_oihw, stride):
    k = w_oihw.shape[-1]
    pad = k // 2
    w_hwio = jnp.transpose(w_oihw, (2, 3, 1, 0)).astype(jnp.bfloat16)
    return jax.lax.conv_general_dilated(
        x_nhwc.astype(jnp.bfloat16), w_hwio, (stride, stride),
        ((pad, pad), (pad, pad)),
        dimension_numbers=("NHWC", "HWIO", "NHWC"),
        preferred_element_type=jnp.float32)


def resnet_layer_reference(x_nchw, params, in_ch, out_ch):
    ds = 2 if in_ch != out_ch else 1
    x = jnp.transpose(x_nchw, (0, 2, 3, 1)).astype(jnp.float32)
    r4 = lambda p: p.reshape(1, 1, 1, -1)
    y = _conv_ref(x, params["w1"], ds)
    y = jnp.maximum(_bn_ref(y, r4(params["g1"]), r4(params["b1"])), 0.0)
    y = _conv_ref(y, params["w2"], 1)
    y = _bn_ref(y, r4(params["g2"]), r4(params["b2"]))
    if in_ch != out_ch:
        r = _bn_ref(_conv_ref(x, params["ws"], ds), r4(params["gs"]), r4(params["bs"]))
    else:
        r = x
    return jnp.transpose(jnp.maximum(y + r, 0.0), (0, 3, 1, 2))


# ----------------------------------------------------------------------------
if __name__ == "__main__":
    key = jax.random.PRNGKey(0)
    kx, kp1, kp2 = jax.random.split(key, 3)

    # Case 1: channel expansion (stride-2 downsampling + 1x1 shortcut conv + BN)
    in_ch, out_ch = 4, 8
    x = jax.random.normal(kx, (2, in_ch, 16, 16), jnp.float32)
    params = init_params(kp1, in_ch, out_ch)
    out = resnet_layer_forward(x, params, in_ch, out_ch)
    jax.block_until_ready(out)
    assert out.shape == (2, out_ch, 8, 8), out.shape
    ref = resnet_layer_reference(x, params, in_ch, out_ch)
    err = float(jnp.max(jnp.abs(out - ref)))
    assert err < 5e-2, f"case1 mismatch: max abs err {err}"

    # Case 2: same channels (identity shortcut, stride 1)
    params_same = init_params(kp2, out_ch, out_ch)
    out2 = resnet_layer_forward(out, params_same, out_ch, out_ch)
    jax.block_until_ready(out2)
    assert out2.shape == (2, out_ch, 8, 8), out2.shape
    ref2 = resnet_layer_reference(out, params_same, out_ch, out_ch)
    err2 = float(jnp.max(jnp.abs(out2 - ref2)))
    assert err2 < 5e-2, f"case2 mismatch: max abs err {err2}"

    print("KERNEL_OK")
</pallas_src>

<mosaic_0001>
module attributes {stable_mosaic.version = 11 : i64} {
  func.func @bn_relu_kernel(%arg0: i32, %arg1: memref<2x8x8x128xbf16, #tpu.memory_space<vmem>>, %arg2: memref<1x1x1x128xf32, #tpu.memory_space<vmem>>, %arg3: memref<1x1x1x128xf32, #tpu.memory_space<vmem>>, %arg4: memref<2x8x8x128xbf16, #tpu.memory_space<vmem>>) attributes {dimension_semantics = [#tpu.dimension_semantics<parallel>], iteration_bounds = array<i64: 1>, scalar_prefetch = 0 : i64, scratch_operands = 0 : i64, tpu.core_type = #tpu.core_type<tc>, window_params = [{transform_indices = @transform_0, window_bounds = array<i64: 2, 8, 8, 128>}, {pipeline_mode = #tpu.pipeline_mode<synchronous>, transform_indices = @transform_1, window_bounds = array<i64: 1, 1, 1, 128>}, {pipeline_mode = #tpu.pipeline_mode<synchronous>, transform_indices = @transform_2, window_bounds = array<i64: 1, 1, 1, 128>}, {transform_indices = @transform_3, window_bounds = array<i64: 2, 8, 8, 128>}]} {
    %c0 = arith.constant 0 : index
    %c0_0 = arith.constant 0 : index
    %c0_1 = arith.constant 0 : index
    %c0_2 = arith.constant 0 : index
    %0 = vector.load %arg1[%c0, %c0_0, %c0_1, %c0_2] : memref<2x8x8x128xbf16, #tpu.memory_space<vmem>>, vector<2x8x8x128xbf16>
    %1 = arith.extf %0 : vector<2x8x8x128xbf16> to vector<2x8x8x128xf32>
    %c0_3 = arith.constant 0 : index
    %c0_4 = arith.constant 0 : index
    %c0_5 = arith.constant 0 : index
    %c0_6 = arith.constant 0 : index
    %2 = vector.load %arg2[%c0_3, %c0_4, %c0_5, %c0_6] : memref<1x1x1x128xf32, #tpu.memory_space<vmem>>, vector<1x1x1x128xf32>
    %3 = vector.broadcast %2 : vector<1x1x1x128xf32> to vector<2x8x8x128xf32>
    %4 = arith.mulf %1, %3 : vector<2x8x8x128xf32>
    %c0_7 = arith.constant 0 : index
    %c0_8 = arith.constant 0 : index
    %c0_9 = arith.constant 0 : index
    %c0_10 = arith.constant 0 : index
    %5 = vector.load %arg3[%c0_7, %c0_8, %c0_9, %c0_10] : memref<1x1x1x128xf32, #tpu.memory_space<vmem>>, vector<1x1x1x128xf32>
    %6 = vector.broadcast %5 : vector<1x1x1x128xf32> to vector<2x8x8x128xf32>
    %7 = arith.addf %4, %6 : vector<2x8x8x128xf32>
    %cst = arith.constant 0.000000e+00 : f32
    %8 = vector.broadcast %cst : f32 to vector<2x8x8x128xf32>
    %9 = arith.maximumf %7, %8 : vector<2x8x8x128xf32>
    %10 = arith.truncf %9 : vector<2x8x8x128xf32> to vector<2x8x8x128xbf16>
    %c0_11 = arith.constant 0 : index
    %c0_12 = arith.constant 0 : index
    %c0_13 = arith.constant 0 : index
    %c0_14 = arith.constant 0 : index
    %11 = vector.load %arg4[%c0_11, %c0_12, %c0_13, %c0_14] : memref<2x8x8x128xbf16, #tpu.memory_space<vmem>>, vector<2x8x8x128xbf16>
    tpu.vector_store %arg4[%c0_11, %c0_12, %c0_13, %c0_14], %10 {strides = array<i32>} : memref<2x8x8x128xbf16, #tpu.memory_space<vmem>>, vector<2x8x8x128xbf16>,
    return
  }
  func.func @transform_0(%arg0: i32) -> (i32, i32, i32, i32) {
    %c0_i32 = arith.constant 0 : i32
    %c0_i32_0 = arith.constant 0 : i32
    %c0_i32_1 = arith.constant 0 : i32
    %c0_i32_2 = arith.constant 0 : i32
    return %arg0, %c0_i32, %c0_i32_0, %c0_i32_1 : i32, i32, i32, i32
  }
  func.func @transform_1(%arg0: i32) -> (i32, i32, i32, i32) {
    %c0_i32 = arith.constant 0 : i32
    %c0_i32_0 = arith.constant 0 : i32
    %c0_i32_1 = arith.constant 0 : i32
    %c0_i32_2 = arith.constant 0 : i32
    %c0_i32_3 = arith.constant 0 : i32
    return %c0_i32, %c0_i32_0, %c0_i32_1, %c0_i32_2 : i32, i32, i32, i32
  }
  func.func @transform_2(%arg0: i32) -> (i32, i32, i32, i32) {
    %c0_i32 = arith.constant 0 : i32
    %c0_i32_0 = arith.constant 0 : i32
    %c0_i32_1 = arith.constant 0 : i32
    %c0_i32_2 = arith.constant 0 : i32
    %c0_i32_3 = arith.constant 0 : i32
    return %c0_i32, %c0_i32_0, %c0_i32_1, %c0_i32_2 : i32, i32, i32, i32
  }
  func.func @transform_3(%arg0: i32) -> (i32, i32, i32, i32) {
    %c0_i32 = arith.constant 0 : i32
    %c0_i32_0 = arith.constant 0 : i32
    %c0_i32_1 = arith.constant 0 : i32
    %c0_i32_2 = arith.constant 0 : i32
    return %arg0, %c0_i32, %c0_i32_0, %c0_i32_1 : i32, i32, i32, i32
  }
}

module attributes {stable_mosaic.version = 11 : i64} {
  func.func @conv_taps_stats_kernel(%arg0: i32, %arg1: memref<2x9x9x128xbf16, #tpu.memory_space<vmem>>, %arg2: memref<4x128x128xbf16, #tpu.memory_space<vmem>>, %arg3: memref<2x8x8x128xbf16, #tpu.memory_space<vmem>>, %arg4: memref<1x1x128xf32, #tpu.memory_space<vmem>>, %arg5: memref<1x1x128xf32, #tpu.memory_space<vmem>>) attributes {dimension_semantics = [#tpu.dimension_semantics<parallel>], iteration_bounds = array<i64: 1>, scalar_prefetch = 0 : i64, scratch_operands = 0 : i64, tpu.core_type = #tpu.core_type<tc>, window_params = [{transform_indices = @transform_0, window_bounds = array<i64: 2, 9, 9, 128>}, {pipeline_mode = #tpu.pipeline_mode<synchronous>, transform_indices = @transform_1, window_bounds = array<i64: 4, 128, 128>}, {transform_indices = @transform_2, window_bounds = array<i64: 2, 8, 8, 128>}, {transform_indices = @transform_3, window_bounds = array<i64: 1, 1, 128>}, {transform_indices = @transform_4, window_bounds = array<i64: 1, 1, 128>}]} {
    %c0 = arith.constant 0 : index
    %c0_0 = arith.constant 0 : index
    %c0_1 = arith.constant 0 : index
    %c0_2 = arith.constant 0 : index
    %0 = vector.load %arg1[%c0, %c0_0, %c0_1, %c0_2] : memref<2x9x9x128xbf16, #tpu.memory_space<vmem>>, vector<2x8x8x128xbf16>
    %1 = arith.extf %0 : vector<2x8x8x128xbf16> to vector<2x8x8x128xf32>
    %2 = vector.shape_cast %1 : vector<2x8x8x128xf32> to vector<128x128xf32>
    %3 = arith.truncf %2 : vector<128x128xf32> to vector<128x128xbf16>
    %c0_3 = arith.constant 0 : index
    %c0_4 = arith.constant 0 : index
    %c0_5 = arith.constant 0 : index
    %4 = vector.load %arg2[%c0_3, %c0_4, %c0_5] : memref<4x128x128xbf16, #tpu.memory_space<vmem>>, vector<1x128x128xbf16>
    %5 = vector.shape_cast %4 : vector<1x128x128xbf16> to vector<128x128xbf16>
    %cst = arith.constant dense<0.000000e+00> : vector<128x128xf32>
    %6 = tpu.matmul %3, %5, %cst {dimension_numbers = #tpu.dot_dimension_numbers<[1], [0], [0], [1], [0, 0, 1, 1], [], []>} : vector<128x128xbf16>, vector<128x128xbf16>, vector<128x128xf32> -> vector<128x128xf32>
    %c0_6 = arith.constant 0 : index
    %c0_7 = arith.constant 0 : index
    %c1 = arith.constant 1 : index
    %c0_8 = arith.constant 0 : index
    %7 = vector.load %arg1[%c0_6, %c0_7, %c1, %c0_8] : memref<2x9x9x128xbf16, #tpu.memory_space<vmem>>, vector<2x8x8x128xbf16>
    %8 = arith.extf %7 : vector<2x8x8x128xbf16> to vector<2x8x8x128xf32>
    %9 = vector.shape_cast %8 : vector<2x8x8x128xf32> to vector<128x128xf32>
    %10 = arith.truncf %9 : vector<128x128xf32> to vector<128x128xbf16>
    %c1_9 = arith.constant 1 : index
    %c0_10 = arith.constant 0 : index
    %c0_11 = arith.constant 0 : index
    %11 = vector.load %arg2[%c1_9, %c0_10, %c0_11] : memref<4x128x128xbf16, #tpu.memory_space<vmem>>, vector<1x128x128xbf16>
    %12 = vector.shape_cast %11 : vector<1x128x128xbf16> to vector<128x128xbf16>
    %cst_12 = arith.constant dense<0.000000e+00> : vector<128x128xf32>
    %13 = tpu.matmul %10, %12, %cst_12 {dimension_numbers = #tpu.dot_dimension_numbers<[1], [0], [0], [1], [0, 0, 1, 1], [], []>} : vector<128x128xbf16>, vector<128x128xbf16>, vector<128x128xf32> -> vector<128x128xf32>
    %14 = arith.addf %6, %13 : vector<128x128xf32>
    %c0_13 = arith.constant 0 : index
    %c1_14 = arith.constant 1 : index
    %c0_15 = arith.constant 0 : index
    %c0_16 = arith.constant 0 : index
    %15 = vector.load %arg1[%c0_13, %c1_14, %c0_15, %c0_16] : memref<2x9x9x128xbf16, #tpu.memory_space<vmem>>, vector<2x8x8x128xbf16>
    %16 = arith.extf %15 : vector<2x8x8x128xbf16> to vector<2x8x8x128xf32>
    %17 = vector.shape_cast %16 : vector<2x8x8x128xf32> to vector<128x128xf32>
    %18 = arith.truncf %17 : vector<128x128xf32> to vector<128x128xbf16>
    %c2 = arith.constant 2 : index
    %c0_17 = arith.constant 0 : index
    %c0_18 = arith.constant 0 : index
    %19 = vector.load %arg2[%c2, %c0_17, %c0_18] : memref<4x128x128xbf16, #tpu.memory_space<vmem>>, vector<1x128x128xbf16>
    %20 = vector.shape_cast %19 : vector<1x128x128xbf16> to vector<128x128xbf16>
    %cst_19 = arith.constant dense<0.000000e+00> : vector<128x128xf32>
    %21 = tpu.matmul %18, %20, %cst_19 {dimension_numbers = #tpu.dot_dimension_numbers<[1], [0], [0], [1], [0, 0, 1, 1], [], []>} : vector<128x128xbf16>, vector<128x128xbf16>, vector<128x128xf32> -> vector<128x128xf32>
    %22 = arith.addf %14, %21 : vector<128x128xf32>
    %c0_20 = arith.constant 0 : index
    %c1_21 = arith.constant 1 : index
    %c1_22 = arith.constant 1 : index
    %c0_23 = arith.constant 0 : index
    %23 = vector.load %arg1[%c0_20, %c1_21, %c1_22, %c0_23] : memref<2x9x9x128xbf16, #tpu.memory_space<vmem>>, vector<2x8x8x128xbf16>
    %24 = arith.extf %23 : vector<2x8x8x128xbf16> to vector<2x8x8x128xf32>
    %25 = vector.shape_cast %24 : vector<2x8x8x128xf32> to vector<128x128xf32>
    %26 = arith.truncf %25 : vector<128x128xf32> to vector<128x128xbf16>
    %c3 = arith.constant 3 : index
    %c0_24 = arith.constant 0 : index
    %c0_25 = arith.constant 0 : index
    %27 = vector.load %arg2[%c3, %c0_24, %c0_25] : memref<4x128x128xbf16, #tpu.memory_space<vmem>>, vector<1x128x128xbf16>
    %28 = vector.shape_cast %27 : vector<1x128x128xbf16> to vector<128x128xbf16>
    %cst_26 = arith.constant dense<0.000000e+00> : vector<128x128xf32>
    %29 = tpu.matmul %26, %28, %cst_26 {dimension_numbers = #tpu.dot_dimension_numbers<[1], [0], [0], [1], [0, 0, 1, 1], [], []>} : vector<128x128xbf16>, vector<128x128xbf16>, vector<128x128xf32> -> vector<128x128xf32>
    %30 = arith.addf %22, %29 : vector<128x128xf32>
    %31 = vector.shape_cast %30 : vector<128x128xf32> to vector<2x8x8x128xf32>
    %32 = arith.truncf %31 : vector<2x8x8x128xf32> to vector<2x8x8x128xbf16>
    %c0_27 = arith.constant 0 : index
    %c0_28 = arith.constant 0 : index
    %c0_29 = arith.constant 0 : index
    %c0_30 = arith.constant 0 : index
    %33 = vector.load %arg3[%c0_27, %c0_28, %c0_29, %c0_30] : memref<2x8x8x128xbf16, #tpu.memory_space<vmem>>, vector<2x8x8x128xbf16>
    tpu.vector_store %arg3[%c0_27, %c0_28, %c0_29, %c0_30], %32 {strides = array<i32>} : memref<2x8x8x128xbf16, #tpu.memory_space<vmem>>, vector<2x8x8x128xbf16>,
    %cst_31 = arith.constant dense<0.000000e+00> : vector<128xf32>
    %34 = vector.multi_reduction <add>, %30, %cst_31 [0] : vector<128x128xf32> to vector<128xf32>
    %35 = vector.shape_cast %34 : vector<128xf32> to vector<1x128xf32>
    %36 = vector.shape_cast %35 : vector<1x128xf32> to vector<1x1x128xf32>
    %c0_32 = arith.constant 0 : index
    %c0_33 = arith.constant 0 : index
    %c0_34 = arith.constant 0 : index
    %37 = vector.load %arg4[%c0_32, %c0_33, %c0_34] : memref<1x1x128xf32, #tpu.memory_space<vmem>>, vector<1x1x128xf32>
    tpu.vector_store %arg4[%c0_32, %c0_33, %c0_34], %36 {strides = array<i32>} : memref<1x1x128xf32, #tpu.memory_space<vmem>>, vector<1x1x128xf32>,
    %38 = arith.mulf %30, %30 : vector<128x128xf32>
    %cst_35 = arith.constant dense<0.000000e+00> : vector<128xf32>
    %39 = vector.multi_reduction <add>, %38, %cst_35 [0] : vector<128x128xf32> to vector<128xf32>
    %40 = vector.shape_cast %39 : vector<128xf32> to vector<1x128xf32>
    %41 = vector.shape_cast %40 : vector<1x128xf32> to vector<1x1x128xf32>
    %c0_36 = arith.constant 0 : index
    %c0_37 = arith.constant 0 : index
    %c0_38 = arith.constant 0 : index
    %42 = vector.load %arg5[%c0_36, %c0_37, %c0_38] : memref<1x1x128xf32, #tpu.memory_space<vmem>>, vector<1x1x128xf32>
    tpu.vector_store %arg5[%c0_36, %c0_37, %c0_38], %41 {strides = array<i32>} : memref<1x1x128xf32, #tpu.memory_space<vmem>>, vector<1x1x128xf32>,
    return
  }
  func.func @transform_0(%arg0: i32) -> (i32, i32, i32, i32) {
    %c0_i32 = arith.constant 0 : i32
    %c0_i32_0 = arith.constant 0 : i32
    %c0_i32_1 = arith.constant 0 : i32
    %c0_i32_2 = arith.constant 0 : i32
    return %arg0, %c0_i32, %c0_i32_0, %c0_i32_1 : i32, i32, i32, i32
  }
  func.func @transform_1(%arg0: i32) -> (i32, i32, i32) {
    %c0_i32 = arith.constant 0 : i32
    %c0_i32_0 = arith.constant 0 : i32
    %c0_i32_1 = arith.constant 0 : i32
    %c0_i32_2 = arith.constant 0 : i32
    return %c0_i32, %c0_i32_0, %c0_i32_1 : i32, i32, i32
  }
  func.func @transform_2(%arg0: i32) -> (i32, i32, i32, i32) {
    %c0_i32 = arith.constant 0 : i32
    %c0_i32_0 = arith.constant 0 : i32
    %c0_i32_1 = arith.constant 0 : i32
    %c0_i32_2 = arith.constant 0 : i32
    return %arg0, %c0_i32, %c0_i32_0, %c0_i32_1 : i32, i32, i32, i32
  }
  func.func @transform_3(%arg0: i32) -> (i32, i32, i32) {
    %c0_i32 = arith.constant 0 : i32
    %c0_i32_0 = arith.constant 0 : i32
    %c0_i32_1 = arith.constant 0 : i32
    return %arg0, %c0_i32, %c0_i32_0 : i32, i32, i32
  }
  func.func @transform_4(%arg0: i32) -> (i32, i32, i32) {
    %c0_i32 = arith.constant 0 : i32
    %c0_i32_0 = arith.constant 0 : i32
    %c0_i32_1 = arith.constant 0 : i32
    return %arg0, %c0_i32, %c0_i32_0 : i32, i32, i32
  }
}

module attributes {stable_mosaic.version = 11 : i64} {
  func.func @conv_taps_stats_kernel(%arg0: i32, %arg1: memref<2x10x10x128xbf16, #tpu.memory_space<vmem>>, %arg2: memref<9x128x128xbf16, #tpu.memory_space<vmem>>, %arg3: memref<2x8x8x128xbf16, #tpu.memory_space<vmem>>, %arg4: memref<1x1x128xf32, #tpu.memory_space<vmem>>, %arg5: memref<1x1x128xf32, #tpu.memory_space<vmem>>) attributes {dimension_semantics = [#tpu.dimension_semantics<parallel>], iteration_bounds = array<i64: 1>, scalar_prefetch = 0 : i64, scratch_operands = 0 : i64, tpu.core_type = #tpu.core_type<tc>, window_params = [{transform_indices = @transform_0, window_bounds = array<i64: 2, 10, 10, 128>}, {pipeline_mode = #tpu.pipeline_mode<synchronous>, transform_indices = @transform_1, window_bounds = array<i64: 9, 128, 128>}, {transform_indices = @transform_2, window_bounds = array<i64: 2, 8, 8, 128>}, {transform_indices = @transform_3, window_bounds = array<i64: 1, 1, 128>}, {transform_indices = @transform_4, window_bounds = array<i64: 1, 1, 128>}]} {
    %c0 = arith.constant 0 : index
    %c0_0 = arith.constant 0 : index
    %c0_1 = arith.constant 0 : index
    %c0_2 = arith.constant 0 : index
    %0 = vector.load %arg1[%c0, %c0_0, %c0_1, %c0_2] : memref<2x10x10x128xbf16, #tpu.memory_space<vmem>>, vector<2x8x8x128xbf16>
    %1 = arith.extf %0 : vector<2x8x8x128xbf16> to vector<2x8x8x128xf32>
    %2 = vector.shape_cast %1 : vector<2x8x8x128xf32> to vector<128x128xf32>
    %3 = arith.truncf %2 : vector<128x128xf32> to vector<128x128xbf16>
    %c0_3 = arith.constant 0 : index
    %c0_4 = arith.constant 0 : index
    %c0_5 = arith.constant 0 : index
    %4 = vector.load %arg2[%c0_3, %c0_4, %c0_5] : memref<9x128x128xbf16, #tpu.memory_space<vmem>>, vector<1x128x128xbf16>
    %5 = vector.shape_cast %4 : vector<1x128x128xbf16> to vector<128x128xbf16>
    %cst = arith.constant dense<0.000000e+00> : vector<128x128xf32>
    %6 = tpu.matmul %3, %5, %cst {dimension_numbers = #tpu.dot_dimension_numbers<[1], [0], [0], [1], [0, 0, 1, 1], [], []>} : vector<128x128xbf16>, vector<128x128xbf16>, vector<128x128xf32> -> vector<128x128xf32>
    %c0_6 = arith.constant 0 : index
    %c0_7 = arith.constant 0 : index
    %c1 = arith.constant 1 : index
    %c0_8 = arith.constant 0 : index
    %7 = vector.load %arg1[%c0_6, %c0_7, %c1, %c0_8] : memref<2x10x10x128xbf16, #tpu.memory_space<vmem>>, vector<2x8x8x128xbf16>
    %8 = arith.extf %7 : vector<2x8x8x128xbf16> to vector<2x8x8x128xf32>
    %9 = vector.shape_cast %8 : vector<2x8x8x128xf32> to vector<128x128xf32>
    %10 = arith.truncf %9 : vector<128x128xf32> to vector<128x128xbf16>
    %c1_9 = arith.constant 1 : index
    %c0_10 = arith.constant 0 : index
    %c0_11 = arith.constant 0 : index
    %11 = vector.load %arg2[%c1_9, %c0_10, %c0_11] : memref<9x128x128xbf16, #tpu.memory_space<vmem>>, vector<1x128x128xbf16>
    %12 = vector.shape_cast %11 : vector<1x128x128xbf16> to vector<128x128xbf16>
    %cst_12 = arith.constant dense<0.000000e+00> : vector<128x128xf32>
    %13 = tpu.matmul %10, %12, %cst_12 {dimension_numbers = #tpu.dot_dimension_numbers<[1], [0], [0], [1], [0, 0, 1, 1], [], []>} : vector<128x128xbf16>, vector<128x128xbf16>, vector<128x128xf32> -> vector<128x128xf32>
    %14 = arith.addf %6, %13 : vector<128x128xf32>
    %c0_13 = arith.constant 0 : index
    %c0_14 = arith.constant 0 : index
    %c2 = arith.constant 2 : index
    %c0_15 = arith.constant 0 : index
    %15 = vector.load %arg1[%c0_13, %c0_14, %c2, %c0_15] : memref<2x10x10x128xbf16, #tpu.memory_space<vmem>>, vector<2x8x8x128xbf16>
    %16 = arith.extf %15 : vector<2x8x8x128xbf16> to vector<2x8x8x128xf32>
    %17 = vector.shape_cast %16 : vector<2x8x8x128xf32> to vector<128x128xf32>
    %18 = arith.truncf %17 : vector<128x128xf32> to vector<128x128xbf16>
    %c2_16 = arith.constant 2 : index
    %c0_17 = arith.constant 0 : index
    %c0_18 = arith.constant 0 : index
    %19 = vector.load %arg2[%c2_16, %c0_17, %c0_18] : memref<9x128x128xbf16, #tpu.memory_space<vmem>>, vector<1x128x128xbf16>
    %20 = vector.shape_cast %19 : vector<1x128x128xbf16> to vector<128x128xbf16>
    %cst_19 = arith.constant dense<0.000000e+00> : vector<128x128xf32>
    %21 = tpu.matmul %18, %20, %cst_19 {dimension_numbers = #tpu.dot_dimension_numbers<[1], [0], [0], [1], [0, 0, 1, 1], [], []>} : vector<128x128xbf16>, vector<128x128xbf16>, vector<128x128xf32> -> vector<128x128xf32>
    %22 = arith.addf %14, %21 : vector<128x128xf32>
    %c0_20 = arith.constant 0 : index
    %c1_21 = arith.constant 1 : index
    %c0_22 = arith.constant 0 : index
    %c0_23 = arith.constant 0 : index
    %23 = vector.load %arg1[%c0_20, %c1_21, %c0_22, %c0_23] : memref<2x10x10x128xbf16, #tpu.memory_space<vmem>>, vector<2x8x8x128xbf16>
    %24 = arith.extf %23 : vector<2x8x8x128xbf16> to vector<2x8x8x128xf32>
    %25 = vector.shape_cast %24 : vector<2x8x8x128xf32> to vector<128x128xf32>
    %26 = arith.truncf %25 : vector<128x128xf32> to vector<128x128xbf16>
    %c3 = arith.constant 3 : index
    %c0_24 = arith.constant 0 : index
    %c0_25 = arith.constant 0 : index
    %27 = vector.load %arg2[%c3, %c0_24, %c0_25] : memref<9x128x128xbf16, #tpu.memory_space<vmem>>, vector<1x128x128xbf16>
    %28 = vector.shape_cast %27 : vector<1x128x128xbf16> to vector<128x128xbf16>
    %cst_26 = arith.constant dense<0.000000e+00> : vector<128x128xf32>
    %29 = tpu.matmul %26, %28, %cst_26 {dimension_numbers = #tpu.dot_dimension_numbers<[1], [0], [0], [1], [0, 0, 1, 1], [], []>} : vector<128x128xbf16>, vector<128x128xbf16>, vector<128x128xf32> -> vector<128x128xf32>
    %30 = arith.addf %22, %29 : vector<128x128xf32>
    %c0_27 = arith.constant 0 : index
    %c1_28 = arith.constant 1 : index
    %c1_29 = arith.constant 1 : index
    %c0_30 = arith.constant 0 : index
    %31 = vector.load %arg1[%c0_27, %c1_28, %c1_29, %c0_30] : memref<2x10x10x128xbf16, #tpu.memory_space<vmem>>, vector<2x8x8x128xbf16>
    %32 = arith.extf %31 : vector<2x8x8x128xbf16> to vector<2x8x8x128xf32>
    %33 = vector.shape_cast %32 : vector<2x8x8x128xf32> to vector<128x128xf32>
    %34 = arith.truncf %33 : vector<128x128xf32> to vector<128x128xbf16>
    %c4 = arith.constant 4 : index
    %c0_31 = arith.constant 0 : index
    %c0_32 = arith.constant 0 : index
    %35 = vector.load %arg2[%c4, %c0_31, %c0_32] : memref<9x128x128xbf16, #tpu.memory_space<vmem>>, vector<1x128x128xbf16>
    %36 = vector.shape_cast %35 : vector<1x128x128xbf16> to vector<128x128xbf16>
    %cst_33 = arith.constant dense<0.000000e+00> : vector<128x128xf32>
    %37 = tpu.matmul %34, %36, %cst_33 {dimension_numbers = #tpu.dot_dimension_numbers<[1], [0], [0], [1], [0, 0, 1, 1], [], []>} : vector<128x128xbf16>, vector<128x128xbf16>, vector<128x128xf32> -> vector<128x128xf32>
    %38 = arith.addf %30, %37 : vector<128x128xf32>
    %c0_34 = arith.constant 0 : index
    %c1_35 = arith.constant 1 : index
    %c2_36 = arith.constant 2 : index
    %c0_37 = arith.constant 0 : index
    %39 = vector.load %arg1[%c0_34, %c1_35, %c2_36, %c0_37] : memref<2x10x10x128xbf16, #tpu.memory_space<vmem>>, vector<2x8x8x128xbf16>
    %40 = arith.extf %39 : vector<2x8x8x128xbf16> to vector<2x8x8x128xf32>
    %41 = vector.shape_cast %40 : vector<2x8x8x128xf32> to vector<128x128xf32>
    %42 = arith.truncf %41 : vector<128x128xf32> to vector<128x128xbf16>
    %c5 = arith.constant 5 : index
    %c0_38 = arith.constant 0 : index
    %c0_39 = arith.constant 0 : index
    %43 = vector.load %arg2[%c5, %c0_38, %c0_39] : memref<9x128x128xbf16, #tpu.memory_space<vmem>>, vector<1x128x128xbf16>
    %44 = vector.shape_cast %43 : vector<1x128x128xbf16> to vector<128x128xbf16>
    %cst_40 = arith.constant dense<0.000000e+00> : vector<128x128xf32>
    %45 = tpu.matmul %42, %44, %cst_40 {dimension_numbers = #tpu.dot_dimension_numbers<[1], [0], [0], [1], [0, 0, 1, 1], [], []>} : vector<128x128xbf16>, vector<128x128xbf16>, vector<128x128xf32> -> vector<128x128xf32>
    %46 = arith.addf %38, %45 : vector<128x128xf32>
    %c0_41 = arith.constant 0 : index
    %c2_42 = arith.constant 2 : index
    %c0_43 = arith.constant 0 : index
    %c0_44 = arith.constant 0 : index
    %47 = vector.load %arg1[%c0_41, %c2_42, %c0_43, %c0_44] : memref<2x10x10x128xbf16, #tpu.memory_space<vmem>>, vector<2x8x8x128xbf16>
    %48 = arith.extf %47 : vector<2x8x8x128xbf16> to vector<2x8x8x128xf32>
    %49 = vector.shape_cast %48 : vector<2x8x8x128xf32> to vector<128x128xf32>
    %50 = arith.truncf %49 : vector<128x128xf32> to vector<128x128xbf16>
    %c6 = arith.constant 6 : index
    %c0_45 = arith.constant 0 : index
    %c0_46 = arith.constant 0 : index
    %51 = vector.load %arg2[%c6, %c0_45, %c0_46] : memref<9x128x128xbf16, #tpu.memory_space<vmem>>, vector<1x128x128xbf16>
    %52 = vector.shape_cast %51 : vector<1x128x128xbf16> to vector<128x128xbf16>
    %cst_47 = arith.constant dense<0.000000e+00> : vector<128x128xf32>
    %53 = tpu.matmul %50, %52, %cst_47 {dimension_numbers = #tpu.dot_dimension_numbers<[1], [0], [0], [1], [0, 0, 1, 1], [], []>} : vector<128x128xbf16>, vector<128x128xbf16>, vector<128x128xf32> -> vector<128x128xf32>
    %54 = arith.addf %46, %53 : vector<128x128xf32>
    %c0_48 = arith.constant 0 : index
    %c2_49 = arith.constant 2 : index
    %c1_50 = arith.constant 1 : index
    %c0_51 = arith.constant 0 : index
    %55 = vector.load %arg1[%c0_48, %c2_49, %c1_50, %c0_51] : memref<2x10x10x128xbf16, #tpu.memory_space<vmem>>, vector<2x8x8x128xbf16>
    %56 = arith.extf %55 : vector<2x8x8x128xbf16> to vector<2x8x8x128xf32>
    %57 = vector.shape_cast %56 : vector<2x8x8x128xf32> to vector<128x128xf32>
    %58 = arith.truncf %57 : vector<128x128xf32> to vector<128x128xbf16>
    %c7 = arith.constant 7 : index
    %c0_52 = arith.constant 0 : index
    %c0_53 = arith.constant 0 : index
    %59 = vector.load %arg2[%c7, %c0_52, %c0_53] : memref<9x128x128xbf16, #tpu.memory_space<vmem>>, vector<1x128x128xbf16>
    %60 = vector.shape_cast %59 : vector<1x128x128xbf16> to vector<128x128xbf16>
    %cst_54 = arith.constant dense<0.000000e+00> : vector<128x128xf32>
    %61 = tpu.matmul %58, %60, %cst_54 {dimension_numbers = #tpu.dot_dimension_numbers<[1], [0], [0], [1], [0, 0, 1, 1], [], []>} : vector<128x128xbf16>, vector<128x128xbf16>, vector<128x128xf32> -> vector<128x128xf32>
    %62 = arith.addf %54, %61 : vector<128x128xf32>
    %c0_55 = arith.constant 0 : index
    %c2_56 = arith.constant 2 : index
    %c2_57 = arith.constant 2 : index
    %c0_58 = arith.constant 0 : index
    %63 = vector.load %arg1[%c0_55, %c2_56, %c2_57, %c0_58] : memref<2x10x10x128xbf16, #tpu.memory_space<vmem>>, vector<2x8x8x128xbf16>
    %64 = arith.extf %63 : vector<2x8x8x128xbf16> to vector<2x8x8x128xf32>
    %65 = vector.shape_cast %64 : vector<2x8x8x128xf32> to vector<128x128xf32>
    %66 = arith.truncf %65 : vector<128x128xf32> to vector<128x128xbf16>
    %c8 = arith.constant 8 : index
    %c0_59 = arith.constant 0 : index
    %c0_60 = arith.constant 0 : index
    %67 = vector.load %arg2[%c8, %c0_59, %c0_60] : memref<9x128x128xbf16, #tpu.memory_space<vmem>>, vector<1x128x128xbf16>
    %68 = vector.shape_cast %67 : vector<1x128x128xbf16> to vector<128x128xbf16>
    %cst_61 = arith.constant dense<0.000000e+00> : vector<128x128xf32>
    %69 = tpu.matmul %66, %68, %cst_61 {dimension_numbers = #tpu.dot_dimension_numbers<[1], [0], [0], [1], [0, 0, 1, 1], [], []>} : vector<128x128xbf16>, vector<128x128xbf16>, vector<128x128xf32> -> vector<128x128xf32>
    %70 = arith.addf %62, %69 : vector<128x128xf32>
    %71 = vector.shape_cast %70 : vector<128x128xf32> to vector<2x8x8x128xf32>
    %72 = arith.truncf %71 : vector<2x8x8x128xf32> to vector<2x8x8x128xbf16>
    %c0_62 = arith.constant 0 : index
    %c0_63 = arith.constant 0 : index
    %c0_64 = arith.constant 0 : index
    %c0_65 = arith.constant 0 : index
    %73 = vector.load %arg3[%c0_62, %c0_63, %c0_64, %c0_65] : memref<2x8x8x128xbf16, #tpu.memory_space<vmem>>, vector<2x8x8x128xbf16>
    tpu.vector_store %arg3[%c0_62, %c0_63, %c0_64, %c0_65], %72 {strides = array<i32>} : memref<2x8x8x128xbf16, #tpu.memory_space<vmem>>, vector<2x8x8x128xbf16>,
    %cst_66 = arith.constant dense<0.000000e+00> : vector<128xf32>
    %74 = vector.multi_reduction <add>, %70, %cst_66 [0] : vector<128x128xf32> to vector<128xf32>
    %75 = vector.shape_cast %74 : vector<128xf32> to vector<1x128xf32>
    %76 = vector.shape_cast %75 : vector<1x128xf32> to vector<1x1x128xf32>
    %c0_67 = arith.constant 0 : index
    %c0_68 = arith.constant 0 : index
    %c0_69 = arith.constant 0 : index
    %77 = vector.load %arg4[%c0_67, %c0_68, %c0_69] : memref<1x1x128xf32, #tpu.memory_space<vmem>>, vector<1x1x128xf32>
    tpu.vector_store %arg4[%c0_67, %c0_68, %c0_69], %76 {strides = array<i32>} : memref<1x1x128xf32, #tpu.memory_space<vmem>>, vector<1x1x128xf32>,
    %78 = arith.mulf %70, %70 : vector<128x128xf32>
    %cst_70 = arith.constant dense<0.000000e+00> : vector<128xf32>
    %79 = vector.multi_reduction <add>, %78, %cst_70 [0] : vector<128x128xf32> to vector<128xf32>
    %80 = vector.shape_cast %79 : vector<128xf32> to vector<1x128xf32>
    %81 = vector.shape_cast %80 : vector<1x128xf32> to vector<1x1x128xf32>
    %c0_71 = arith.constant 0 : index
    %c0_72 = arith.constant 0 : index
    %c0_73 = arith.constant 0 : index
    %82 = vector.load %arg5[%c0_71, %c0_72, %c0_73] : memref<1x1x128xf32, #tpu.memory_space<vmem>>, vector<1x1x128xf32>
    tpu.vector_store %arg5[%c0_71, %c0_72, %c0_73], %81 {strides = array<i32>} : memref<1x1x128xf32, #tpu.memory_space<vmem>>, vector<1x1x128xf32>,
    return
  }
  func.func @transform_0(%arg0: i32) -> (i32, i32, i32, i32) {
    %c0_i32 = arith.constant 0 : i32
    %c0_i32_0 = arith.constant 0 : i32
    %c0_i32_1 = arith.constant 0 : i32
    %c0_i32_2 = arith.constant 0 : i32
    return %arg0, %c0_i32, %c0_i32_0, %c0_i32_1 : i32, i32, i32, i32
  }
  func.func @transform_1(%arg0: i32) -> (i32, i32, i32) {
    %c0_i32 = arith.constant 0 : i32
    %c0_i32_0 = arith.constant 0 : i32
    %c0_i32_1 = arith.constant 0 : i32
    %c0_i32_2 = arith.constant 0 : i32
    return %c0_i32, %c0_i32_0, %c0_i32_1 : i32, i32, i32
  }
  func.func @transform_2(%arg0: i32) -> (i32, i32, i32, i32) {
    %c0_i32 = arith.constant 0 : i32
    %c0_i32_0 = arith.constant 0 : i32
    %c0_i32_1 = arith.constant 0 : i32
    %c0_i32_2 = arith.constant 0 : i32
    return %arg0, %c0_i32, %c0_i32_0, %c0_i32_1 : i32, i32, i32, i32
  }
  func.func @transform_3(%arg0: i32) -> (i32, i32, i32) {
    %c0_i32 = arith.constant 0 : i32
    %c0_i32_0 = arith.constant 0 : i32
    %c0_i32_1 = arith.constant 0 : i32
    return %arg0, %c0_i32, %c0_i32_0 : i32, i32, i32
  }
  func.func @transform_4(%arg0: i32) -> (i32, i32, i32) {
    %c0_i32 = arith.constant 0 : i32
    %c0_i32_0 = arith.constant 0 : i32
    %c0_i32_1 = arith.constant 0 : i32
    return %arg0, %c0_i32, %c0_i32_0 : i32, i32, i32
  }
}

module attributes {stable_mosaic.version = 11 : i64} {
  func.func @conv_taps_stats_kernel(%arg0: i32, %arg1: memref<2x8x8x128xbf16, #tpu.memory_space<vmem>>, %arg2: memref<1x128x128xbf16, #tpu.memory_space<vmem>>, %arg3: memref<2x8x8x128xbf16, #tpu.memory_space<vmem>>, %arg4: memref<1x1x128xf32, #tpu.memory_space<vmem>>, %arg5: memref<1x1x128xf32, #tpu.memory_space<vmem>>) attributes {dimension_semantics = [#tpu.dimension_semantics<parallel>], iteration_bounds = array<i64: 1>, scalar_prefetch = 0 : i64, scratch_operands = 0 : i64, tpu.core_type = #tpu.core_type<tc>, window_params = [{transform_indices = @transform_0, window_bounds = array<i64: 2, 8, 8, 128>}, {pipeline_mode = #tpu.pipeline_mode<synchronous>, transform_indices = @transform_1, window_bounds = array<i64: 1, 128, 128>}, {transform_indices = @transform_2, window_bounds = array<i64: 2, 8, 8, 128>}, {transform_indices = @transform_3, window_bounds = array<i64: 1, 1, 128>}, {transform_indices = @transform_4, window_bounds = array<i64: 1, 1, 128>}]} {
    %c0 = arith.constant 0 : index
    %c0_0 = arith.constant 0 : index
    %c0_1 = arith.constant 0 : index
    %c0_2 = arith.constant 0 : index
    %0 = vector.load %arg1[%c0, %c0_0, %c0_1, %c0_2] : memref<2x8x8x128xbf16, #tpu.memory_space<vmem>>, vector<2x8x8x128xbf16>
    %1 = arith.extf %0 : vector<2x8x8x128xbf16> to vector<2x8x8x128xf32>
    %2 = vector.shape_cast %1 : vector<2x8x8x128xf32> to vector<128x128xf32>
    %3 = arith.truncf %2 : vector<128x128xf32> to vector<128x128xbf16>
    %c0_3 = arith.constant 0 : index
    %c0_4 = arith.constant 0 : index
    %c0_5 = arith.constant 0 : index
    %4 = vector.load %arg2[%c0_3, %c0_4, %c0_5] : memref<1x128x128xbf16, #tpu.memory_space<vmem>>, vector<1x128x128xbf16>
    %5 = vector.shape_cast %4 : vector<1x128x128xbf16> to vector<128x128xbf16>
    %cst = arith.constant dense<0.000000e+00> : vector<128x128xf32>
    %6 = tpu.matmul %3, %5, %cst {dimension_numbers = #tpu.dot_dimension_numbers<[1], [0], [0], [1], [0, 0, 1, 1], [], []>} : vector<128x128xbf16>, vector<128x128xbf16>, vector<128x128xf32> -> vector<128x128xf32>
    %7 = vector.shape_cast %6 : vector<128x128xf32> to vector<2x8x8x128xf32>
    %8 = arith.truncf %7 : vector<2x8x8x128xf32> to vector<2x8x8x128xbf16>
    %c0_6 = arith.constant 0 : index
    %c0_7 = arith.constant 0 : index
    %c0_8 = arith.constant 0 : index
    %c0_9 = arith.constant 0 : index
    %9 = vector.load %arg3[%c0_6, %c0_7, %c0_8, %c0_9] : memref<2x8x8x128xbf16, #tpu.memory_space<vmem>>, vector<2x8x8x128xbf16>
    tpu.vector_store %arg3[%c0_6, %c0_7, %c0_8, %c0_9], %8 {strides = array<i32>} : memref<2x8x8x128xbf16, #tpu.memory_space<vmem>>, vector<2x8x8x128xbf16>,
    %cst_10 = arith.constant dense<0.000000e+00> : vector<128xf32>
    %10 = vector.multi_reduction <add>, %6, %cst_10 [0] : vector<128x128xf32> to vector<128xf32>
    %11 = vector.shape_cast %10 : vector<128xf32> to vector<1x128xf32>
    %12 = vector.shape_cast %11 : vector<1x128xf32> to vector<1x1x128xf32>
    %c0_11 = arith.constant 0 : index
    %c0_12 = arith.constant 0 : index
    %c0_13 = arith.constant 0 : index
    %13 = vector.load %arg4[%c0_11, %c0_12, %c0_13] : memref<1x1x128xf32, #tpu.memory_space<vmem>>, vector<1x1x128xf32>
    tpu.vector_store %arg4[%c0_11, %c0_12, %c0_13], %12 {strides = array<i32>} : memref<1x1x128xf32, #tpu.memory_space<vmem>>, vector<1x1x128xf32>,
    %14 = arith.mulf %6, %6 : vector<128x128xf32>
    %cst_14 = arith.constant dense<0.000000e+00> : vector<128xf32>
    %15 = vector.multi_reduction <add>, %14, %cst_14 [0] : vector<128x128xf32> to vector<128xf32>
    %16 = vector.shape_cast %15 : vector<128xf32> to vector<1x128xf32>
    %17 = vector.shape_cast %16 : vector<1x128xf32> to vector<1x1x128xf32>
    %c0_15 = arith.constant 0 : index
    %c0_16 = arith.constant 0 : index
    %c0_17 = arith.constant 0 : index
    %18 = vector.load %arg5[%c0_15, %c0_16, %c0_17] : memref<1x1x128xf32, #tpu.memory_space<vmem>>, vector<1x1x128xf32>
    tpu.vector_store %arg5[%c0_15, %c0_16, %c0_17], %17 {strides = array<i32>} : memref<1x1x128xf32, #tpu.memory_space<vmem>>, vector<1x1x128xf32>,
    return
  }
  func.func @transform_0(%arg0: i32) -> (i32, i32, i32, i32) {
    %c0_i32 = arith.constant 0 : i32
    %c0_i32_0 = arith.constant 0 : i32
    %c0_i32_1 = arith.constant 0 : i32
    %c0_i32_2 = arith.constant 0 : i32
    return %arg0, %c0_i32, %c0_i32_0, %c0_i32_1 : i32, i32, i32, i32
  }
  func.func @transform_1(%arg0: i32) -> (i32, i32, i32) {
    %c0_i32 = arith.constant 0 : i32
    %c0_i32_0 = arith.constant 0 : i32
    %c0_i32_1 = arith.constant 0 : i32
    %c0_i32_2 = arith.constant 0 : i32
    return %c0_i32, %c0_i32_0, %c0_i32_1 : i32, i32, i32
  }
  func.func @transform_2(%arg0: i32) -> (i32, i32, i32, i32) {
    %c0_i32 = arith.constant 0 : i32
    %c0_i32_0 = arith.constant 0 : i32
    %c0_i32_1 = arith.constant 0 : i32
    %c0_i32_2 = arith.constant 0 : i32
    return %arg0, %c0_i32, %c0_i32_0, %c0_i32_1 : i32, i32, i32, i32
  }
  func.func @transform_3(%arg0: i32) -> (i32, i32, i32) {
    %c0_i32 = arith.constant 0 : i32
    %c0_i32_0 = arith.constant 0 : i32
    %c0_i32_1 = arith.constant 0 : i32
    return %arg0, %c0_i32, %c0_i32_0 : i32, i32, i32
  }
  func.func @transform_4(%arg0: i32) -> (i32, i32, i32) {
    %c0_i32 = arith.constant 0 : i32
    %c0_i32_0 = arith.constant 0 : i32
    %c0_i32_1 = arith.constant 0 : i32
    return %arg0, %c0_i32, %c0_i32_0 : i32, i32, i32
  }
}

module attributes {stable_mosaic.version = 11 : i64} {
  func.func @bn_add_bn_relu_kernel(%arg0: i32, %arg1: memref<2x8x8x128xbf16, #tpu.memory_space<vmem>>, %arg2: memref<1x1x1x128xf32, #tpu.memory_space<vmem>>, %arg3: memref<1x1x1x128xf32, #tpu.memory_space<vmem>>, %arg4: memref<2x8x8x128xbf16, #tpu.memory_space<vmem>>, %arg5: memref<1x1x1x128xf32, #tpu.memory_space<vmem>>, %arg6: memref<1x1x1x128xf32, #tpu.memory_space<vmem>>, %arg7: memref<2x8x8x128xf32, #tpu.memory_space<vmem>>) attributes {dimension_semantics = [#tpu.dimension_semantics<parallel>], iteration_bounds = array<i64: 1>, scalar_prefetch = 0 : i64, scratch_operands = 0 : i64, tpu.core_type = #tpu.core_type<tc>, window_params = [{transform_indices = @transform_0, window_bounds = array<i64: 2, 8, 8, 128>}, {pipeline_mode = #tpu.pipeline_mode<synchronous>, transform_indices = @transform_1, window_bounds = array<i64: 1, 1, 1, 128>}, {pipeline_mode = #tpu.pipeline_mode<synchronous>, transform_indices = @transform_2, window_bounds = array<i64: 1, 1, 1, 128>}, {transform_indices = @transform_3, window_bounds = array<i64: 2, 8, 8, 128>}, {pipeline_mode = #tpu.pipeline_mode<synchronous>, transform_indices = @transform_4, window_bounds = array<i64: 1, 1, 1, 128>}, {pipeline_mode = #tpu.pipeline_mode<synchronous>, transform_indices = @transform_5, window_bounds = array<i64: 1, 1, 1, 128>}, {transform_indices = @transform_6, window_bounds = array<i64: 2, 8, 8, 128>}]} {
    %c0 = arith.constant 0 : index
    %c0_0 = arith.constant 0 : index
    %c0_1 = arith.constant 0 : index
    %c0_2 = arith.constant 0 : index
    %0 = vector.load %arg1[%c0, %c0_0, %c0_1, %c0_2] : memref<2x8x8x128xbf16, #tpu.memory_space<vmem>>, vector<2x8x8x128xbf16>
    %1 = arith.extf %0 : vector<2x8x8x128xbf16> to vector<2x8x8x128xf32>
    %c0_3 = arith.constant 0 : index
    %c0_4 = arith.constant 0 : index
    %c0_5 = arith.constant 0 : index
    %c0_6 = arith.constant 0 : index
    %2 = vector.load %arg2[%c0_3, %c0_4, %c0_5, %c0_6] : memref<1x1x1x128xf32, #tpu.memory_space<vmem>>, vector<1x1x1x128xf32>
    %3 = vector.broadcast %2 : vector<1x1x1x128xf32> to vector<2x8x8x128xf32>
    %4 = arith.mulf %1, %3 : vector<2x8x8x128xf32>
    %c0_7 = arith.constant 0 : index
    %c0_8 = arith.constant 0 : index
    %c0_9 = arith.constant 0 : index
    %c0_10 = arith.constant 0 : index
    %5 = vector.load %arg3[%c0_7, %c0_8, %c0_9, %c0_10] : memref<1x1x1x128xf32, #tpu.memory_space<vmem>>, vector<1x1x1x128xf32>
    %6 = vector.broadcast %5 : vector<1x1x1x128xf32> to vector<2x8x8x128xf32>
    %7 = arith.addf %4, %6 : vector<2x8x8x128xf32>
    %c0_11 = arith.constant 0 : index
    %c0_12 = arith.constant 0 : index
    %c0_13 = arith.constant 0 : index
    %c0_14 = arith.constant 0 : index
    %8 = vector.load %arg4[%c0_11, %c0_12, %c0_13, %c0_14] : memref<2x8x8x128xbf16, #tpu.memory_space<vmem>>, vector<2x8x8x128xbf16>
    %9 = arith.extf %8 : vector<2x8x8x128xbf16> to vector<2x8x8x128xf32>
    %c0_15 = arith.constant 0 : index
    %c0_16 = arith.constant 0 : index
    %c0_17 = arith.constant 0 : index
    %c0_18 = arith.constant 0 : index
    %10 = vector.load %arg5[%c0_15, %c0_16, %c0_17, %c0_18] : memref<1x1x1x128xf32, #tpu.memory_space<vmem>>, vector<1x1x1x128xf32>
    %11 = vector.broadcast %10 : vector<1x1x1x128xf32> to vector<2x8x8x128xf32>
    %12 = arith.mulf %9, %11 : vector<2x8x8x128xf32>
    %c0_19 = arith.constant 0 : index
    %c0_20 = arith.constant 0 : index
    %c0_21 = arith.constant 0 : index
    %c0_22 = arith.constant 0 : index
    %13 = vector.load %arg6[%c0_19, %c0_20, %c0_21, %c0_22] : memref<1x1x1x128xf32, #tpu.memory_space<vmem>>, vector<1x1x1x128xf32>
    %14 = vector.broadcast %13 : vector<1x1x1x128xf32> to vector<2x8x8x128xf32>
    %15 = arith.addf %12, %14 : vector<2x8x8x128xf32>
    %16 = arith.addf %7, %15 : vector<2x8x8x128xf32>
    %cst = arith.constant 0.000000e+00 : f32
    %17 = vector.broadcast %cst : f32 to vector<2x8x8x128xf32>
    %18 = arith.maximumf %16, %17 : vector<2x8x8x128xf32>
    %c0_23 = arith.constant 0 : index
    %c0_24 = arith.constant 0 : index
    %c0_25 = arith.constant 0 : index
    %c0_26 = arith.constant 0 : index
    %19 = vector.load %arg7[%c0_23, %c0_24, %c0_25, %c0_26] : memref<2x8x8x128xf32, #tpu.memory_space<vmem>>, vector<2x8x8x128xf32>
    tpu.vector_store %arg7[%c0_23, %c0_24, %c0_25, %c0_26], %18 {strides = array<i32>} : memref<2x8x8x128xf32, #tpu.memory_space<vmem>>, vector<2x8x8x128xf32>,
    return
  }
  func.func @transform_0(%arg0: i32) -> (i32, i32, i32, i32) {
    %c0_i32 = arith.constant 0 : i32
    %c0_i32_0 = arith.constant 0 : i32
    %c0_i32_1 = arith.constant 0 : i32
    %c0_i32_2 = arith.constant 0 : i32
    return %arg0, %c0_i32, %c0_i32_0, %c0_i32_1 : i32, i32, i32, i32
  }
  func.func @transform_1(%arg0: i32) -> (i32, i32, i32, i32) {
    %c0_i32 = arith.constant 0 : i32
    %c0_i32_0 = arith.constant 0 : i32
    %c0_i32_1 = arith.constant 0 : i32
    %c0_i32_2 = arith.constant 0 : i32
    %c0_i32_3 = arith.constant 0 : i32
    return %c0_i32, %c0_i32_0, %c0_i32_1, %c0_i32_2 : i32, i32, i32, i32
  }
  func.func @transform_2(%arg0: i32) -> (i32, i32, i32, i32) {
    %c0_i32 = arith.constant 0 : i32
    %c0_i32_0 = arith.constant 0 : i32
    %c0_i32_1 = arith.constant 0 : i32
    %c0_i32_2 = arith.constant 0 : i32
    %c0_i32_3 = arith.constant 0 : i32
    return %c0_i32, %c0_i32_0, %c0_i32_1, %c0_i32_2 : i32, i32, i32, i32
  }
  func.func @transform_3(%arg0: i32) -> (i32, i32, i32, i32) {
    %c0_i32 = arith.constant 0 : i32
    %c0_i32_0 = arith.constant 0 : i32
    %c0_i32_1 = arith.constant 0 : i32
    %c0_i32_2 = arith.constant 0 : i32
    return %arg0, %c0_i32, %c0_i32_0, %c0_i32_1 : i32, i32, i32, i32
  }
  func.func @transform_4(%arg0: i32) -> (i32, i32, i32, i32) {
    %c0_i32 = arith.constant 0 : i32
    %c0_i32_0 = arith.constant 0 : i32
    %c0_i32_1 = arith.constant 0 : i32
    %c0_i32_2 = arith.constant 0 : i32
    %c0_i32_3 = arith.constant 0 : i32
    return %c0_i32, %c0_i32_0, %c0_i32_1, %c0_i32_2 : i32, i32, i32, i32
  }
  func.func @transform_5(%arg0: i32) -> (i32, i32, i32, i32) {
    %c0_i32 = arith.constant 0 : i32
    %c0_i32_0 = arith.constant 0 : i32
    %c0_i32_1 = arith.constant 0 : i32
    %c0_i32_2 = arith.constant 0 : i32
    %c0_i32_3 = arith.constant 0 : i32
    return %c0_i32, %c0_i32_0, %c0_i32_1, %c0_i32_2 : i32, i32, i32, i32
  }
  func.func @transform_6(%arg0: i32) -> (i32, i32, i32, i32) {
    %c0_i32 = arith.constant 0 : i32
    %c0_i32_0 = arith.constant 0 : i32
    %c0_i32_1 = arith.constant 0 : i32
    %c0_i32_2 = arith.constant 0 : i32
    return %arg0, %c0_i32, %c0_i32_0, %c0_i32_1 : i32, i32, i32, i32
  }
}

</mosaic_0001>

<llo_original>
// kernel: resnet_layer_forward.6
$region0: #{resnet_layer_forward.6}
  #allocation0 [shape = 'u32[]', space=smem, size = 0x4, offset = 0x4, fixed_abs, tag = 'smem constant byte address 0x4 - core index']
  #allocation1 [shape = 'u32[144,128]{1,0:T(1,128)}', space=vmem, size = 0x12000, scoped, tag = 'internal scratch']
  %s0 = inlined_call_operand.vmem [shape: bf16[2,8,8,128], index: 0, kind: input, shape index: {}]
  %s1 = inlined_call_operand.vmem [shape: f32[1,1,1,128], index: 1, kind: input, shape index: {}]
  %s2 = inlined_call_operand.vmem [shape: f32[1,1,1,128], index: 2, kind: input, shape index: {}]
  %s3 = inlined_call_operand.vmem [shape: bf16[2,8,8,128], index: 3, kind: output, shape index: {}]
  %s4 = sld [smem:[#allocation0]]
  $region22: #{resnet_layer_forward.6} parent=0
    _
  %s6 = ssub.s32 1, %s4
  %s7 = scalar_select 0, %s6, %s4
  // Predicated region
  $region2: #{resnet_layer_forward.6} parent=0 // pred_check
    _
  $region3: #{resnet_layer_forward.6} parent=0 // pred_check_branch
    %9 = sbr.rel (0) target = $region5
  $region4: #{resnet_layer_forward.6} parent=0 // pred_region
    _
  $region5: #{resnet_layer_forward.6} parent=0 // pred_fallthru
    _
  // Predicated region
  $region6: #{resnet_layer_forward.6} parent=0 // pred_check
    _
  $region7: #{resnet_layer_forward.6} parent=0 // pred_check_branch
    %11 = sbr.rel (0) target = $region9
  $region8: #{resnet_layer_forward.6} parent=0 // pred_region
    _
  $region9: #{resnet_layer_forward.6} parent=0 // pred_fallthru
    _
  // Predicated region
  $region10: #{resnet_layer_forward.6} parent=0 // pred_check
    _
  $region11: #{resnet_layer_forward.6} parent=0 // pred_check_branch
    %13 = sbr.rel (0) target = $region13
  $region12: #{resnet_layer_forward.6} parent=0 // pred_region
    _
  $region13: #{resnet_layer_forward.6} parent=0 // pred_fallthru
    _
  %v14 = vld [vmem:[%s0] sm:$0xf]
  %v15 = vld [vmem:[%s0 + $0x4] sm:$0xf]
  %v16 = vld [vmem:[%s0 + $0x8] sm:$0xf]
  %v17 = vld [vmem:[%s0 + $0xc] sm:$0xf]
  %v18 = vld [vmem:[%s0 + $0x10] sm:$0xf]
  %v19 = vld [vmem:[%s0 + $0x14] sm:$0xf]
  %v20 = vld [vmem:[%s0 + $0x18] sm:$0xf]
  %v21 = vld [vmem:[%s0 + $0x1c] sm:$0xf]
  %v22 = vld [vmem:[%s0 + $0x20] sm:$0xf]
  %v23 = vld [vmem:[%s0 + $0x24] sm:$0xf]
  %v24 = vld [vmem:[%s0 + $0x28] sm:$0xf]
  %v25 = vld [vmem:[%s0 + $0x2c] sm:$0xf]
  %v26 = vld [vmem:[%s0 + $0x30] sm:$0xf]
  %v27 = vld [vmem:[%s0 + $0x34] sm:$0xf]
  %v28 = vld [vmem:[%s0 + $0x38] sm:$0xf]
  %v29 = vld [vmem:[%s0 + $0x3c] sm:$0xf]
  %v30 = vunpack.c.l.bf16 %v14
  %v31 = vunpack.c.l.bf16 %v15
  %v32 = vunpack.c.l.bf16 %v16
  %v33 = vunpack.c.l.bf16 %v17
  %v34 = vunpack.c.l.bf16 %v18
  %v35 = vunpack.c.l.bf16 %v19
  %v36 = vunpack.c.l.bf16 %v20
  %v37 = vunpack.c.l.bf16 %v21
  %v38 = vunpack.c.l.bf16 %v22
  %v39 = vunpack.c.l.bf16 %v23
  %v40 = vunpack.c.l.bf16 %v24
  %v41 = vunpack.c.l.bf16 %v25
  %v42 = vunpack.c.l.bf16 %v26
  %v43 = vunpack.c.l.bf16 %v27
  %v44 = vunpack.c.l.bf16 %v28
  %v45 = vunpack.c.l.bf16 %v29
  %v46 = vld [vmem:[%s1] sm:$0x1]
  %v48 = vlaneseq
  %v49 = vshrl.u32 %v48, 7
  %v50 = vsub.s32 0, %v49
  %v51 = vrot.slane %v46, %v50
  %v53 = vmul.f32 %v30, %v51
  %v54 = vmul.f32 %v31, %v51
  %v55 = vmul.f32 %v32, %v51
  %v56 = vmul.f32 %v33, %v51
  %v57 = vmul.f32 %v34, %v51
  %v58 = vmul.f32 %v35, %v51
  %v59 = vmul.f32 %v36, %v51
  %v60 = vmul.f32 %v37, %v51
  %v61 = vmul.f32 %v38, %v51
  %v62 = vmul.f32 %v39, %v51
  %v63 = vmul.f32 %v40, %v51
  %v64 = vmul.f32 %v41, %v51
  %v65 = vmul.f32 %v42, %v51
  %v66 = vmul.f32 %v43, %v51
  %v67 = vmul.f32 %v44, %v51
  %v68 = vmul.f32 %v45, %v51
  %v69 = vld [vmem:[%s2] sm:$0x1]
  %v71 = vlaneseq
  %v72 = vshrl.u32 %v71, 7
  %v73 = vsub.s32 0, %v72
  %v74 = vrot.slane %v69, %v73
  %v76 = vadd.f32 %v53, %v74
  %v77 = vadd.f32 %v54, %v74
  %v78 = vadd.f32 %v55, %v74
  %v79 = vadd.f32 %v56, %v74
  %v80 = vadd.f32 %v57, %v74
  %v81 = vadd.f32 %v58, %v74
  %v82 = vadd.f32 %v59, %v74
  %v83 = vadd.f32 %v60, %v74
  %v84 = vadd.f32 %v61, %v74
  %v85 = vadd.f32 %v62, %v74
  %v86 = vadd.f32 %v63, %v74
  %v87 = vadd.f32 %v64, %v74
  %v88 = vadd.f32 %v65, %v74
  %v89 = vadd.f32 %v66, %v74
  %v90 = vadd.f32 %v67, %v74
  %v91 = vadd.f32 %v68, %v74
  %v92 = vmax.f32 %v76, 0.0
  %v93 = vmax.f32 %v77, 0.0
  %v94 = vmax.f32 %v78, 0.0
  %v95 = vmax.f32 %v79, 0.0
  %v96 = vmax.f32 %v80, 0.0
  %v97 = vmax.f32 %v81, 0.0
  %v98 = vmax.f32 %v82, 0.0
  %v99 = vmax.f32 %v83, 0.0
  %v100 = vmax.f32 %v84, 0.0
  %v101 = vmax.f32 %v85, 0.0
  %v102 = vmax.f32 %v86, 0.0
  %v103 = vmax.f32 %v87, 0.0
  %v104 = vmax.f32 %v88, 0.0
  %v105 = vmax.f32 %v89, 0.0
  %v106 = vmax.f32 %v90, 0.0
  %v107 = vmax.f32 %v91, 0.0
  %v108 = vpack.c.bf16 %v92, %v92
  %v109 = vpack.c.bf16 %v93, %v93
  %v110 = vpack.c.bf16 %v94, %v94
  %v111 = vpack.c.bf16 %v95, %v95
  %v112 = vpack.c.bf16 %v96, %v96
  %v113 = vpack.c.bf16 %v97, %v97
  %v114 = vpack.c.bf16 %v98, %v98
  %v115 = vpack.c.bf16 %v99, %v99
  %v116 = vpack.c.bf16 %v100, %v100
  %v117 = vpack.c.bf16 %v101, %v101
  %v118 = vpack.c.bf16 %v102, %v102
  %v119 = vpack.c.bf16 %v103, %v103
  %v120 = vpack.c.bf16 %v104, %v104
  %v121 = vpack.c.bf16 %v105, %v105
  %v122 = vpack.c.bf16 %v106, %v106
  %v123 = vpack.c.bf16 %v107, %v107
  %124 = vst [vmem:[%s3] sm:$0xf] %v108
  %125 = vst [vmem:[%s3 + $0x4] sm:$0xf] %v109
  %126 = vst [vmem:[%s3 + $0x8] sm:$0xf] %v110
  %127 = vst [vmem:[%s3 + $0xc] sm:$0xf] %v111
  %128 = vst [vmem:[%s3 + $0x10] sm:$0xf] %v112
  %129 = vst [vmem:[%s3 + $0x14] sm:$0xf] %v113
  %130 = vst [vmem:[%s3 + $0x18] sm:$0xf] %v114
  %131 = vst [vmem:[%s3 + $0x1c] sm:$0xf] %v115
  %132 = vst [vmem:[%s3 + $0x20] sm:$0xf] %v116
  %133 = vst [vmem:[%s3 + $0x24] sm:$0xf] %v117
  %134 = vst [vmem:[%s3 + $0x28] sm:$0xf] %v118
  %135 = vst [vmem:[%s3 + $0x2c] sm:$0xf] %v119
  %136 = vst [vmem:[%s3 + $0x30] sm:$0xf] %v120
  %137 = vst [vmem:[%s3 + $0x34] sm:$0xf] %v121
  %138 = vst [vmem:[%s3 + $0x38] sm:$0xf] %v122
  %139 = vst [vmem:[%s3 + $0x3c] sm:$0xf] %v123
  // Predicated region
  $region14: #{resnet_layer_forward.6} parent=0 // pred_check
    _
  $region15: #{resnet_layer_forward.6} parent=0 // pred_check_branch
    %141 = sbr.rel (0) target = $region17
  $region16: #{resnet_layer_forward.6} parent=0 // pred_region
    _
  $region17: #{resnet_layer_forward.6} parent=0 // pred_fallthru
    _
  // Predicated region
  $region18: #{resnet_layer_forward.6} parent=0 // pred_check
    _
  $region19: #{resnet_layer_forward.6} parent=0 // pred_check_branch
    %143 = sbr.rel (0) target = $region21
  $region20: #{resnet_layer_forward.6} parent=0 // pred_region
    _
  $region21: #{resnet_layer_forward.6} parent=0 // pred_fallthru
    _

// kernel: resnet_layer_forward.5
$region0: #{resnet_layer_forward.5}
  #allocation0 [shape = 'u32[]', space=smem, size = 0x4, offset = 0x4, fixed_abs, tag = 'smem constant byte address 0x4 - core index']
  #allocation1 [shape = 'u32[144,128]{1,0:T(1,128)}', space=vmem, size = 0x12000, scoped, tag = 'internal scratch']
  %s0 = inlined_call_operand.vmem [shape: bf16[2,9,9,128], index: 0, kind: input, shape index: {}]
  %s1 = inlined_call_operand.vmem [shape: bf16[4,128,128], index: 1, kind: input, shape index: {}]
  %s2 = inlined_call_operand.vmem [shape: bf16[2,8,8,128], index: 2, kind: output, shape index: {0}]
  %s3 = inlined_call_operand.vmem [shape: f32[1,1,128], index: 3, kind: output, shape index: {1}]
  %s4 = inlined_call_operand.vmem [shape: f32[1,1,128], index: 4, kind: output, shape index: {2}]
  %5 = xla_tuple %s2, %s3, %s4
  %s6 = sld [smem:[#allocation0]]
  $region34: #{resnet_layer_forward.5} parent=0
    _
  %s8 = ssub.s32 1, %s6
  %s9 = scalar_select 0, %s8, %s6
  // Predicated region
  $region2: #{resnet_layer_forward.5} parent=0 // pred_check
    _
  $region3: #{resnet_layer_forward.5} parent=0 // pred_check_branch
    %11 = sbr.rel (0) target = $region5
  $region4: #{resnet_layer_forward.5} parent=0 // pred_region
    _
  $region5: #{resnet_layer_forward.5} parent=0 // pred_fallthru
    _
  // Predicated region
  $region6: #{resnet_layer_forward.5} parent=0 // pred_check
    _
  $region7: #{resnet_layer_forward.5} parent=0 // pred_check_branch
    %13 = sbr.rel (0) target = $region9
  $region8: #{resnet_layer_forward.5} parent=0 // pred_region
    _
  $region9: #{resnet_layer_forward.5} parent=0 // pred_fallthru
    _
  %v15 = vld [vmem:[%s0] sm:$0xf]
  %v16 = vld [vmem:[%s0 + $0x8] sm:$0xf]
  %v17 = vld [vmem:[%s0 + $0x10] sm:$0xf]
  %v18 = vld [vmem:[%s0 + $0x18] sm:$0xf]
  %v19 = vld [vmem:[%s0 + $0x20] sm:$0xf]
  %v20 = vld [vmem:[%s0 + $0x28] sm:$0xf]
  %v21 = vld [vmem:[%s0 + $0x30] sm:$0xf]
  %v22 = vld [vmem:[%s0 + $0x38] sm:$0xf]
  %v23 = vld [vmem:[%s0 + $0x48] sm:$0xf]
  %v24 = vld [vmem:[%s0 + $0x50] sm:$0xf]
  %v25 = vld [vmem:[%s0 + $0x58] sm:$0xf]
  %v26 = vld [vmem:[%s0 + $0x60] sm:$0xf]
  %v27 = vld [vmem:[%s0 + $0x68] sm:$0xf]
  %v28 = vld [vmem:[%s0 + $0x70] sm:$0xf]
  %v29 = vld [vmem:[%s0 + $0x78] sm:$0xf]
  %v30 = vld [vmem:[%s0 + $0x80] sm:$0xf]
  %v31 = vunpack.c.l.bf16 %v15
  %v32 = vunpack.c.l.bf16 %v16
  %v33 = vunpack.c.l.bf16 %v17
  %v34 = vunpack.c.l.bf16 %v18
  %v35 = vunpack.c.l.bf16 %v19
  %v36 = vunpack.c.l.bf16 %v20
  %v37 = vunpack.c.l.bf16 %v21
  %v38 = vunpack.c.l.bf16 %v22
  %v39 = vunpack.c.l.bf16 %v23
  %v40 = vunpack.c.l.bf16 %v24
  %v41 = vunpack.c.l.bf16 %v25
  %v42 = vunpack.c.l.bf16 %v26
  %v43 = vunpack.c.l.bf16 %v27
  %v44 = vunpack.c.l.bf16 %v28
  %v45 = vunpack.c.l.bf16 %v29
  %v46 = vunpack.c.l.bf16 %v30
  %v47 = vpack.c.bf16 %v32, %v31
  %v48 = vpack.c.bf16 %v34, %v33
  %v49 = vpack.c.bf16 %v36, %v35
  %v50 = vpack.c.bf16 %v38, %v37
  %v51 = vpack.c.bf16 %v40, %v39
  %v52 = vpack.c.bf16 %v42, %v41
  %v53 = vpack.c.bf16 %v44, %v43
  %v54 = vpack.c.bf16 %v46, %v45
  %v55 = vld [vmem:[%s1] sm:$0xf]
  %v56 = vld [vmem:[%s1 + $0x4] sm:$0xf]
  %v57 = vld [vmem:[%s1 + $0x8] sm:$0xf]
  %v58 = vld [vmem:[%s1 + $0xc] sm:$0xf]
  %v59 = vld [vmem:[%s1 + $0x10] sm:$0xf]
  %v60 = vld [vmem:[%s1 + $0x14] sm:$0xf]
  %v61 = vld [vmem:[%s1 + $0x18] sm:$0xf]
  %v62 = vld [vmem:[%s1 + $0x1c] sm:$0xf]
  %v63 = vld [vmem:[%s1 + $0x20] sm:$0xf]
  %v64 = vld [vmem:[%s1 + $0x24] sm:$0xf]
  %v65 = vld [vmem:[%s1 + $0x28] sm:$0xf]
  %v66 = vld [vmem:[%s1 + $0x2c] sm:$0xf]
  %v67 = vld [vmem:[%s1 + $0x30] sm:$0xf]
  %v68 = vld [vmem:[%s1 + $0x34] sm:$0xf]
  %v69 = vld [vmem:[%s1 + $0x38] sm:$0xf]
  %v70 = vld [vmem:[%s1 + $0x3c] sm:$0xf]
  %v71 = vld [vmem:[%s0 + $0x4] sm:$0x1]
  %v72 = vld [vmem:[%s0 + $0xc] sm:$0x1]
  %v73 = vld [vmem:[%s0 + $0x14] sm:$0x1]
  %v74 = vld [vmem:[%s0 + $0x1c] sm:$0x1]
  %v75 = vld [vmem:[%s0 + $0x24] sm:$0x1]
  %v76 = vld [vmem:[%s0 + $0x2c] sm:$0x1]
  %v77 = vld [vmem:[%s0 + $0x34] sm:$0x1]
  %v78 = vld [vmem:[%s0 + $0x3c] sm:$0x1]
  %v79 = vld [vmem:[%s0 + $0x4c] sm:$0x1]
  %v80 = vld [vmem:[%s0 + $0x54] sm:$0x1]
  %v81 = vld [vmem:[%s0 + $0x5c] sm:$0x1]
  %v82 = vld [vmem:[%s0 + $0x64] sm:$0x1]
  %v83 = vld [vmem:[%s0 + $0x6c] sm:$0x1]
  %v84 = vld [vmem:[%s0 + $0x74] sm:$0x1]
  %v85 = vld [vmem:[%s0 + $0x7c] sm:$0x1]
  %v86 = vld [vmem:[%s0 + $0x84] sm:$0x1]
  %v87 = vunpack.c.l.bf16 %v71
  %v88 = vunpack.c.l.bf16 %v72
  %v89 = vunpack.c.l.bf16 %v73
  %v90 = vunpack.c.l.bf16 %v74
  %v91 = vunpack.c.l.bf16 %v75
  %v92 = vunpack.c.l.bf16 %v76
  %v93 = vunpack.c.l.bf16 %v77
  %v94 = vunpack.c.l.bf16 %v78
  %v95 = vunpack.c.l.bf16 %v79
  %v96 = vunpack.c.l.bf16 %v80
  %v97 = vunpack.c.l.bf16 %v81
  %v98 = vunpack.c.l.bf16 %v82
  %v99 = vunpack.c.l.bf16 %v83
  %v100 = vunpack.c.l.bf16 %v84
  %v101 = vunpack.c.l.bf16 %v85
  %v102 = vunpack.c.l.bf16 %v86
  %vm135 = vcmask 1046528
  %v136 = vrot.slane %v31, 1
  %v137 = vrot.slane %v87, 1
  %v138 = vsel %vm135, %v136, %v137
  %v139 = vrot.slane %v32, 1
  %v140 = vrot.slane %v88, 1
  %v141 = vsel %vm135, %v139, %v140
  %v142 = vrot.slane %v33, 1
  %v143 = vrot.slane %v89, 1
  %v144 = vsel %vm135, %v142, %v143
  %v145 = vrot.slane %v34, 1
  %v146 = vrot.slane %v90, 1
  %v147 = vsel %vm135, %v145, %v146
  %v148 = vrot.slane %v35, 1
  %v149 = vrot.slane %v91, 1
  %v150 = vsel %vm135, %v148, %v149
  %v151 = vrot.slane %v36, 1
  %v152 = vrot.slane %v92, 1
  %v153 = vsel %vm135, %v151, %v152
  %v154 = vrot.slane %v37, 1
  %v155 = vrot.slane %v93, 1
  %v156 = vsel %vm135, %v154, %v155
  %v157 = vrot.slane %v38, 1
  %v158 = vrot.slane %v94, 1
  %v159 = vsel %vm135, %v157, %v158
  %v160 = vrot.slane %v39, 1
  %v161 = vrot.slane %v95, 1
  %v162 = vsel %vm135, %v160, %v161
  %v163 = vrot.slane %v40, 1
  %v164 = vrot.slane %v96, 1
  %v165 = vsel %vm135, %v163, %v164
  %v166 = vrot.slane %v41, 1
  %v167 = vrot.slane %v97, 1
  %v168 = vsel %vm135, %v166, %v167
  %v169 = vrot.slane %v42, 1
  %v170 = vrot.slane %v98, 1
  %v171 = vsel %vm135, %v169, %v170
  %v172 = vrot.slane %v43, 1
  %v173 = vrot.slane %v99, 1
  %v174 = vsel %vm135, %v172, %v173
  %v175 = vrot.slane %v44, 1
  %v176 = vrot.slane %v100, 1
  %v177 = vsel %vm135, %v175, %v176
  %v178 = vrot.slane %v45, 1
  %v179 = vrot.slane %v101, 1
  %v180 = vsel %vm135, %v178, %v179
  %v181 = vrot.slane %v46, 1
  %v182 = vrot.slane %v102, 1
  %v183 = vsel %vm135, %v181, %v182
  %v200 = vpack.c.bf16 %v141, %v138
  %v201 = vpack.c.bf16 %v147, %v144
  %v202 = vpack.c.bf16 %v153, %v150
  %v203 = vpack.c.bf16 %v159, %v156
  %v204 = vpack.c.bf16 %v165, %v162
  %v205 = vpack.c.bf16 %v171, %v168
  %v206 = vpack.c.bf16 %v177, %v174
  %v207 = vpack.c.bf16 %v183, %v180
  %s208 = scalar_lea.vmem %s1, 64
  %v209 = vld [vmem:[%s208] sm:$0xf]
  %v210 = vld [vmem:[%s208 + $0x4] sm:$0xf]
  %v211 = vld [vmem:[%s208 + $0x8] sm:$0xf]
  %v212 = vld [vmem:[%s208 + $0xc] sm:$0xf]
  %v213 = vld [vmem:[%s208 + $0x10] sm:$0xf]
  %v214 = vld [vmem:[%s208 + $0x14] sm:$0xf]
  %v215 = vld [vmem:[%s208 + $0x18] sm:$0xf]
  %v216 = vld [vmem:[%s208 + $0x1c] sm:$0xf]
  %v217 = vld [vmem:[%s208 + $0x20] sm:$0xf]
  %v218 = vld [vmem:[%s208 + $0x24] sm:$0xf]
  %v219 = vld [vmem:[%s208 + $0x28] sm:$0xf]
  %v220 = vld [vmem:[%s208 + $0x2c] sm:$0xf]
  %v221 = vld [vmem:[%s208 + $0x30] sm:$0xf]
  %v222 = vld [vmem:[%s208 + $0x34] sm:$0xf]
  %v223 = vld [vmem:[%s208 + $0x38] sm:$0xf]
  %v224 = vld [vmem:[%s208 + $0x3c] sm:$0xf]
  %v241 = vunpack.c.l.b16 %v209
  %v242 = vunpack.c.l.b16 %v210
  %v243 = vunpack.c.l.b16 %v211
  %v244 = vunpack.c.l.b16 %v212
  %v245 = vunpack.c.l.b16 %v213
  %v246 = vunpack.c.l.b16 %v214
  %v247 = vunpack.c.l.b16 %v215
  %v248 = vunpack.c.l.b16 %v216
  %v249 = vunpack.c.l.b16 %v217
  %v250 = vunpack.c.l.b16 %v218
  %v251 = vunpack.c.l.b16 %v219
  %v252 = vunpack.c.l.b16 %v220
  %v253 = vunpack.c.l.b16 %v221
  %v254 = vunpack.c.l.b16 %v222
  %v255 = vunpack.c.l.b16 %v223
  %v256 = vunpack.c.l.b16 %v224
  %v257 = vpack.c.b16 %v242, %v241
  %v258 = vpack.c.b16 %v244, %v243
  %v259 = vpack.c.b16 %v246, %v245
  %v260 = vpack.c.b16 %v248, %v247
  %v261 = vpack.c.b16 %v250, %v249
  %v262 = vpack.c.b16 %v252, %v251
  %v263 = vpack.c.b16 %v254, %v253
  %v264 = vpack.c.b16 %v256, %v255
  %273 = vmatprep.subr.bf16.mxu0 0
  %274 = vmatpush1.bf16.msra.mxu0 %v257
  %275 = vmatprep.subr.bf16.mxu0 0
  %276 = vmatpush1.bf16.msra.mxu0 %v258
  %277 = vmatprep.subr.bf16.mxu0 0
  %278 = vmatpush1.bf16.msra.mxu0 %v259
  %279 = vmatprep.subr.bf16.mxu0 0
  %280 = vmatpush1.bf16.msra.mxu0 %v260
  %281 = vmatprep.subr.bf16.mxu0 0
  %282 = vmatpush1.bf16.msra.mxu0 %v261
  %283 = vmatprep.subr.bf16.mxu0 0
  %284 = vmatpush1.bf16.msra.mxu0 %v262
  %285 = vmatprep.subr.bf16.mxu0 0
  %286 = vmatpush1.bf16.msra.mxu0 %v263
  %287 = vmatprep.subr.bf16.mxu0 0
  %288 = vmatpush1.bf16.msra.mxu0 %v264
  %289 = vmatprep.subr.bf16.mxu0 0
  %290 = vmatpush1.bf16.msra.mxu0 0
  %291 = vmatprep.subr.bf16.mxu0 0
  %292 = vmatpush1.bf16.msra.mxu0 0
  %293 = vmatprep.subr.bf16.mxu0 0
  %294 = vmatpush1.bf16.msra.mxu0 0
  %295 = vmatprep.subr.bf16.mxu0 0
  %296 = vmatpush1.bf16.msra.mxu0 0
  %297 = vmatprep.subr.bf16.mxu0 0
  %298 = vmatpush1.bf16.msra.mxu0 0
  %299 = vmatprep.subr.bf16.mxu0 0
  %300 = vmatpush1.bf16.msra.mxu0 0
  %301 = vmatprep.subr.bf16.mxu0 0
  %302 = vmatpush1.bf16.msra.mxu0 0
  %303 = vmatprep.subr.bf16.mxu0 0
  %304 = vmatpush1.bf16.msra.mxu0 0
  %305 = vmatprep.mubr.bf16.mxu0 0
  %306 = vmatmul.mubr.bf16.gmra.mrb[0].mxu0 %v200
  %v307 = vpop.f32.mrb[0].mxu0
  %v308 = vadd.f32 0.0, %v307
  %v309 = vpop.f32.mrb[0].mxu0
  %v310 = vpop.f32.mrb[0].mxu0
  %v311 = vadd.f32 0.0, %v310
  %v312 = vpop.f32.mrb[0].mxu0
  %313 = vmatprep.mubr.bf16.mxu0 0
  %314 = vmatmul.mubr.bf16.gmra.mrb[0].mxu0 %v201
  %v315 = vpop.f32.mrb[0].mxu0
  %v316 = vadd.f32 0.0, %v315
  %v317 = vpop.f32.mrb[0].mxu0
  %v318 = vpop.f32.mrb[0].mxu0
  %v319 = vadd.f32 0.0, %v318
  %v320 = vpop.f32.mrb[0].mxu0
  %321 = vmatprep.mubr.bf16.mxu0 0
  %322 = vmatmul.mubr.bf16.gmra.mrb[0].mxu0 %v202
  %v323 = vpop.f32.mrb[0].mxu0
  %v324 = vadd.f32 0.0, %v323
  %v325 = vpop.f32.mrb[0].mxu0
  %v326 = vpop.f32.mrb[0].mxu0
  %v327 = vadd.f32 0.0, %v326
  %v328 = vpop.f32.mrb[0].mxu0
  %329 = vmatprep.mubr.bf16.mxu0 0
  %330 = vmatmul.mubr.bf16.gmra.mrb[0].mxu0 %v203
  %v331 = vpop.f32.mrb[0].mxu0
  %v332 = vadd.f32 0.0, %v331
  %v333 = vpop.f32.mrb[0].mxu0
  %v334 = vpop.f32.mrb[0].mxu0
  %v335 = vadd.f32 0.0, %v334
  %v336 = vpop.f32.mrb[0].mxu0
  %337 = vmatprep.mubr.bf16.mxu0 0
  %338 = vmatmul.mubr.bf16.gmra.mrb[0].mxu0 %v204
  %v339 = vpop.f32.mrb[0].mxu0
  %v340 = vadd.f32 0.0, %v339
  %v341 = vpop.f32.mrb[0].mxu0
  %v342 = vpop.f32.mrb[0].mxu0
  %v343 = vadd.f32 0.0, %v342
  %v344 = vpop.f32.mrb[0].mxu0
  %345 = vmatprep.mubr.bf16.mxu0 0
  %346 = vmatmul.mubr.bf16.gmra.mrb[0].mxu0 %v205
  %v347 = vpop.f32.mrb[0].mxu0
  %v348 = vadd.f32 0.0, %v347
  %v349 = vpop.f32.mrb[0].mxu0
  %v350 = vpop.f32.mrb[0].mxu0
  %v351 = vadd.f32 0.0, %v350
  %v352 = vpop.f32.mrb[0].mxu0
  %353 = vmatprep.mubr.bf16.mxu0 0
  %354 = vmatmul.mubr.bf16.gmra.mrb[0].mxu0 %v206
  %v355 = vpop.f32.mrb[0].mxu0
  %v356 = vadd.f32 0.0, %v355
  %v357 = vpop.f32.mrb[0].mxu0
  %v358 = vpop.f32.mrb[0].mxu0
  %v359 = vadd.f32 0.0, %v358
  %v360 = vpop.f32.mrb[0].mxu0
  %361 = vmatprep.mubr.bf16.mxu0 0
  %362 = vmatmul.mubr.bf16.gmra.mrb[0].mxu0 %v207
  %v363 = vpop.f32.mrb[0].mxu0
  %v364 = vadd.f32 0.0, %v363
  %v365 = vpop.f32.mrb[0].mxu0
  %v366 = vpop.f32.mrb[0].mxu0
  %v367 = vadd.f32 0.0, %v366
  %v368 = vpop.f32.mrb[0].mxu0
  %369 = vdwg.mxu0
  %v386 = vunpack.c.l.b16 %v55
  %v387 = vunpack.c.l.b16 %v56
  %v388 = vunpack.c.l.b16 %v57
  %v389 = vunpack.c.l.b16 %v58
  %v390 = vunpack.c.l.b16 %v59
  %v391 = vunpack.c.l.b16 %v60
  %v392 = vunpack.c.l.b16 %v61
  %v393 = vunpack.c.l.b16 %v62
  %v394 = vunpack.c.l.b16 %v63
  %v395 = vunpack.c.l.b16 %v64
  %v396 = vunpack.c.l.b16 %v65
  %v397 = vunpack.c.l.b16 %v66
  %v398 = vunpack.c.l.b16 %v67
  %v399 = vunpack.c.l.b16 %v68
  %v400 = vunpack.c.l.b16 %v69
  %v401 = vunpack.c.l.b16 %v70
  %v402 = vpack.c.b16 %v387, %v386
  %v403 = vpack.c.b16 %v389, %v388
  %v404 = vpack.c.b16 %v391, %v390
  %v405 = vpack.c.b16 %v393, %v392
  %v406 = vpack.c.b16 %v395, %v394
  %v407 = vpack.c.b16 %v397, %v396
  %v408 = vpack.c.b16 %v399, %v398
  %v409 = vpack.c.b16 %v401, %v400
  %418 = vmatprep.subr.bf16.mxu0 0
  %419 = vmatpush1.bf16.msra.mxu0 %v402
  %420 = vmatprep.subr.bf16.mxu0 0
  %421 = vmatpush1.bf16.msra.mxu0 %v403
  %422 = vmatprep.subr.bf16.mxu0 0
  %423 = vmatpush1.bf16.msra.mxu0 %v404
  %424 = vmatprep.subr.bf16.mxu0 0
  %425 = vmatpush1.bf16.msra.mxu0 %v405
  %426 = vmatprep.subr.bf16.mxu0 0
  %427 = vmatpush1.bf16.msra.mxu0 %v406
  %428 = vmatprep.subr.bf16.mxu0 0
  %429 = vmatpush1.bf16.msra.mxu0 %v407
  %430 = vmatprep.subr.bf16.mxu0 0
  %431 = vmatpush1.bf16.msra.mxu0 %v408
  %432 = vmatprep.subr.bf16.mxu0 0
  %433 = vmatpush1.bf16.msra.mxu0 %v409
  %434 = vmatprep.subr.bf16.mxu0 0
  %435 = vmatpush1.bf16.msra.mxu0 0
  %436 = vmatprep.subr.bf16.mxu0 0
  %437 = vmatpush1.bf16.msra.mxu0 0
  %438 = vmatprep.subr.bf16.mxu0 0
  %439 = vmatpush1.bf16.msra.mxu0 0
  %440 = vmatprep.subr.bf16.mxu0 0
  %441 = vmatpush1.bf16.msra.mxu0 0
  %442 = vmatprep.subr.bf16.mxu0 0
  %443 = vmatpush1.bf16.msra.mxu0 0
  %444 = vmatprep.subr.bf16.mxu0 0
  %445 = vmatpush1.bf16.msra.mxu0 0
  %446 = vmatprep.subr.bf16.mxu0 0
  %447 = vmatpush1.bf16.msra.mxu0 0
  %448 = vmatprep.subr.bf16.mxu0 0
  %449 = vmatpush1.bf16.msra.mxu0 0
  %450 = vmatprep.mubr.bf16.mxu0 0
  %451 = vmatmul.mubr.bf16.gmra.mrb[0].mxu0 %v47
  %v452 = vpop.f32.mrb[0].mxu0
  %v453 = vadd.f32 %v308, %v452
  %v454 = vpop.f32.mrb[0].mxu0
  %v455 = vpop.f32.mrb[0].mxu0
  %v456 = vadd.f32 %v311, %v455
  %v457 = vpop.f32.mrb[0].mxu0
  %458 = vmatprep.mubr.bf16.mxu0 0
  %459 = vmatmul.mubr.bf16.gmra.mrb[0].mxu0 %v48
  %v460 = vpop.f32.mrb[0].mxu0
  %v461 = vadd.f32 %v316, %v460
  %v462 = vpop.f32.mrb[0].mxu0
  %v463 = vpop.f32.mrb[0].mxu0
  %v464 = vadd.f32 %v319, %v463
  %v465 = vpop.f32.mrb[0].mxu0
  %466 = vmatprep.mubr.bf16.mxu0 0
  %467 = vmatmul.mubr.bf16.gmra.mrb[0].mxu0 %v49
  %v468 = vpop.f32.mrb[0].mxu0
  %v469 = vadd.f32 %v324, %v468
  %v470 = vpop.f32.mrb[0].mxu0
  %v471 = vpop.f32.mrb[0].mxu0
  %v472 = vadd.f32 %v327, %v471
  %v473 = vpop.f32.mrb[0].mxu0
  %474 = vmatprep.mubr.bf16.mxu0 0
  %475 = vmatmul.mubr.bf16.gmra.mrb[0].mxu0 %v50
  %v476 = vpop.f32.mrb[0].mxu0
  %v477 = vadd.f32 %v332, %v476
  %v478 = vpop.f32.mrb[0].mxu0
  %v479 = vpop.f32.mrb[0].mxu0
  %v480 = vadd.f32 %v335, %v479
  %v481 = vpop.f32.mrb[0].mxu0
  %482 = vmatprep.mubr.bf16.mxu0 0
  %483 = vmatmul.mubr.bf16.gmra.mrb[0].mxu0 %v51
  %v484 = vpop.f32.mrb[0].mxu0
  %v485 = vadd.f32 %v340, %v484
  %v486 = vpop.f32.mrb[0].mxu0
  %v487 = vpop.f32.mrb[0].mxu0
  %v488 = vadd.f32 %v343, %v487
  %v489 = vpop.f32.mrb[0].mxu0
  %490 = vmatprep.mubr.bf16.mxu0 0
  %491 = vmatmul.mubr.bf16.gmra.mrb[0].mxu0 %v52
  %v492 = vpop.f32.mrb[0].mxu0
  %v493 = vadd.f32 %v348, %v492
  %v494 = vpop.f32.mrb[0].mxu0
  %v495 = vpop.f32.mrb[0].mxu0
  %v496 = vadd.f32 %v351, %v495
  %v497 = vpop.f32.mrb[0].mxu0
  %498 = vmatprep.mubr.bf16.mxu0 0
  %499 = vmatmul.mubr.bf16.gmra.mrb[0].mxu0 %v53
  %v500 = vpop.f32.mrb[0].mxu0
  %v501 = vadd.f32 %v356, %v500
  %v502 = vpop.f32.mrb[0].mxu0
  %v503 = vpop.f32.mrb[0].mxu0
  %v504 = vadd.f32 %v359, %v503
  %v505 = vpop.f32.mrb[0].mxu0
  %506 = vmatprep.mubr.bf16.mxu0 0
  %507 = vmatmul.mubr.bf16.gmra.mrb[0].mxu0 %v54
  %v508 = vpop.f32.mrb[0].mxu0
  %v509 = vadd.f32 %v364, %v508
  %v510 = vpop.f32.mrb[0].mxu0
  %v511 = vpop.f32.mrb[0].mxu0
  %v512 = vadd.f32 %v367, %v511
  %v513 = vpop.f32.mrb[0].mxu0
  %514 = vdwg.mxu0
  %s515 = scalar_lea.vmem %s0, 8
  %v516 = vld [vmem:[%s515] sm:$0xf]
  %v517 = vld [vmem:[%s515 + $0x8] sm:$0xf]
  %v518 = vld [vmem:[%s515 + $0x10] sm:$0xf]
  %v519 = vld [vmem:[%s515 + $0x18] sm:$0xf]
  %v520 = vld [vmem:[%s515 + $0x20] sm:$0xf]
  %v521 = vld [vmem:[%s515 + $0x28] sm:$0xf]
  %v522 = vld [vmem:[%s515 + $0x30] sm:$0xf]
  %v523 = vld [vmem:[%s515 + $0x38] sm:$0xf]
  %v524 = vld [vmem:[%s515 + $0x48] sm:$0xf]
  %v525 = vld [vmem:[%s515 + $0x50] sm:$0xf]
  %v526 = vld [vmem:[%s515 + $0x58] sm:$0xf]
  %v527 = vld [vmem:[%s515 + $0x60] sm:$0xf]
  %v528 = vld [vmem:[%s515 + $0x68] sm:$0xf]
  %v529 = vld [vmem:[%s515 + $0x70] sm:$0xf]
  %v530 = vld [vmem:[%s515 + $0x78] sm:$0xf]
  %v531 = vld [vmem:[%s515 + $0x80] sm:$0xf]
  %v532 = vunpack.c.l.bf16 %v516
  %v533 = vunpack.c.l.bf16 %v517
  %v534 = vunpack.c.l.bf16 %v518
  %v535 = vunpack.c.l.bf16 %v519
  %v536 = vunpack.c.l.bf16 %v520
  %v537 = vunpack.c.l.bf16 %v521
  %v538 = vunpack.c.l.bf16 %v522
  %v539 = vunpack.c.l.bf16 %v523
  %v540 = vunpack.c.l.bf16 %v524
  %v541 = vunpack.c.l.bf16 %v525
  %v542 = vunpack.c.l.bf16 %v526
  %v543 = vunpack.c.l.bf16 %v527
  %v544 = vunpack.c.l.bf16 %v528
  %v545 = vunpack.c.l.bf16 %v529
  %v546 = vunpack.c.l.bf16 %v530
  %v547 = vunpack.c.l.bf16 %v531
  %v548 = vpack.c.bf16 %v533, %v532
  %v549 = vpack.c.bf16 %v535, %v534
  %v550 = vpack.c.bf16 %v537, %v536
  %v551 = vpack.c.bf16 %v539, %v538
  %v552 = vpack.c.bf16 %v541, %v540
  %v553 = vpack.c.bf16 %v543, %v542
  %v554 = vpack.c.bf16 %v545, %v544
  %v555 = vpack.c.bf16 %v547, %v546
  %s556 = scalar_lea.vmem %s1, 128
  %v557 = vld [vmem:[%s556] sm:$0xf]
  %v558 = vld [vmem:[%s556 + $0x4] sm:$0xf]
  %v559 = vld [vmem:[%s556 + $0x8] sm:$0xf]
  %v560 = vld [vmem:[%s556 + $0xc] sm:$0xf]
  %v561 = vld [vmem:[%s556 + $0x10] sm:$0xf]
  %v562 = vld [vmem:[%s556 + $0x14] sm:$0xf]
  %v563 = vld [vmem:[%s556 + $0x18] sm:$0xf]
  %v564 = vld [vmem:[%s556 + $0x1c] sm:$0xf]
  %v565 = vld [vmem:[%s556 + $0x20] sm:$0xf]
  %v566 = vld [vmem:[%s556 + $0x24] sm:$0xf]
  %v567 = vld [vmem:[%s556 + $0x28] sm:$0xf]
  %v568 = vld [vmem:[%s556 + $0x2c] sm:$0xf]
  %v569 = vld [vmem:[%s556 + $0x30] sm:$0xf]
  %v570 = vld [vmem:[%s556 + $0x34] sm:$0xf]
  %v571 = vld [vmem:[%s556 + $0x38] sm:$0xf]
  %v572 = vld [vmem:[%s556 + $0x3c] sm:$0xf]
  %v589 = vunpack.c.l.b16 %v557
  %v590 = vunpack.c.l.b16 %v558
  %v591 = vunpack.c.l.b16 %v559
  %v592 = vunpack.c.l.b16 %v560
  %v593 = vunpack.c.l.b16 %v561
  %v594 = vunpack.c.l.b16 %v562
  %v595 = vunpack.c.l.b16 %v563
  %v596 = vunpack.c.l.b16 %v564
  %v597 = vunpack.c.l.b16 %v565
  %v598 = vunpack.c.l.b16 %v566
  %v599 = vunpack.c.l.b16 %v567
  %v600 = vunpack.c.l.b16 %v568
  %v601 = vunpack.c.l.b16 %v569
  %v602 = vunpack.c.l.b16 %v570
  %v603 = vunpack.c.l.b16 %v571
  %v604 = vunpack.c.l.b16 %v572
  %v605 = vpack.c.b16 %v590, %v589
  %v606 = vpack.c.b16 %v592, %v591
  %v607 = vpack.c.b16 %v594, %v593
  %v608 = vpack.c.b16 %v596, %v595
  %v609 = vpack.c.b16 %v598, %v597
  %v610 = vpack.c.b16 %v600, %v599
  %v611 = vpack.c.b16 %v602, %v601
  %v612 = vpack.c.b16 %v604, %v603
  %621 = vmatprep.subr.bf16.mxu0 0
  %622 = vmatpush1.bf16.msra.mxu0 %v605
  %623 = vmatprep.subr.bf16.mxu0 0
  %624 = vmatpush1.bf16.msra.mxu0 %v606
  %625 = vmatprep.subr.bf16.mxu0 0
  %626 = vmatpush1.bf16.msra.mxu0 %v607
  %627 = vmatprep.subr.bf16.mxu0 0
  %628 = vmatpush1.bf16.msra.mxu0 %v608
  %629 = vmatprep.subr.bf16.mxu0 0
  %630 = vmatpush1.bf16.msra.mxu0 %v609
  %631 = vmatprep.subr.bf16.mxu0 0
  %632 = vmatpush1.bf16.msra.mxu0 %v610
  %633 = vmatprep.subr.bf16.mxu0 0
  %634 = vmatpush1.bf16.msra.mxu0 %v611
  %635 = vmatprep.subr.bf16.mxu0 0
  %636 = vmatpush1.bf16.msra.mxu0 %v612
  %637 = vmatprep.subr.bf16.mxu0 0
  %638 = vmatpush1.bf16.msra.mxu0 0
  %639 = vmatprep.subr.bf16.mxu0 0
  %640 = vmatpush1.bf16.msra.mxu0 0
  %641 = vmatprep.subr.bf16.mxu0 0
  %642 = vmatpush1.bf16.msra.mxu0 0
  %643 = vmatprep.subr.bf16.mxu0 0
  %644 = vmatpush1.bf16.msra.mxu0 0
  %645 = vmatprep.subr.bf16.mxu0 0
  %646 = vmatpush1.bf16.msra.mxu0 0
  %647 = vmatprep.subr.bf16.mxu0 0
  %648 = vmatpush1.bf16.msra.mxu0 0
  %649 = vmatprep.subr.bf16.mxu0 0
  %650 = vmatpush1.bf16.msra.mxu0 0
  %651 = vmatprep.subr.bf16.mxu0 0
  %652 = vmatpush1.bf16.msra.mxu0 0
  %653 = vmatprep.mubr.bf16.mxu0 0
  %654 = vmatmul.mubr.bf16.gmra.mrb[0].mxu0 %v548
  %v655 = vpop.f32.mrb[0].mxu0
  %v656 = vadd.f32 0.0, %v655
  %v657 = vpop.f32.mrb[0].mxu0
  %v658 = vpop.f32.mrb[0].mxu0
  %v659 = vadd.f32 0.0, %v658
  %v660 = vpop.f32.mrb[0].mxu0
  %661 = vmatprep.mubr.bf16.mxu0 0
  %662 = vmatmul.mubr.bf16.gmra.mrb[0].mxu0 %v549
  %v663 = vpop.f32.mrb[0].mxu0
  %v664 = vadd.f32 0.0, %v663
  %v665 = vpop.f32.mrb[0].mxu0
  %v666 = vpop.f32.mrb[0].mxu0
  %v667 = vadd.f32 0.0, %v666
  %v668 = vpop.f32.mrb[0].mxu0
  %669 = vmatprep.mubr.bf16.mxu0 0
  %670 = vmatmul.mubr.bf16.gmra.mrb[0].mxu0 %v550
  %v671 = vpop.f32.mrb[0].mxu0
  %v672 = vadd.f32 0.0, %v671
  %v673 = vpop.f32.mrb[0].mxu0
  %v674 = vpop.f32.mrb[0].mxu0
  %v675 = vadd.f32 0.0, %v674
  %v676 = vpop.f32.mrb[0].mxu0
  %677 = vmatprep.mubr.bf16.mxu0 0
  %678 = vmatmul.mubr.bf16.gmra.mrb[0].mxu0 %v551
  %v679 = vpop.f32.mrb[0].mxu0
  %v680 = vadd.f32 0.0, %v679
  %v681 = vpop.f32.mrb[0].mxu0
  %v682 = vpop.f32.mrb[0].mxu0
  %v683 = vadd.f32 0.0, %v682
  %v684 = vpop.f32.mrb[0].mxu0
  %685 = vmatprep.mubr.bf16.mxu0 0
  %686 = vmatmul.mubr.bf16.gmra.mrb[0].mxu0 %v552
  %v687 = vpop.f32.mrb[0].mxu0
  %v688 = vadd.f32 0.0, %v687
  %v689 = vpop.f32.mrb[0].mxu0
  %v690 = vpop.f32.mrb[0].mxu0
  %v691 = vadd.f32 0.0, %v690
  %v692 = vpop.f32.mrb[0].mxu0
  %693 = vmatprep.mubr.bf16.mxu0 0
  %694 = vmatmul.mubr.bf16.gmra.mrb[0].mxu0 %v553
  %v695 = vpop.f32.mrb[0].mxu0
  %v696 = vadd.f32 0.0, %v695
  %v697 = vpop.f32.mrb[0].mxu0
  %v698 = vpop.f32.mrb[0].mxu0
  %v699 = vadd.f32 0.0, %v698
  %v700 = vpop.f32.mrb[0].mxu0
  %701 = vmatprep.mubr.bf16.mxu0 0
  %702 = vmatmul.mubr.bf16.gmra.mrb[0].mxu0 %v554
  %v703 = vpop.f32.mrb[0].mxu0
  %v704 = vadd.f32 0.0, %v703
  %v705 = vpop.f32.mrb[0].mxu0
  %v706 = vpop.f32.mrb[0].mxu0
  %v707 = vadd.f32 0.0, %v706
  %v708 = vpop.f32.mrb[0].mxu0
  %709 = vmatprep.mubr.bf16.mxu0 0
  %710 = vmatmul.mubr.bf16.gmra.mrb[0].mxu0 %v555
  %v711 = vpop.f32.mrb[0].mxu0
  %v712 = vadd.f32 0.0, %v711
  %v713 = vpop.f32.mrb[0].mxu0
  %v714 = vpop.f32.mrb[0].mxu0
  %v715 = vadd.f32 0.0, %v714
  %v716 = vpop.f32.mrb[0].mxu0
  %717 = vdwg.mxu0
  %v718 = vadd.f32 %v453, %v656
  %v719 = vadd.f32 %v456, %v659
  %v720 = vadd.f32 %v461, %v664
  %v721 = vadd.f32 %v464, %v667
  %v722 = vadd.f32 %v469, %v672
  %v723 = vadd.f32 %v472, %v675
  %v724 = vadd.f32 %v477, %v680
  %v725 = vadd.f32 %v480, %v683
  %v726 = vadd.f32 %v485, %v688
  %v727 = vadd.f32 %v488, %v691
  %v728 = vadd.f32 %v493, %v696
  %v729 = vadd.f32 %v496, %v699
  %v730 = vadd.f32 %v501, %v704
  %v731 = vadd.f32 %v504, %v707
  %v732 = vadd.f32 %v509, %v712
  %v733 = vadd.f32 %v512, %v715
  %v734 = vld [vmem:[%s515] sm:$0xf]
  %v735 = vld [vmem:[%s515 + $0x4] sm:$0x1]
  %v736 = vld [vmem:[%s515 + $0x8] sm:$0xf]
  %v737 = vld [vmem:[%s515 + $0xc] sm:$0x1]
  %v738 = vld [vmem:[%s515 + $0x10] sm:$0xf]
  %v739 = vld [vmem:[%s515 + $0x14] sm:$0x1]
  %v740 = vld [vmem:[%s515 + $0x18] sm:$0xf]
  %v741 = vld [vmem:[%s515 + $0x1c] sm:$0x1]
  %v742 = vld [vmem:[%s515 + $0x20] sm:$0xf]
  %v743 = vld [vmem:[%s515 + $0x24] sm:$0x1]
  %v744 = vld [vmem:[%s515 + $0x28] sm:$0xf]
  %v745 = vld [vmem:[%s515 + $0x2c] sm:$0x1]
  %v746 = vld [vmem:[%s515 + $0x30] sm:$0xf]
  %v747 = vld [vmem:[%s515 + $0x34] sm:$0x1]
  %v748 = vld [vmem:[%s515 + $0x38] sm:$0xf]
  %v749 = vld [vmem:[%s515 + $0x3c] sm:$0x1]
  %v750 = vld [vmem:[%s515 + $0x48] sm:$0xf]
  %v751 = vld [vmem:[%s515 + $0x4c] sm:$0x1]
  %v752 = vld [vmem:[%s515 + $0x50] sm:$0xf]
  %v753 = vld [vmem:[%s515 + $0x54] sm:$0x1]
  %v754 = vld [vmem:[%s515 + $0x58] sm:$0xf]
  %v755 = vld [vmem:[%s515 + $0x5c] sm:$0x1]
  %v756 = vld [vmem:[%s515 + $0x60] sm:$0xf]
  %v757 = vld [vmem:[%s515 + $0x64] sm:$0x1]
  %v758 = vld [vmem:[%s515 + $0x68] sm:$0xf]
  %v759 = vld [vmem:[%s515 + $0x6c] sm:$0x1]
  %v760 = vld [vmem:[%s515 + $0x70] sm:$0xf]
  %v761 = vld [vmem:[%s515 + $0x74] sm:$0x1]
  %v762 = vld [vmem:[%s515 + $0x78] sm:$0xf]
  %v763 = vld [vmem:[%s515 + $0x7c] sm:$0x1]
  %v764 = vld [vmem:[%s515 + $0x80] sm:$0xf]
  %v765 = vld [vmem:[%s515 + $0x84] sm:$0x1]
  %v766 = vunpack.c.l.bf16 %v734
  %v767 = vunpack.c.l.bf16 %v735
  %v768 = vunpack.c.l.bf16 %v736
  %v769 = vunpack.c.l.bf16 %v737
  %v770 = vunpack.c.l.bf16 %v738
  %v771 = vunpack.c.l.bf16 %v739
  %v772 = vunpack.c.l.bf16 %v740
  %v773 = vunpack.c.l.bf16 %v741
  %v774 = vunpack.c.l.bf16 %v742
  %v775 = vunpack.c.l.bf16 %v743
  %v776 = vunpack.c.l.bf16 %v744
  %v777 = vunpack.c.l.bf16 %v745
  %v778 = vunpack.c.l.bf16 %v746
  %v779 = vunpack.c.l.bf16 %v747
  %v780 = vunpack.c.l.bf16 %v748
  %v781 = vunpack.c.l.bf16 %v749
  %v782 = vunpack.c.l.bf16 %v750
  %v783 = vunpack.c.l.bf16 %v751
  %v784 = vunpack.c.l.bf16 %v752
  %v785 = vunpack.c.l.bf16 %v753
  %v786 = vunpack.c.l.bf16 %v754
  %v787 = vunpack.c.l.bf16 %v755
  %v788 = vunpack.c.l.bf16 %v756
  %v789 = vunpack.c.l.bf16 %v757
  %v790 = vunpack.c.l.bf16 %v758
  %v791 = vunpack.c.l.bf16 %v759
  %v792 = vunpack.c.l.bf16 %v760
  %v793 = vunpack.c.l.bf16 %v761
  %v794 = vunpack.c.l.bf16 %v762
  %v795 = vunpack.c.l.bf16 %v763
  %v796 = vunpack.c.l.bf16 %v764
  %v797 = vunpack.c.l.bf16 %v765
  %v830 = vrot.slane %v766, 1
  %v831 = vrot.slane %v767, 1
  %v832 = vsel %vm135, %v830, %v831
  %v833 = vrot.slane %v768, 1
  %v834 = vrot.slane %v769, 1
  %v835 = vsel %vm135, %v833, %v834
  %v836 = vrot.slane %v770, 1
  %v837 = vrot.slane %v771, 1
  %v838 = vsel %vm135, %v836, %v837
  %v839 = vrot.slane %v772, 1
  %v840 = vrot.slane %v773, 1
  %v841 = vsel %vm135, %v839, %v840
  %v842 = vrot.slane %v774, 1
  %v843 = vrot.slane %v775, 1
  %v844 = vsel %vm135, %v842, %v843
  %v845 = vrot.slane %v776, 1
  %v846 = vrot.slane %v777, 1
  %v847 = vsel %vm135, %v845, %v846
  %v848 = vrot.slane %v778, 1
  %v849 = vrot.slane %v779, 1
  %v850 = vsel %vm135, %v848, %v849
  %v851 = vrot.slane %v780, 1
  %v852 = vrot.slane %v781, 1
  %v853 = vsel %vm135, %v851, %v852
  %v854 = vrot.slane %v782, 1
  %v855 = vrot.slane %v783, 1
  %v856 = vsel %vm135, %v854, %v855
  %v857 = vrot.slane %v784, 1
  %v858 = vrot.slane %v785, 1
  %v859 = vsel %vm135, %v857, %v858
  %v860 = vrot.slane %v786, 1
  %v861 = vrot.slane %v787, 1
  %v862 = vsel %vm135, %v860, %v861
  %v863 = vrot.slane %v788, 1
  %v864 = vrot.slane %v789, 1
  %v865 = vsel %vm135, %v863, %v864
  %v866 = vrot.slane %v790, 1
  %v867 = vrot.slane %v791, 1
  %v868 = vsel %vm135, %v866, %v867
  %v869 = vrot.slane %v792, 1
  %v870 = vrot.slane %v793, 1
  %v871 = vsel %vm135, %v869, %v870
  %v872 = vrot.slane %v794, 1
  %v873 = vrot.slane %v795, 1
  %v874 = vsel %vm135, %v872, %v873
  %v875 = vrot.slane %v796, 1
  %v876 = vrot.slane %v797, 1
  %v877 = vsel %vm135, %v875, %v876
  %v894 = vpack.c.bf16 %v835, %v832
  %v895 = vpack.c.bf16 %v841, %v838
  %v896 = vpack.c.bf16 %v847, %v844
  %v897 = vpack.c.bf16 %v853, %v850
  %v898 = vpack.c.bf16 %v859, %v856
  %v899 = vpack.c.bf16 %v865, %v862
  %v900 = vpack.c.bf16 %v871, %v868
  %v901 = vpack.c.bf16 %v877, %v874
  %s902 = scalar_lea.vmem %s1, 192
  %v903 = vld [vmem:[%s902] sm:$0xf]
  %v904 = vld [vmem:[%s902 + $0x4] sm:$0xf]
  %v905 = vld [vmem:[%s902 + $0x8] sm:$0xf]
  %v906 = vld [vmem:[%s902 + $0xc] sm:$0xf]
  %v907 = vld [vmem:[%s902 + $0x10] sm:$0xf]
  %v908 = vld [vmem:[%s902 + $0x14] sm:$0xf]
  %v909 = vld [vmem:[%s902 + $0x18] sm:$0xf]
  %v910 = vld [vmem:[%s902 + $0x1c] sm:$0xf]
  %v911 = vld [vmem:[%s902 + $0x20] sm:$0xf]
  %v912 = vld [vmem:[%s902 + $0x24] sm:$0xf]
  %v913 = vld [vmem:[%s902 + $0x28] sm:$0xf]
  %v914 = vld [vmem:[%s902 + $0x2c] sm:$0xf]
  %v915 = vld [vmem:[%s902 + $0x30] sm:$0xf]
  %v916 = vld [vmem:[%s902 + $0x34] sm:$0xf]
  %v917 = vld [vmem:[%s902 + $0x38] sm:$0xf]
  %v918 = vld [vmem:[%s902 + $0x3c] sm:$0xf]
  %v935 = vunpack.c.l.b16 %v903
  %v936 = vunpack.c.l.b16 %v904
  %v937 = vunpack.c.l.b16 %v905
  %v938 = vunpack.c.l.b16 %v906
  %v939 = vunpack.c.l.b16 %v907
  %v940 = vunpack.c.l.b16 %v908
  %v941 = vunpack.c.l.b16 %v909
  %v942 = vunpack.c.l.b16 %v910
  %v943 = vunpack.c.l.b16 %v911
  %v944 = vunpack.c.l.b16 %v912
  %v945 = vunpack.c.l.b16 %v913
  %v946 = vunpack.c.l.b16 %v914
  %v947 = vunpack.c.l.b16 %v915
  %v948 = vunpack.c.l.b16 %v916
  %v949 = vunpack.c.l.b16 %v917
  %v950 = vunpack.c.l.b16 %v918
  %v951 = vpack.c.b16 %v936, %v935
  %v952 = vpack.c.b16 %v938, %v937
  %v953 = vpack.c.b16 %v940, %v939
  %v954 = vpack.c.b16 %v942, %v941
  %v955 = vpack.c.b16 %v944, %v943
  %v956 = vpack.c.b16 %v946, %v945
  %v957 = vpack.c.b16 %v948, %v947
  %v958 = vpack.c.b16 %v950, %v949
  %967 = vmatprep.subr.bf16.mxu0 0
  %968 = vmatpush1.bf16.msra.mxu0 %v951
  %969 = vmatprep.subr.bf16.mxu0 0
  %970 = vmatpush1.bf16.msra.mxu0 %v952
  %971 = vmatprep.subr.bf16.mxu0 0
  %972 = vmatpush1.bf16.msra.mxu0 %v953
  %973 = vmatprep.subr.bf16.mxu0 0
  %974 = vmatpush1.bf16.msra.mxu0 %v954
  %975 = vmatprep.subr.bf16.mxu0 0
  %976 = vmatpush1.bf16.msra.mxu0 %v955
  %977 = vmatprep.subr.bf16.mxu0 0
  %978 = vmatpush1.bf16.msra.mxu0 %v956
  %979 = vmatprep.subr.bf16.mxu0 0
  %980 = vmatpush1.bf16.msra.mxu0 %v957
  %981 = vmatprep.subr.bf16.mxu0 0
  %982 = vmatpush1.bf16.msra.mxu0 %v958
  %983 = vmatprep.subr.bf16.mxu0 0
  %984 = vmatpush1.bf16.msra.mxu0 0
  %985 = vmatprep.subr.bf16.mxu0 0
  %986 = vmatpush1.bf16.msra.mxu0 0
  %987 = vmatprep.subr.bf16.mxu0 0
  %988 = vmatpush1.bf16.msra.mxu0 0
  %989 = vmatprep.subr.bf16.mxu0 0
  %990 = vmatpush1.bf16.msra.mxu0 0
  %991 = vmatprep.subr.bf16.mxu0 0
  %992 = vmatpush1.bf16.msra.mxu0 0
  %993 = vmatprep.subr.bf16.mxu0 0
  %994 = vmatpush1.bf16.msra.mxu0 0
  %995 = vmatprep.subr.bf16.mxu0 0
  %996 = vmatpush1.bf16.msra.mxu0 0
  %997 = vmatprep.subr.bf16.mxu0 0
  %998 = vmatpush1.bf16.msra.mxu0 0
  %999 = vmatprep.mubr.bf16.mxu0 0
  %1000 = vmatmul.mubr.bf16.gmra.mrb[0].mxu0 %v894
  %v1001 = vpop.f32.mrb[0].mxu0
  %v1002 = vadd.f32 0.0, %v1001
  %v1003 = vpop.f32.mrb[0].mxu0
  %v1004 = vpop.f32.mrb[0].mxu0
  %v1005 = vadd.f32 0.0, %v1004
  %v1006 = vpop.f32.mrb[0].mxu0
  %1007 = vmatprep.mubr.bf16.mxu0 0
  %1008 = vmatmul.mubr.bf16.gmra.mrb[0].mxu0 %v895
  %v1009 = vpop.f32.mrb[0].mxu0
  %v1010 = vadd.f32 0.0, %v1009
  %v1011 = vpop.f32.mrb[0].mxu0
  %v1012 = vpop.f32.mrb[0].mxu0
  %v1013 = vadd.f32 0.0, %v1012
  %v1014 = vpop.f32.mrb[0].mxu0
  %1015 = vmatprep.mubr.bf16.mxu0 0
  %1016 = vmatmul.mubr.bf16.gmra.mrb[0].mxu0 %v896
  %v1017 = vpop.f32.mrb[0].mxu0
  %v1018 = vadd.f32 0.0, %v1017
  %v1019 = vpop.f32.mrb[0].mxu0
  %v1020 = vpop.f32.mrb[0].mxu0
  %v1021 = vadd.f32 0.0, %v1020
  %v1022 = vpop.f32.mrb[0].mxu0
  %1023 = vmatprep.mubr.bf16.mxu0 0
  %1024 = vmatmul.mubr.bf16.gmra.mrb[0].mxu0 %v897
  %v1025 = vpop.f32.mrb[0].mxu0
  %v1026 = vadd.f32 0.0, %v1025
  %v1027 = vpop.f32.mrb[0].mxu0
  %v1028 = vpop.f32.mrb[0].mxu0
  %v1029 = vadd.f32 0.0, %v1028
  %v1030 = vpop.f32.mrb[0].mxu0
  %1031 = vmatprep.mubr.bf16.mxu0 0
  %1032 = vmatmul.mubr.bf16.gmra.mrb[0].mxu0 %v898
  %v1033 = vpop.f32.mrb[0].mxu0
  %v1034 = vadd.f32 0.0, %v1033
  %v1035 = vpop.f32.mrb[0].mxu0
  %v1036 = vpop.f32.mrb[0].mxu0
  %v1037 = vadd.f32 0.0, %v1036
  %v1038 = vpop.f32.mrb[0].mxu0
  %1039 = vmatprep.mubr.bf16.mxu0 0
  %1040 = vmatmul.mubr.bf16.gmra.mrb[0].mxu0 %v899
  %v1041 = vpop.f32.mrb[0].mxu0
  %v1042 = vadd.f32 0.0, %v1041
  %v1043 = vpop.f32.mrb[0].mxu0
  %v1044 = vpop.f32.mrb[0].mxu0
  %v1045 = vadd.f32 0.0, %v1044
  %v1046 = vpop.f32.mrb[0].mxu0
  %1047 = vmatprep.mubr.bf16.mxu0 0
  %1048 = vmatmul.mubr.bf16.gmra.mrb[0].mxu0 %v900
  %v1049 = vpop.f32.mrb[0].mxu0
  %v1050 = vadd.f32 0.0, %v1049
  %v1051 = vpop.f32.mrb[0].mxu0
  %v1052 = vpop.f32.mrb[0].mxu0
  %v1053 = vadd.f32 0.0, %v1052
  %v1054 = vpop.f32.mrb[0].mxu0
  %1055 = vmatprep.mubr.bf16.mxu0 0
  %1056 = vmatmul.mubr.bf16.gmra.mrb[0].mxu0 %v901
  %v1057 = vpop.f32.mrb[0].mxu0
  %v1058 = vadd.f32 0.0, %v1057
  %v1059 = vpop.f32.mrb[0].mxu0
  %v1060 = vpop.f32.mrb[0].mxu0
  %v1061 = vadd.f32 0.0, %v1060
  %v1062 = vpop.f32.mrb[0].mxu0
  %1063 = vdwg.mxu0
  %v1064 = vadd.f32 %v718, %v1002
  %v1065 = vadd.f32 %v719, %v1005
  %v1066 = vadd.f32 %v720, %v1010
  %v1067 = vadd.f32 %v721, %v1013
  %v1068 = vadd.f32 %v722, %v1018
  %v1069 = vadd.f32 %v723, %v1021
  %v1070 = vadd.f32 %v724, %v1026
  %v1071 = vadd.f32 %v725, %v1029
  %v1072 = vadd.f32 %v726, %v1034
  %v1073 = vadd.f32 %v727, %v1037
  %v1074 = vadd.f32 %v728, %v1042
  %v1075 = vadd.f32 %v729, %v1045
  %v1076 = vadd.f32 %v730, %v1050
  %v1077 = vadd.f32 %v731, %v1053
  %v1078 = vadd.f32 %v732, %v1058
  %v1079 = vadd.f32 %v733, %v1061
  %v1080 = vpack.c.bf16 %v1064, %v1064
  %v1081 = vpack.c.bf16 %v1065, %v1065
  %v1082 = vpack.c.bf16 %v1066, %v1066
  %v1083 = vpack.c.bf16 %v1067, %v1067
  %v1084 = vpack.c.bf16 %v1068, %v1068
  %v1085 = vpack.c.bf16 %v1069, %v1069
  %v1086 = vpack.c.bf16 %v1070, %v1070
  %v1087 = vpack.c.bf16 %v1071, %v1071
  %v1088 = vpack.c.bf16 %v1072, %v1072
  %v1089 = vpack.c.bf16 %v1073, %v1073
  %v1090 = vpack.c.bf16 %v1074, %v1074
  %v1091 = vpack.c.bf16 %v1075, %v1075
  %v1092 = vpack.c.bf16 %v1076, %v1076
  %v1093 = vpack.c.bf16 %v1077, %v1077
  %v1094 = vpack.c.bf16 %v1078, %v1078
  %v1095 = vpack.c.bf16 %v1079, %v1079
  %1096 = vst [vmem:[%s2] sm:$0xf] %v1080
  %1097 = vst [vmem:[%s2 + $0x4] sm:$0xf] %v1081
  %1098 = vst [vmem:[%s2 + $0x8] sm:$0xf] %v1082
  %1099 = vst [vmem:[%s2 + $0xc] sm:$0xf] %v1083
  %1100 = vst [vmem:[%s2 + $0x10] sm:$0xf] %v1084
  %1101 = vst [vmem:[%s2 + $0x14] sm:$0xf] %v1085
  %1102 = vst [vmem:[%s2 + $0x18] sm:$0xf] %v1086
  %1103 = vst [vmem:[%s2 + $0x1c] sm:$0xf] %v1087
  %1104 = vst [vmem:[%s2 + $0x20] sm:$0xf] %v1088
  %1105 = vst [vmem:[%s2 + $0x24] sm:$0xf] %v1089
  %1106 = vst [vmem:[%s2 + $0x28] sm:$0xf] %v1090
  %1107 = vst [vmem:[%s2 + $0x2c] sm:$0xf] %v1091
  %1108 = vst [vmem:[%s2 + $0x30] sm:$0xf] %v1092
  %1109 = vst [vmem:[%s2 + $0x34] sm:$0xf] %v1093
  %1110 = vst [vmem:[%s2 + $0x38] sm:$0xf] %v1094
  %1111 = vst [vmem:[%s2 + $0x3c] sm:$0xf] %v1095
  %v1112 = vadd.f32 %v1064, %v1065
  %v1113 = vadd.f32 %v1112, %v1066
  %v1114 = vadd.f32 %v1113, %v1067
  %v1115 = vadd.f32 %v1114, %v1068
  %v1116 = vadd.f32 %v1115, %v1069
  %v1117 = vadd.f32 %v1116, %v1070
  %v1118 = vadd.f32 %v1117, %v1071
  %v1119 = vadd.f32 %v1118, %v1072
  %v1120 = vadd.f32 %v1119, %v1073
  %v1121 = vadd.f32 %v1120, %v1074
  %v1122 = vadd.f32 %v1121, %v1075
  %v1123 = vadd.f32 %v1122, %v1076
  %v1124 = vadd.f32 %v1123, %v1077
  %v1125 = vadd.f32 %v1124, %v1078
  %v1126 = vadd.f32 %v1125, %v1079
  %v1127 = vrot.slane %v1126, 4
  %v1128 = vadd.f32 %v1126, %v1127
  %v1129 = vrot.slane %v1128, 2
  %v1130 = vadd.f32 %v1128, %v1129
  %v1131 = vrot.slane %v1130, 1
  %v1132 = vadd.f32 %v1130, %v1131
  %1133 = vst [vmem:[%s3] sm:$0x1] %v1132
  %v1134 = vmul.f32 %v1064, %v1064
  %v1135 = vmul.f32 %v1065, %v1065
  %v1136 = vmul.f32 %v1066, %v1066
  %v1137 = vmul.f32 %v1067, %v1067
  %v1138 = vmul.f32 %v1068, %v1068
  %v1139 = vmul.f32 %v1069, %v1069
  %v1140 = vmul.f32 %v1070, %v1070
  %v1141 = vmul.f32 %v1071, %v1071
  %v1142 = vmul.f32 %v1072, %v1072
  %v1143 = vmul.f32 %v1073, %v1073
  %v1144 = vmul.f32 %v1074, %v1074
  %v1145 = vmul.f32 %v1075, %v1075
  %v1146 = vmul.f32 %v1076, %v1076
  %v1147 = vmul.f32 %v1077, %v1077
  %v1148 = vmul.f32 %v1078, %v1078
  %v1149 = vmul.f32 %v1079, %v1079
  %v1150 = vadd.f32 %v1134, %v1135
  %v1151 = vadd.f32 %v1150, %v1136
  %v1152 = vadd.f32 %v1151, %v1137
  %v1153 = vadd.f32 %v1152, %v1138
  %v1154 = vadd.f32 %v1153, %v1139
  %v1155 = vadd.f32 %v1154, %v1140
  %v1156 = vadd.f32 %v1155, %v1141
  %v1157 = vadd.f32 %v1156, %v1142
  %v1158 = vadd.f32 %v1157, %v1143
  %v1159 = vadd.f32 %v1158, %v1144
  %v1160 = vadd.f32 %v1159, %v1145
  %v1161 = vadd.f32 %v1160, %v1146
  %v1162 = vadd.f32 %v1161, %v1147
  %v1163 = vadd.f32 %v1162, %v1148
  %v1164 = vadd.f32 %v1163, %v1149
  %v1165 = vrot.slane %v1164, 4
  %v1166 = vadd.f32 %v1164, %v1165
  %v1167 = vrot.slane %v1166, 2
  %v1168 = vadd.f32 %v1166, %v1167
  %v1169 = vrot.slane %v1168, 1
  %v1170 = vadd.f32 %v1168, %v1169
  %1171 = vst [vmem:[%s4] sm:$0x1] %v1170
  // Predicated region
  $region10: #{resnet_layer_forward.5} parent=0 // pred_check
    _
  $region11: #{resnet_layer_forward.5} parent=0 // pred_check_branch
    %1173 = sbr.rel (0) target = $region13
  $region12: #{resnet_layer_forward.5} parent=0 // pred_region
    _
  $region13: #{resnet_layer_forward.5} parent=0 // pred_fallthru
    _
  // Predicated region
  $region14: #{resnet_layer_forward.5} parent=0 // pred_check
    _
  $region15: #{resnet_layer_forward.5} parent=0 // pred_check_branch
    %1175 = sbr.rel (0) target = $region17
  $region16: #{resnet_layer_forward.5} parent=0 // pred_region
    _
  $region17: #{resnet_layer_forward.5} parent=0 // pred_fallthru
    _
  // Predicated region
  $region18: #{resnet_layer_forward.5} parent=0 // pred_check
    _
  $region19: #{resnet_layer_forward.5} parent=0 // pred_check_branch
    %1177 = sbr.rel (0) target = $region21
  $region20: #{resnet_layer_forward.5} parent=0 // pred_region
    _
  $region21: #{resnet_layer_forward.5} parent=0 // pred_fallthru
    _
  // Predicated region
  $region22: #{resnet_layer_forward.5} parent=0 // pred_check
    _
  $region23: #{resnet_layer_forward.5} parent=0 // pred_check_branch
    %1179 = sbr.rel (0) target = $region25
  $region24: #{resnet_layer_forward.5} parent=0 // pred_region
    _
  $region25: #{resnet_layer_forward.5} parent=0 // pred_fallthru
    _
  // Predicated region
  $region26: #{resnet_layer_forward.5} parent=0 // pred_check
    _
  $region27: #{resnet_layer_forward.5} parent=0 // pred_check_branch
    %1181 = sbr.rel (0) target = $region29
  $region28: #{resnet_layer_forward.5} parent=0 // pred_region
    _
  $region29: #{resnet_layer_forward.5} parent=0 // pred_fallthru
    _
  // Predicated region
  $region30: #{resnet_layer_forward.5} parent=0 // pred_check
    _
  $region31: #{resnet_layer_forward.5} parent=0 // pred_check_branch
    %1183 = sbr.rel (0) target = $region33
  $region32: #{resnet_layer_forward.5} parent=0 // pred_region
    _
  $region33: #{resnet_layer_forward.5} parent=0 // pred_fallthru
    _

// kernel: resnet_layer_forward.8
$region0: #{resnet_layer_forward.8}
  #allocation0 [shape = 'u32[]', space=smem, size = 0x4, offset = 0x4, fixed_abs, tag = 'smem constant byte address 0x4 - core index']
  #allocation1 [shape = 'u32[144,128]{1,0:T(1,128)}', space=vmem, size = 0x12000, scoped, tag = 'internal scratch']
  %s0 = inlined_call_operand.vmem [shape: bf16[2,8,8,128], index: 0, kind: input, shape index: {}]
  %s1 = inlined_call_operand.vmem [shape: bf16[1,128,128], index: 1, kind: input, shape index: {}]
  %s2 = inlined_call_operand.vmem [shape: bf16[2,8,8,128], index: 2, kind: output, shape index: {0}]
  %s3 = inlined_call_operand.vmem [shape: f32[1,1,128], index: 3, kind: output, shape index: {1}]
  %s4 = inlined_call_operand.vmem [shape: f32[1,1,128], index: 4, kind: output, shape index: {2}]
  %5 = xla_tuple %s2, %s3, %s4
  %s6 = sld [smem:[#allocation0]]
  $region34: #{resnet_layer_forward.8} parent=0
    _
  %s8 = ssub.s32 1, %s6
  %s9 = scalar_select 0, %s8, %s6
  // Predicated region
  $region2: #{resnet_layer_forward.8} parent=0 // pred_check
    _
  $region3: #{resnet_layer_forward.8} parent=0 // pred_check_branch
    %11 = sbr.rel (0) target = $region5
  $region4: #{resnet_layer_forward.8} parent=0 // pred_region
    _
  $region5: #{resnet_layer_forward.8} parent=0 // pred_fallthru
    _
  // Predicated region
  $region6: #{resnet_layer_forward.8} parent=0 // pred_check
    _
  $region7: #{resnet_layer_forward.8} parent=0 // pred_check_branch
    %13 = sbr.rel (0) target = $region9
  $region8: #{resnet_layer_forward.8} parent=0 // pred_region
    _
  $region9: #{resnet_layer_forward.8} parent=0 // pred_fallthru
    _
  %v15 = vld [vmem:[%s0] sm:$0xf]
  %v16 = vld [vmem:[%s0 + $0x4] sm:$0xf]
  %v17 = vld [vmem:[%s0 + $0x8] sm:$0xf]
  %v18 = vld [vmem:[%s0 + $0xc] sm:$0xf]
  %v19 = vld [vmem:[%s0 + $0x10] sm:$0xf]
  %v20 = vld [vmem:[%s0 + $0x14] sm:$0xf]
  %v21 = vld [vmem:[%s0 + $0x18] sm:$0xf]
  %v22 = vld [vmem:[%s0 + $0x1c] sm:$0xf]
  %v23 = vld [vmem:[%s0 + $0x20] sm:$0xf]
  %v24 = vld [vmem:[%s0 + $0x24] sm:$0xf]
  %v25 = vld [vmem:[%s0 + $0x28] sm:$0xf]
  %v26 = vld [vmem:[%s0 + $0x2c] sm:$0xf]
  %v27 = vld [vmem:[%s0 + $0x30] sm:$0xf]
  %v28 = vld [vmem:[%s0 + $0x34] sm:$0xf]
  %v29 = vld [vmem:[%s0 + $0x38] sm:$0xf]
  %v30 = vld [vmem:[%s0 + $0x3c] sm:$0xf]
  %v31 = vunpack.c.l.bf16 %v15
  %v32 = vunpack.c.l.bf16 %v16
  %v33 = vunpack.c.l.bf16 %v17
  %v34 = vunpack.c.l.bf16 %v18
  %v35 = vunpack.c.l.bf16 %v19
  %v36 = vunpack.c.l.bf16 %v20
  %v37 = vunpack.c.l.bf16 %v21
  %v38 = vunpack.c.l.bf16 %v22
  %v39 = vunpack.c.l.bf16 %v23
  %v40 = vunpack.c.l.bf16 %v24
  %v41 = vunpack.c.l.bf16 %v25
  %v42 = vunpack.c.l.bf16 %v26
  %v43 = vunpack.c.l.bf16 %v27
  %v44 = vunpack.c.l.bf16 %v28
  %v45 = vunpack.c.l.bf16 %v29
  %v46 = vunpack.c.l.bf16 %v30
  %v47 = vpack.c.bf16 %v32, %v31
  %v48 = vpack.c.bf16 %v34, %v33
  %v49 = vpack.c.bf16 %v36, %v35
  %v50 = vpack.c.bf16 %v38, %v37
  %v51 = vpack.c.bf16 %v40, %v39
  %v52 = vpack.c.bf16 %v42, %v41
  %v53 = vpack.c.bf16 %v44, %v43
  %v54 = vpack.c.bf16 %v46, %v45
  %v55 = vld [vmem:[%s1] sm:$0xf]
  %v56 = vld [vmem:[%s1 + $0x4] sm:$0xf]
  %v57 = vld [vmem:[%s1 + $0x8] sm:$0xf]
  %v58 = vld [vmem:[%s1 + $0xc] sm:$0xf]
  %v59 = vld [vmem:[%s1 + $0x10] sm:$0xf]
  %v60 = vld [vmem:[%s1 + $0x14] sm:$0xf]
  %v61 = vld [vmem:[%s1 + $0x18] sm:$0xf]
  %v62 = vld [vmem:[%s1 + $0x1c] sm:$0xf]
  %v63 = vld [vmem:[%s1 + $0x20] sm:$0xf]
  %v64 = vld [vmem:[%s1 + $0x24] sm:$0xf]
  %v65 = vld [vmem:[%s1 + $0x28] sm:$0xf]
  %v66 = vld [vmem:[%s1 + $0x2c] sm:$0xf]
  %v67 = vld [vmem:[%s1 + $0x30] sm:$0xf]
  %v68 = vld [vmem:[%s1 + $0x34] sm:$0xf]
  %v69 = vld [vmem:[%s1 + $0x38] sm:$0xf]
  %v70 = vld [vmem:[%s1 + $0x3c] sm:$0xf]
  %v87 = vunpack.c.l.b16 %v55
  %v88 = vunpack.c.l.b16 %v56
  %v89 = vunpack.c.l.b16 %v57
  %v90 = vunpack.c.l.b16 %v58
  %v91 = vunpack.c.l.b16 %v59
  %v92 = vunpack.c.l.b16 %v60
  %v93 = vunpack.c.l.b16 %v61
  %v94 = vunpack.c.l.b16 %v62
  %v95 = vunpack.c.l.b16 %v63
  %v96 = vunpack.c.l.b16 %v64
  %v97 = vunpack.c.l.b16 %v65
  %v98 = vunpack.c.l.b16 %v66
  %v99 = vunpack.c.l.b16 %v67
  %v100 = vunpack.c.l.b16 %v68
  %v101 = vunpack.c.l.b16 %v69
  %v102 = vunpack.c.l.b16 %v70
  %v103 = vpack.c.b16 %v88, %v87
  %v104 = vpack.c.b16 %v90, %v89
  %v105 = vpack.c.b16 %v92, %v91
  %v106 = vpack.c.b16 %v94, %v93
  %v107 = vpack.c.b16 %v96, %v95
  %v108 = vpack.c.b16 %v98, %v97
  %v109 = vpack.c.b16 %v100, %v99
  %v110 = vpack.c.b16 %v102, %v101
  %119 = vmatprep.subr.bf16.mxu0 0
  %120 = vmatpush1.bf16.msra.mxu0 %v103
  %121 = vmatprep.subr.bf16.mxu0 0
  %122 = vmatpush1.bf16.msra.mxu0 %v104
  %123 = vmatprep.subr.bf16.mxu0 0
  %124 = vmatpush1.bf16.msra.mxu0 %v105
  %125 = vmatprep.subr.bf16.mxu0 0
  %126 = vmatpush1.bf16.msra.mxu0 %v106
  %127 = vmatprep.subr.bf16.mxu0 0
  %128 = vmatpush1.bf16.msra.mxu0 %v107
  %129 = vmatprep.subr.bf16.mxu0 0
  %130 = vmatpush1.bf16.msra.mxu0 %v108
  %131 = vmatprep.subr.bf16.mxu0 0
  %132 = vmatpush1.bf16.msra.mxu0 %v109
  %133 = vmatprep.subr.bf16.mxu0 0
  %134 = vmatpush1.bf16.msra.mxu0 %v110
  %135 = vmatprep.subr.bf16.mxu0 0
  %136 = vmatpush1.bf16.msra.mxu0 0
  %137 = vmatprep.subr.bf16.mxu0 0
  %138 = vmatpush1.bf16.msra.mxu0 0
  %139 = vmatprep.subr.bf16.mxu0 0
  %140 = vmatpush1.bf16.msra.mxu0 0
  %141 = vmatprep.subr.bf16.mxu0 0
  %142 = vmatpush1.bf16.msra.mxu0 0
  %143 = vmatprep.subr.bf16.mxu0 0
  %144 = vmatpush1.bf16.msra.mxu0 0
  %145 = vmatprep.subr.bf16.mxu0 0
  %146 = vmatpush1.bf16.msra.mxu0 0
  %147 = vmatprep.subr.bf16.mxu0 0
  %148 = vmatpush1.bf16.msra.mxu0 0
  %149 = vmatprep.subr.bf16.mxu0 0
  %150 = vmatpush1.bf16.msra.mxu0 0
  %151 = vmatprep.mubr.bf16.mxu0 0
  %152 = vmatmul.mubr.bf16.gmra.mrb[0].mxu0 %v47
  %v153 = vpop.f32.mrb[0].mxu0
  %v154 = vadd.f32 0.0, %v153
  %v155 = vpop.f32.mrb[0].mxu0
  %v156 = vpop.f32.mrb[0].mxu0
  %v157 = vadd.f32 0.0, %v156
  %v158 = vpop.f32.mrb[0].mxu0
  %159 = vmatprep.mubr.bf16.mxu0 0
  %160 = vmatmul.mubr.bf16.gmra.mrb[0].mxu0 %v48
  %v161 = vpop.f32.mrb[0].mxu0
  %v162 = vadd.f32 0.0, %v161
  %v163 = vpop.f32.mrb[0].mxu0
  %v164 = vpop.f32.mrb[0].mxu0
  %v165 = vadd.f32 0.0, %v164
  %v166 = vpop.f32.mrb[0].mxu0
  %167 = vmatprep.mubr.bf16.mxu0 0
  %168 = vmatmul.mubr.bf16.gmra.mrb[0].mxu0 %v49
  %v169 = vpop.f32.mrb[0].mxu0
  %v170 = vadd.f32 0.0, %v169
  %v171 = vpop.f32.mrb[0].mxu0
  %v172 = vpop.f32.mrb[0].mxu0
  %v173 = vadd.f32 0.0, %v172
  %v174 = vpop.f32.mrb[0].mxu0
  %175 = vmatprep.mubr.bf16.mxu0 0
  %176 = vmatmul.mubr.bf16.gmra.mrb[0].mxu0 %v50
  %v177 = vpop.f32.mrb[0].mxu0
  %v178 = vadd.f32 0.0, %v177
  %v179 = vpop.f32.mrb[0].mxu0
  %v180 = vpop.f32.mrb[0].mxu0
  %v181 = vadd.f32 0.0, %v180
  %v182 = vpop.f32.mrb[0].mxu0
  %183 = vmatprep.mubr.bf16.mxu0 0
  %184 = vmatmul.mubr.bf16.gmra.mrb[0].mxu0 %v51
  %v185 = vpop.f32.mrb[0].mxu0
  %v186 = vadd.f32 0.0, %v185
  %v187 = vpop.f32.mrb[0].mxu0
  %v188 = vpop.f32.mrb[0].mxu0
  %v189 = vadd.f32 0.0, %v188
  %v190 = vpop.f32.mrb[0].mxu0
  %191 = vmatprep.mubr.bf16.mxu0 0
  %192 = vmatmul.mubr.bf16.gmra.mrb[0].mxu0 %v52
  %v193 = vpop.f32.mrb[0].mxu0
  %v194 = vadd.f32 0.0, %v193
  %v195 = vpop.f32.mrb[0].mxu0
  %v196 = vpop.f32.mrb[0].mxu0
  %v197 = vadd.f32 0.0, %v196
  %v198 = vpop.f32.mrb[0].mxu0
  %199 = vmatprep.mubr.bf16.mxu0 0
  %200 = vmatmul.mubr.bf16.gmra.mrb[0].mxu0 %v53
  %v201 = vpop.f32.mrb[0].mxu0
  %v202 = vadd.f32 0.0, %v201
  %v203 = vpop.f32.mrb[0].mxu0
  %v204 = vpop.f32.mrb[0].mxu0
  %v205 = vadd.f32 0.0, %v204
  %v206 = vpop.f32.mrb[0].mxu0
  %207 = vmatprep.mubr.bf16.mxu0 0
  %208 = vmatmul.mubr.bf16.gmra.mrb[0].mxu0 %v54
  %v209 = vpop.f32.mrb[0].mxu0
  %v210 = vadd.f32 0.0, %v209
  %v211 = vpop.f32.mrb[0].mxu0
  %v212 = vpop.f32.mrb[0].mxu0
  %v213 = vadd.f32 0.0, %v212
  %v214 = vpop.f32.mrb[0].mxu0
  %215 = vdwg.mxu0
  %v216 = vpack.c.bf16 %v154, %v154
  %v217 = vpack.c.bf16 %v157, %v157
  %v218 = vpack.c.bf16 %v162, %v162
  %v219 = vpack.c.bf16 %v165, %v165
  %v220 = vpack.c.bf16 %v170, %v170
  %v221 = vpack.c.bf16 %v173, %v173
  %v222 = vpack.c.bf16 %v178, %v178
  %v223 = vpack.c.bf16 %v181, %v181
  %v224 = vpack.c.bf16 %v186, %v186
  %v225 = vpack.c.bf16 %v189, %v189
  %v226 = vpack.c.bf16 %v194, %v194
  %v227 = vpack.c.bf16 %v197, %v197
  %v228 = vpack.c.bf16 %v202, %v202
  %v229 = vpack.c.bf16 %v205, %v205
  %v230 = vpack.c.bf16 %v210, %v210
  %v231 = vpack.c.bf16 %v213, %v213
  %232 = vst [vmem:[%s2] sm:$0xf] %v216
  %233 = vst [vmem:[%s2 + $0x4] sm:$0xf] %v217
  %234 = vst [vmem:[%s2 + $0x8] sm:$0xf] %v218
  %235 = vst [vmem:[%s2 + $0xc] sm:$0xf] %v219
  %236 = vst [vmem:[%s2 + $0x10] sm:$0xf] %v220
  %237 = vst [vmem:[%s2 + $0x14] sm:$0xf] %v221
  %238 = vst [vmem:[%s2 + $0x18] sm:$0xf] %v222
  %239 = vst [vmem:[%s2 + $0x1c] sm:$0xf] %v223
  %240 = vst [vmem:[%s2 + $0x20] sm:$0xf] %v224
  %241 = vst [vmem:[%s2 + $0x24] sm:$0xf] %v225
  %242 = vst [vmem:[%s2 + $0x28] sm:$0xf] %v226
  %243 = vst [vmem:[%s2 + $0x2c] sm:$0xf] %v227
  %244 = vst [vmem:[%s2 + $0x30] sm:$0xf] %v228
  %245 = vst [vmem:[%s2 + $0x34] sm:$0xf] %v229
  %246 = vst [vmem:[%s2 + $0x38] sm:$0xf] %v230
  %247 = vst [vmem:[%s2 + $0x3c] sm:$0xf] %v231
  %v248 = vadd.f32 %v154, %v157
  %v249 = vadd.f32 %v248, %v162
  %v250 = vadd.f32 %v249, %v165
  %v251 = vadd.f32 %v250, %v170
  %v252 = vadd.f32 %v251, %v173
  %v253 = vadd.f32 %v252, %v178
  %v254 = vadd.f32 %v253, %v181
  %v255 = vadd.f32 %v254, %v186
  %v256 = vadd.f32 %v255, %v189
  %v257 = vadd.f32 %v256, %v194
  %v258 = vadd.f32 %v257, %v197
  %v259 = vadd.f32 %v258, %v202
  %v260 = vadd.f32 %v259, %v205
  %v261 = vadd.f32 %v260, %v210
  %v262 = vadd.f32 %v261, %v213
  %v263 = vrot.slane %v262, 4
  %v264 = vadd.f32 %v262, %v263
  %v265 = vrot.slane %v264, 2
  %v266 = vadd.f32 %v264, %v265
  %v267 = vrot.slane %v266, 1
  %v268 = vadd.f32 %v266, %v267
  %269 = vst [vmem:[%s3] sm:$0x1] %v268
  %v270 = vmul.f32 %v154, %v154
  %v271 = vmul.f32 %v157, %v157
  %v272 = vmul.f32 %v162, %v162
  %v273 = vmul.f32 %v165, %v165
  %v274 = vmul.f32 %v170, %v170
  %v275 = vmul.f32 %v173, %v173
  %v276 = vmul.f32 %v178, %v178
  %v277 = vmul.f32 %v181, %v181
  %v278 = vmul.f32 %v186, %v186
  %v279 = vmul.f32 %v189, %v189
  %v280 = vmul.f32 %v194, %v194
  %v281 = vmul.f32 %v197, %v197
  %v282 = vmul.f32 %v202, %v202
  %v283 = vmul.f32 %v205, %v205
  %v284 = vmul.f32 %v210, %v210
  %v285 = vmul.f32 %v213, %v213
  %v286 = vadd.f32 %v270, %v271
  %v287 = vadd.f32 %v286, %v272
  %v288 = vadd.f32 %v287, %v273
  %v289 = vadd.f32 %v288, %v274
  %v290 = vadd.f32 %v289, %v275
  %v291 = vadd.f32 %v290, %v276
  %v292 = vadd.f32 %v291, %v277
  %v293 = vadd.f32 %v292, %v278
  %v294 = vadd.f32 %v293, %v279
  %v295 = vadd.f32 %v294, %v280
  %v296 = vadd.f32 %v295, %v281
  %v297 = vadd.f32 %v296, %v282
  %v298 = vadd.f32 %v297, %v283
  %v299 = vadd.f32 %v298, %v284
  %v300 = vadd.f32 %v299, %v285
  %v301 = vrot.slane %v300, 4
  %v302 = vadd.f32 %v300, %v301
  %v303 = vrot.slane %v302, 2
  %v304 = vadd.f32 %v302, %v303
  %v305 = vrot.slane %v304, 1
  %v306 = vadd.f32 %v304, %v305
  %307 = vst [vmem:[%s4] sm:$0x1] %v306
  // Predicated region
  $region10: #{resnet_layer_forward.8} parent=0 // pred_check
    _
  $region11: #{resnet_layer_forward.8} parent=0 // pred_check_branch
    %309 = sbr.rel (0) target = $region13
  $region12: #{resnet_layer_forward.8} parent=0 // pred_region
    _
  $region13: #{resnet_layer_forward.8} parent=0 // pred_fallthru
    _
  // Predicated region
  $region14: #{resnet_layer_forward.8} parent=0 // pred_check
    _
  $region15: #{resnet_layer_forward.8} parent=0 // pred_check_branch
    %311 = sbr.rel (0) target = $region17
  $region16: #{resnet_layer_forward.8} parent=0 // pred_region
    _
  $region17: #{resnet_layer_forward.8} parent=0 // pred_fallthru
    _
  // Predicated region
  $region18: #{resnet_layer_forward.8} parent=0 // pred_check
    _
  $region19: #{resnet_layer_forward.8} parent=0 // pred_check_branch
    %313 = sbr.rel (0) target = $region21
  $region20: #{resnet_layer_forward.8} parent=0 // pred_region
    _
  $region21: #{resnet_layer_forward.8} parent=0 // pred_fallthru
    _
  // Predicated region
  $region22: #{resnet_layer_forward.8} parent=0 // pred_check
    _
  $region23: #{resnet_layer_forward.8} parent=0 // pred_check_branch
    %315 = sbr.rel (0) target = $region25
  $region24: #{resnet_layer_forward.8} parent=0 // pred_region
    _
  $region25: #{resnet_layer_forward.8} parent=0 // pred_fallthru
    _
  // Predicated region
  $region26: #{resnet_layer_forward.8} parent=0 // pred_check
    _
  $region27: #{resnet_layer_forward.8} parent=0 // pred_check_branch
    %317 = sbr.rel (0) target = $region29
  $region28: #{resnet_layer_forward.8} parent=0 // pred_region
    _
  $region29: #{resnet_layer_forward.8} parent=0 // pred_fallthru
    _
  // Predicated region
  $region30: #{resnet_layer_forward.8} parent=0 // pred_check
    _
  $region31: #{resnet_layer_forward.8} parent=0 // pred_check_branch
    %319 = sbr.rel (0) target = $region33
  $region32: #{resnet_layer_forward.8} parent=0 // pred_region
    _
  $region33: #{resnet_layer_forward.8} parent=0 // pred_fallthru
    _

// kernel: resnet_layer_forward.9
$region0: #{resnet_layer_forward.9}
  #allocation0 [shape = 'u32[]', space=smem, size = 0x4, offset = 0x4, fixed_abs, tag = 'smem constant byte address 0x4 - core index']
  #allocation1 [shape = 'u32[144,128]{1,0:T(1,128)}', space=vmem, size = 0x12000, scoped, tag = 'internal scratch']
  %s0 = inlined_call_operand.vmem [shape: bf16[2,8,8,128], index: 0, kind: input, shape index: {}]
  %s1 = inlined_call_operand.vmem [shape: f32[1,1,1,128], index: 1, kind: input, shape index: {}]
  %s2 = inlined_call_operand.vmem [shape: f32[1,1,1,128], index: 2, kind: input, shape index: {}]
  %s3 = inlined_call_operand.vmem [shape: bf16[2,8,8,128], index: 3, kind: input, shape index: {}]
  %s4 = inlined_call_operand.vmem [shape: f32[1,1,1,128], index: 4, kind: input, shape index: {}]
  %s5 = inlined_call_operand.vmem [shape: f32[1,1,1,128], index: 5, kind: input, shape index: {}]
  %s6 = inlined_call_operand.vmem [shape: f32[2,8,8,128], index: 6, kind: output, shape index: {}]
  %s7 = sld [smem:[#allocation0]]
  $region34: #{resnet_layer_forward.9} parent=0
    _
  %s9 = ssub.s32 1, %s7
  %s10 = scalar_select 0, %s9, %s7
  // Predicated region
  $region2: #{resnet_layer_forward.9} parent=0 // pred_check
    _
  $region3: #{resnet_layer_forward.9} parent=0 // pred_check_branch
    %12 = sbr.rel (0) target = $region5
  $region4: #{resnet_layer_forward.9} parent=0 // pred_region
    _
  $region5: #{resnet_layer_forward.9} parent=0 // pred_fallthru
    _
  // Predicated region
  $region6: #{resnet_layer_forward.9} parent=0 // pred_check
    _
  $region7: #{resnet_layer_forward.9} parent=0 // pred_check_branch
    %14 = sbr.rel (0) target = $region9
  $region8: #{resnet_layer_forward.9} parent=0 // pred_region
    _
  $region9: #{resnet_layer_forward.9} parent=0 // pred_fallthru
    _
  // Predicated region
  $region10: #{resnet_layer_forward.9} parent=0 // pred_check
    _
  $region11: #{resnet_layer_forward.9} parent=0 // pred_check_branch
    %16 = sbr.rel (0) target = $region13
  $region12: #{resnet_layer_forward.9} parent=0 // pred_region
    _
  $region13: #{resnet_layer_forward.9} parent=0 // pred_fallthru
    _
  // Predicated region
  $region14: #{resnet_layer_forward.9} parent=0 // pred_check
    _
  $region15: #{resnet_layer_forward.9} parent=0 // pred_check_branch
    %18 = sbr.rel (0) target = $region17
  $region16: #{resnet_layer_forward.9} parent=0 // pred_region
    _
  $region17: #{resnet_layer_forward.9} parent=0 // pred_fallthru
    _
  // Predicated region
  $region18: #{resnet_layer_forward.9} parent=0 // pred_check
    _
  $region19: #{resnet_layer_forward.9} parent=0 // pred_check_branch
    %20 = sbr.rel (0) target = $region21
  $region20: #{resnet_layer_forward.9} parent=0 // pred_region
    _
  $region21: #{resnet_layer_forward.9} parent=0 // pred_fallthru
    _
  // Predicated region
  $region22: #{resnet_layer_forward.9} parent=0 // pred_check
    _
  $region23: #{resnet_layer_forward.9} parent=0 // pred_check_branch
    %22 = sbr.rel (0) target = $region25
  $region24: #{resnet_layer_forward.9} parent=0 // pred_region
    _
  $region25: #{resnet_layer_forward.9} parent=0 // pred_fallthru
    _
  %v23 = vld [vmem:[%s0] sm:$0xf]
  %v24 = vld [vmem:[%s0 + $0x4] sm:$0xf]
  %v25 = vld [vmem:[%s0 + $0x8] sm:$0xf]
  %v26 = vld [vmem:[%s0 + $0xc] sm:$0xf]
  %v27 = vld [vmem:[%s0 + $0x10] sm:$0xf]
  %v28 = vld [vmem:[%s0 + $0x14] sm:$0xf]
  %v29 = vld [vmem:[%s0 + $0x18] sm:$0xf]
  %v30 = vld [vmem:[%s0 + $0x1c] sm:$0xf]
  %v31 = vld [vmem:[%s0 + $0x20] sm:$0xf]
  %v32 = vld [vmem:[%s0 + $0x24] sm:$0xf]
  %v33 = vld [vmem:[%s0 + $0x28] sm:$0xf]
  %v34 = vld [vmem:[%s0 + $0x2c] sm:$0xf]
  %v35 = vld [vmem:[%s0 + $0x30] sm:$0xf]
  %v36 = vld [vmem:[%s0 + $0x34] sm:$0xf]
  %v37 = vld [vmem:[%s0 + $0x38] sm:$0xf]
  %v38 = vld [vmem:[%s0 + $0x3c] sm:$0xf]
  %v39 = vunpack.c.l.bf16 %v23
  %v40 = vunpack.c.l.bf16 %v24
  %v41 = vunpack.c.l.bf16 %v25
  %v42 = vunpack.c.l.bf16 %v26
  %v43 = vunpack.c.l.bf16 %v27
  %v44 = vunpack.c.l.bf16 %v28
  %v45 = vunpack.c.l.bf16 %v29
  %v46 = vunpack.c.l.bf16 %v30
  %v47 = vunpack.c.l.bf16 %v31
  %v48 = vunpack.c.l.bf16 %v32
  %v49 = vunpack.c.l.bf16 %v33
  %v50 = vunpack.c.l.bf16 %v34
  %v51 = vunpack.c.l.bf16 %v35
  %v52 = vunpack.c.l.bf16 %v36
  %v53 = vunpack.c.l.bf16 %v37
  %v54 = vunpack.c.l.bf16 %v38
  %v55 = vld [vmem:[%s1] sm:$0x1]
  %v57 = vlaneseq
  %v58 = vshrl.u32 %v57, 7
  %v59 = vsub.s32 0, %v58
  %v60 = vrot.slane %v55, %v59
  %v62 = vmul.f32 %v39, %v60
  %v63 = vmul.f32 %v40, %v60
  %v64 = vmul.f32 %v41, %v60
  %v65 = vmul.f32 %v42, %v60
  %v66 = vmul.f32 %v43, %v60
  %v67 = vmul.f32 %v44, %v60
  %v68 = vmul.f32 %v45, %v60
  %v69 = vmul.f32 %v46, %v60
  %v70 = vmul.f32 %v47, %v60
  %v71 = vmul.f32 %v48, %v60
  %v72 = vmul.f32 %v49, %v60
  %v73 = vmul.f32 %v50, %v60
  %v74 = vmul.f32 %v51, %v60
  %v75 = vmul.f32 %v52, %v60
  %v76 = vmul.f32 %v53, %v60
  %v77 = vmul.f32 %v54, %v60
  %v78 = vld [vmem:[%s2] sm:$0x1]
  %v80 = vlaneseq
  %v81 = vshrl.u32 %v80, 7
  %v82 = vsub.s32 0, %v81
  %v83 = vrot.slane %v78, %v82
  %v85 = vadd.f32 %v62, %v83
  %v86 = vadd.f32 %v63, %v83
  %v87 = vadd.f32 %v64, %v83
  %v88 = vadd.f32 %v65, %v83
  %v89 = vadd.f32 %v66, %v83
  %v90 = vadd.f32 %v67, %v83
  %v91 = vadd.f32 %v68, %v83
  %v92 = vadd.f32 %v69, %v83
  %v93 = vadd.f32 %v70, %v83
  %v94 = vadd.f32 %v71, %v83
  %v95 = vadd.f32 %v72, %v83
  %v96 = vadd.f32 %v73, %v83
  %v97 = vadd.f32 %v74, %v83
  %v98 = vadd.f32 %v75, %v83
  %v99 = vadd.f32 %v76, %v83
  %v100 = vadd.f32 %v77, %v83
  %v101 = vld [vmem:[%s3] sm:$0xf]
  %v102 = vld [vmem:[%s3 + $0x4] sm:$0xf]
  %v103 = vld [vmem:[%s3 + $0x8] sm:$0xf]
  %v104 = vld [vmem:[%s3 + $0xc] sm:$0xf]
  %v105 = vld [vmem:[%s3 + $0x10] sm:$0xf]
  %v106 = vld [vmem:[%s3 + $0x14] sm:$0xf]
  %v107 = vld [vmem:[%s3 + $0x18] sm:$0xf]
  %v108 = vld [vmem:[%s3 + $0x1c] sm:$0xf]
  %v109 = vld [vmem:[%s3 + $0x20] sm:$0xf]
  %v110 = vld [vmem:[%s3 + $0x24] sm:$0xf]
  %v111 = vld [vmem:[%s3 + $0x28] sm:$0xf]
  %v112 = vld [vmem:[%s3 + $0x2c] sm:$0xf]
  %v113 = vld [vmem:[%s3 + $0x30] sm:$0xf]
  %v114 = vld [vmem:[%s3 + $0x34] sm:$0xf]
  %v115 = vld [vmem:[%s3 + $0x38] sm:$0xf]
  %v116 = vld [vmem:[%s3 + $0x3c] sm:$0xf]
  %v117 = vunpack.c.l.bf16 %v101
  %v118 = vunpack.c.l.bf16 %v102
  %v119 = vunpack.c.l.bf16 %v103
  %v120 = vunpack.c.l.bf16 %v104
  %v121 = vunpack.c.l.bf16 %v105
  %v122 = vunpack.c.l.bf16 %v106
  %v123 = vunpack.c.l.bf16 %v107
  %v124 = vunpack.c.l.bf16 %v108
  %v125 = vunpack.c.l.bf16 %v109
  %v126 = vunpack.c.l.bf16 %v110
  %v127 = vunpack.c.l.bf16 %v111
  %v128 = vunpack.c.l.bf16 %v112
  %v129 = vunpack.c.l.bf16 %v113
  %v130 = vunpack.c.l.bf16 %v114
  %v131 = vunpack.c.l.bf16 %v115
  %v132 = vunpack.c.l.bf16 %v116
  %v133 = vld [vmem:[%s4] sm:$0x1]
  %v135 = vlaneseq
  %v136 = vshrl.u32 %v135, 7
  %v137 = vsub.s32 0, %v136
  %v138 = vrot.slane %v133, %v137
  %v140 = vmul.f32 %v117, %v138
  %v141 = vmul.f32 %v118, %v138
  %v142 = vmul.f32 %v119, %v138
  %v143 = vmul.f32 %v120, %v138
  %v144 = vmul.f32 %v121, %v138
  %v145 = vmul.f32 %v122, %v138
  %v146 = vmul.f32 %v123, %v138
  %v147 = vmul.f32 %v124, %v138
  %v148 = vmul.f32 %v125, %v138
  %v149 = vmul.f32 %v126, %v138
  %v150 = vmul.f32 %v127, %v138
  %v151 = vmul.f32 %v128, %v138
  %v152 = vmul.f32 %v129, %v138
  %v153 = vmul.f32 %v130, %v138
  %v154 = vmul.f32 %v131, %v138
  %v155 = vmul.f32 %v132, %v138
  %v156 = vld [vmem:[%s5] sm:$0x1]
  %v158 = vlaneseq
  %v159 = vshrl.u32 %v158, 7
  %v160 = vsub.s32 0, %v159
  %v161 = vrot.slane %v156, %v160
  %v163 = vadd.f32 %v140, %v161
  %v164 = vadd.f32 %v141, %v161
  %v165 = vadd.f32 %v142, %v161
  %v166 = vadd.f32 %v143, %v161
  %v167 = vadd.f32 %v144, %v161
  %v168 = vadd.f32 %v145, %v161
  %v169 = vadd.f32 %v146, %v161
  %v170 = vadd.f32 %v147, %v161
  %v171 = vadd.f32 %v148, %v161
  %v172 = vadd.f32 %v149, %v161
  %v173 = vadd.f32 %v150, %v161
  %v174 = vadd.f32 %v151, %v161
  %v175 = vadd.f32 %v152, %v161
  %v176 = vadd.f32 %v153, %v161
  %v177 = vadd.f32 %v154, %v161
  %v178 = vadd.f32 %v155, %v161
  %v179 = vadd.f32 %v85, %v163
  %v180 = vadd.f32 %v86, %v164
  %v181 = vadd.f32 %v87, %v165
  %v182 = vadd.f32 %v88, %v166
  %v183 = vadd.f32 %v89, %v167
  %v184 = vadd.f32 %v90, %v168
  %v185 = vadd.f32 %v91, %v169
  %v186 = vadd.f32 %v92, %v170
  %v187 = vadd.f32 %v93, %v171
  %v188 = vadd.f32 %v94, %v172
  %v189 = vadd.f32 %v95, %v173
  %v190 = vadd.f32 %v96, %v174
  %v191 = vadd.f32 %v97, %v175
  %v192 = vadd.f32 %v98, %v176
  %v193 = vadd.f32 %v99, %v177
  %v194 = vadd.f32 %v100, %v178
  %v195 = vmax.f32 %v179, 0.0
  %v196 = vmax.f32 %v180, 0.0
  %v197 = vmax.f32 %v181, 0.0
  %v198 = vmax.f32 %v182, 0.0
  %v199 = vmax.f32 %v183, 0.0
  %v200 = vmax.f32 %v184, 0.0
  %v201 = vmax.f32 %v185, 0.0
  %v202 = vmax.f32 %v186, 0.0
  %v203 = vmax.f32 %v187, 0.0
  %v204 = vmax.f32 %v188, 0.0
  %v205 = vmax.f32 %v189, 0.0
  %v206 = vmax.f32 %v190, 0.0
  %v207 = vmax.f32 %v191, 0.0
  %v208 = vmax.f32 %v192, 0.0
  %v209 = vmax.f32 %v193, 0.0
  %v210 = vmax.f32 %v194, 0.0
  %211 = vst [vmem:[%s6] sm:$0xff] %v195
  %212 = vst [vmem:[%s6 + $0x8] sm:$0xff] %v196
  %213 = vst [vmem:[%s6 + $0x10] sm:$0xff] %v197
  %214 = vst [vmem:[%s6 + $0x18] sm:$0xff] %v198
  %215 = vst [vmem:[%s6 + $0x20] sm:$0xff] %v199
  %216 = vst [vmem:[%s6 + $0x28] sm:$0xff] %v200
  %217 = vst [vmem:[%s6 + $0x30] sm:$0xff] %v201
  %218 = vst [vmem:[%s6 + $0x38] sm:$0xff] %v202
  %219 = vst [vmem:[%s6 + $0x40] sm:$0xff] %v203
  %220 = vst [vmem:[%s6 + $0x48] sm:$0xff] %v204
  %221 = vst [vmem:[%s6 + $0x50] sm:$0xff] %v205
  %222 = vst [vmem:[%s6 + $0x58] sm:$0xff] %v206
  %223 = vst [vmem:[%s6 + $0x60] sm:$0xff] %v207
  %224 = vst [vmem:[%s6 + $0x68] sm:$0xff] %v208
  %225 = vst [vmem:[%s6 + $0x70] sm:$0xff] %v209
  %226 = vst [vmem:[%s6 + $0x78] sm:$0xff] %v210
  // Predicated region
  $region26: #{resnet_layer_forward.9} parent=0 // pred_check
    _
  $region27: #{resnet_layer_forward.9} parent=0 // pred_check_branch
    %228 = sbr.rel (0) target = $region29
  $region28: #{resnet_layer_forward.9} parent=0 // pred_region
    _
  $region29: #{resnet_layer_forward.9} parent=0 // pred_fallthru
    _
  // Predicated region
  $region30: #{resnet_layer_forward.9} parent=0 // pred_check
    _
  $region31: #{resnet_layer_forward.9} parent=0 // pred_check_branch
    %230 = sbr.rel (0) target = $region33
  $region32: #{resnet_layer_forward.9} parent=0 // pred_region
    _
  $region33: #{resnet_layer_forward.9} parent=0 // pred_fallthru
    _

// kernel: resnet_layer_forward.7
$region0: #{resnet_layer_forward.7}
  #allocation0 [shape = 'u32[]', space=smem, size = 0x4, offset = 0x4, fixed_abs, tag = 'smem constant byte address 0x4 - core index']
  #allocation1 [shape = 'u32[144,128]{1,0:T(1,128)}', space=vmem, size = 0x12000, scoped, tag = 'internal scratch']
  %s0 = inlined_call_operand.vmem [shape: bf16[2,10,10,128], index: 0, kind: input, shape index: {}]
  %s1 = inlined_call_operand.vmem [shape: bf16[9,128,128], index: 1, kind: input, shape index: {}]
  %s2 = inlined_call_operand.vmem [shape: bf16[2,8,8,128], index: 2, kind: output, shape index: {0}]
  %s3 = inlined_call_operand.vmem [shape: f32[1,1,128], index: 3, kind: output, shape index: {1}]
  %s4 = inlined_call_operand.vmem [shape: f32[1,1,128], index: 4, kind: output, shape index: {2}]
  %5 = xla_tuple %s2, %s3, %s4
  %s6 = sld [smem:[#allocation0]]
  $region34: #{resnet_layer_forward.7} parent=0
    _
  %s8 = ssub.s32 1, %s6
  %s9 = scalar_select 0, %s8, %s6
  // Predicated region
  $region2: #{resnet_layer_forward.7} parent=0 // pred_check
    _
  $region3: #{resnet_layer_forward.7} parent=0 // pred_check_branch
    %11 = sbr.rel (0) target = $region5
  $region4: #{resnet_layer_forward.7} parent=0 // pred_region
    _
  $region5: #{resnet_layer_forward.7} parent=0 // pred_fallthru
    _
  // Predicated region
  $region6: #{resnet_layer_forward.7} parent=0 // pred_check
    _
  $region7: #{resnet_layer_forward.7} parent=0 // pred_check_branch
    %13 = sbr.rel (0) target = $region9
  $region8: #{resnet_layer_forward.7} parent=0 // pred_region
    _
  $region9: #{resnet_layer_forward.7} parent=0 // pred_fallthru
    _
  %v15 = vld [vmem:[%s0] sm:$0xf]
  %v16 = vld [vmem:[%s0 + $0x8] sm:$0xf]
  %v17 = vld [vmem:[%s0 + $0x10] sm:$0xf]
  %v18 = vld [vmem:[%s0 + $0x18] sm:$0xf]
  %v19 = vld [vmem:[%s0 + $0x20] sm:$0xf]
  %v20 = vld [vmem:[%s0 + $0x28] sm:$0xf]
  %v21 = vld [vmem:[%s0 + $0x30] sm:$0xf]
  %v22 = vld [vmem:[%s0 + $0x38] sm:$0xf]
  %v23 = vld [vmem:[%s0 + $0x50] sm:$0xf]
  %v24 = vld [vmem:[%s0 + $0x58] sm:$0xf]
  %v25 = vld [vmem:[%s0 + $0x60] sm:$0xf]
  %v26 = vld [vmem:[%s0 + $0x68] sm:$0xf]
  %v27 = vld [vmem:[%s0 + $0x70] sm:$0xf]
  %v28 = vld [vmem:[%s0 + $0x78] sm:$0xf]
  %v29 = vld [vmem:[%s0 + $0x80] sm:$0xf]
  %v30 = vld [vmem:[%s0 + $0x88] sm:$0xf]
  %v31 = vunpack.c.l.bf16 %v15
  %v32 = vunpack.c.l.bf16 %v16
  %v33 = vunpack.c.l.bf16 %v17
  %v34 = vunpack.c.l.bf16 %v18
  %v35 = vunpack.c.l.bf16 %v19
  %v36 = vunpack.c.l.bf16 %v20
  %v37 = vunpack.c.l.bf16 %v21
  %v38 = vunpack.c.l.bf16 %v22
  %v39 = vunpack.c.l.bf16 %v23
  %v40 = vunpack.c.l.bf16 %v24
  %v41 = vunpack.c.l.bf16 %v25
  %v42 = vunpack.c.l.bf16 %v26
  %v43 = vunpack.c.l.bf16 %v27
  %v44 = vunpack.c.l.bf16 %v28
  %v45 = vunpack.c.l.bf16 %v29
  %v46 = vunpack.c.l.bf16 %v30
  %v47 = vpack.c.bf16 %v32, %v31
  %v48 = vpack.c.bf16 %v34, %v33
  %v49 = vpack.c.bf16 %v36, %v35
  %v50 = vpack.c.bf16 %v38, %v37
  %v51 = vpack.c.bf16 %v40, %v39
  %v52 = vpack.c.bf16 %v42, %v41
  %v53 = vpack.c.bf16 %v44, %v43
  %v54 = vpack.c.bf16 %v46, %v45
  %v55 = vld [vmem:[%s1] sm:$0xf]
  %v56 = vld [vmem:[%s1 + $0x4] sm:$0xf]
  %v57 = vld [vmem:[%s1 + $0x8] sm:$0xf]
  %v58 = vld [vmem:[%s1 + $0xc] sm:$0xf]
  %v59 = vld [vmem:[%s1 + $0x10] sm:$0xf]
  %v60 = vld [vmem:[%s1 + $0x14] sm:$0xf]
  %v61 = vld [vmem:[%s1 + $0x18] sm:$0xf]
  %v62 = vld [vmem:[%s1 + $0x1c] sm:$0xf]
  %v63 = vld [vmem:[%s1 + $0x20] sm:$0xf]
  %v64 = vld [vmem:[%s1 + $0x24] sm:$0xf]
  %v65 = vld [vmem:[%s1 + $0x28] sm:$0xf]
  %v66 = vld [vmem:[%s1 + $0x2c] sm:$0xf]
  %v67 = vld [vmem:[%s1 + $0x30] sm:$0xf]
  %v68 = vld [vmem:[%s1 + $0x34] sm:$0xf]
  %v69 = vld [vmem:[%s1 + $0x38] sm:$0xf]
  %v70 = vld [vmem:[%s1 + $0x3c] sm:$0xf]
  %v71 = vld [vmem:[%s0 + $0x4] sm:$0x1]
  %v72 = vld [vmem:[%s0 + $0xc] sm:$0x1]
  %v73 = vld [vmem:[%s0 + $0x14] sm:$0x1]
  %v74 = vld [vmem:[%s0 + $0x1c] sm:$0x1]
  %v75 = vld [vmem:[%s0 + $0x24] sm:$0x1]
  %v76 = vld [vmem:[%s0 + $0x2c] sm:$0x1]
  %v77 = vld [vmem:[%s0 + $0x34] sm:$0x1]
  %v78 = vld [vmem:[%s0 + $0x3c] sm:$0x1]
  %v79 = vld [vmem:[%s0 + $0x54] sm:$0x1]
  %v80 = vld [vmem:[%s0 + $0x5c] sm:$0x1]
  %v81 = vld [vmem:[%s0 + $0x64] sm:$0x1]
  %v82 = vld [vmem:[%s0 + $0x6c] sm:$0x1]
  %v83 = vld [vmem:[%s0 + $0x74] sm:$0x1]
  %v84 = vld [vmem:[%s0 + $0x7c] sm:$0x1]
  %v85 = vld [vmem:[%s0 + $0x84] sm:$0x1]
  %v86 = vld [vmem:[%s0 + $0x8c] sm:$0x1]
  %v87 = vunpack.c.l.bf16 %v71
  %v88 = vunpack.c.l.bf16 %v72
  %v89 = vunpack.c.l.bf16 %v73
  %v90 = vunpack.c.l.bf16 %v74
  %v91 = vunpack.c.l.bf16 %v75
  %v92 = vunpack.c.l.bf16 %v76
  %v93 = vunpack.c.l.bf16 %v77
  %v94 = vunpack.c.l.bf16 %v78
  %v95 = vunpack.c.l.bf16 %v79
  %v96 = vunpack.c.l.bf16 %v80
  %v97 = vunpack.c.l.bf16 %v81
  %v98 = vunpack.c.l.bf16 %v82
  %v99 = vunpack.c.l.bf16 %v83
  %v100 = vunpack.c.l.bf16 %v84
  %v101 = vunpack.c.l.bf16 %v85
  %v102 = vunpack.c.l.bf16 %v86
  %vm135 = vcmask 1046528
  %v136 = vrot.slane %v31, 1
  %v137 = vrot.slane %v87, 1
  %v138 = vsel %vm135, %v136, %v137
  %v139 = vrot.slane %v32, 1
  %v140 = vrot.slane %v88, 1
  %v141 = vsel %vm135, %v139, %v140
  %v142 = vrot.slane %v33, 1
  %v143 = vrot.slane %v89, 1
  %v144 = vsel %vm135, %v142, %v143
  %v145 = vrot.slane %v34, 1
  %v146 = vrot.slane %v90, 1
  %v147 = vsel %vm135, %v145, %v146
  %v148 = vrot.slane %v35, 1
  %v149 = vrot.slane %v91, 1
  %v150 = vsel %vm135, %v148, %v149
  %v151 = vrot.slane %v36, 1
  %v152 = vrot.slane %v92, 1
  %v153 = vsel %vm135, %v151, %v152
  %v154 = vrot.slane %v37, 1
  %v155 = vrot.slane %v93, 1
  %v156 = vsel %vm135, %v154, %v155
  %v157 = vrot.slane %v38, 1
  %v158 = vrot.slane %v94, 1
  %v159 = vsel %vm135, %v157, %v158
  %v160 = vrot.slane %v39, 1
  %v161 = vrot.slane %v95, 1
  %v162 = vsel %vm135, %v160, %v161
  %v163 = vrot.slane %v40, 1
  %v164 = vrot.slane %v96, 1
  %v165 = vsel %vm135, %v163, %v164
  %v166 = vrot.slane %v41, 1
  %v167 = vrot.slane %v97, 1
  %v168 = vsel %vm135, %v166, %v167
  %v169 = vrot.slane %v42, 1
  %v170 = vrot.slane %v98, 1
  %v171 = vsel %vm135, %v169, %v170
  %v172 = vrot.slane %v43, 1
  %v173 = vrot.slane %v99, 1
  %v174 = vsel %vm135, %v172, %v173
  %v175 = vrot.slane %v44, 1
  %v176 = vrot.slane %v100, 1
  %v177 = vsel %vm135, %v175, %v176
  %v178 = vrot.slane %v45, 1
  %v179 = vrot.slane %v101, 1
  %v180 = vsel %vm135, %v178, %v179
  %v181 = vrot.slane %v46, 1
  %v182 = vrot.slane %v102, 1
  %v183 = vsel %vm135, %v181, %v182
  %v200 = vpack.c.bf16 %v141, %v138
  %v201 = vpack.c.bf16 %v147, %v144
  %v202 = vpack.c.bf16 %v153, %v150
  %v203 = vpack.c.bf16 %v159, %v156
  %v204 = vpack.c.bf16 %v165, %v162
  %v205 = vpack.c.bf16 %v171, %v168
  %v206 = vpack.c.bf16 %v177, %v174
  %v207 = vpack.c.bf16 %v183, %v180
  %s208 = scalar_lea.vmem %s1, 64
  %v209 = vld [vmem:[%s208] sm:$0xf]
  %v210 = vld [vmem:[%s208 + $0x4] sm:$0xf]
  %v211 = vld [vmem:[%s208 + $0x8] sm:$0xf]
  %v212 = vld [vmem:[%s208 + $0xc] sm:$0xf]
  %v213 = vld [vmem:[%s208 + $0x10] sm:$0xf]
  %v214 = vld [vmem:[%s208 + $0x14] sm:$0xf]
  %v215 = vld [vmem:[%s208 + $0x18] sm:$0xf]
  %v216 = vld [vmem:[%s208 + $0x1c] sm:$0xf]
  %v217 = vld [vmem:[%s208 + $0x20] sm:$0xf]
  %v218 = vld [vmem:[%s208 + $0x24] sm:$0xf]
  %v219 = vld [vmem:[%s208 + $0x28] sm:$0xf]
  %v220 = vld [vmem:[%s208 + $0x2c] sm:$0xf]
  %v221 = vld [vmem:[%s208 + $0x30] sm:$0xf]
  %v222 = vld [vmem:[%s208 + $0x34] sm:$0xf]
  %v223 = vld [vmem:[%s208 + $0x38] sm:$0xf]
  %v224 = vld [vmem:[%s208 + $0x3c] sm:$0xf]
  %v241 = vunpack.c.l.b16 %v209
  %v242 = vunpack.c.l.b16 %v210
  %v243 = vunpack.c.l.b16 %v211
  %v244 = vunpack.c.l.b16 %v212
  %v245 = vunpack.c.l.b16 %v213
  %v246 = vunpack.c.l.b16 %v214
  %v247 = vunpack.c.l.b16 %v215
  %v248 = vunpack.c.l.b16 %v216
  %v249 = vunpack.c.l.b16 %v217
  %v250 = vunpack.c.l.b16 %v218
  %v251 = vunpack.c.l.b16 %v219
  %v252 = vunpack.c.l.b16 %v220
  %v253 = vunpack.c.l.b16 %v221
  %v254 = vunpack.c.l.b16 %v222
  %v255 = vunpack.c.l.b16 %v223
  %v256 = vunpack.c.l.b16 %v224
  %v257 = vpack.c.b16 %v242, %v241
  %v258 = vpack.c.b16 %v244, %v243
  %v259 = vpack.c.b16 %v246, %v245
  %v260 = vpack.c.b16 %v248, %v247
  %v261 = vpack.c.b16 %v250, %v249
  %v262 = vpack.c.b16 %v252, %v251
  %v263 = vpack.c.b16 %v254, %v253
  %v264 = vpack.c.b16 %v256, %v255
  %273 = vmatprep.subr.bf16.mxu0 0
  %274 = vmatpush1.bf16.msra.mxu0 %v257
  %275 = vmatprep.subr.bf16.mxu0 0
  %276 = vmatpush1.bf16.msra.mxu0 %v258
  %277 = vmatprep.subr.bf16.mxu0 0
  %278 = vmatpush1.bf16.msra.mxu0 %v259
  %279 = vmatprep.subr.bf16.mxu0 0
  %280 = vmatpush1.bf16.msra.mxu0 %v260
  %281 = vmatprep.subr.bf16.mxu0 0
  %282 = vmatpush1.bf16.msra.mxu0 %v261
  %283 = vmatprep.subr.bf16.mxu0 0
  %284 = vmatpush1.bf16.msra.mxu0 %v262
  %285 = vmatprep.subr.bf16.mxu0 0
  %286 = vmatpush1.bf16.msra.mxu0 %v263
  %287 = vmatprep.subr.bf16.mxu0 0
  %288 = vmatpush1.bf16.msra.mxu0 %v264
  %289 = vmatprep.subr.bf16.mxu0 0
  %290 = vmatpush1.bf16.msra.mxu0 0
  %291 = vmatprep.subr.bf16.mxu0 0
  %292 = vmatpush1.bf16.msra.mxu0 0
  %293 = vmatprep.subr.bf16.mxu0 0
  %294 = vmatpush1.bf16.msra.mxu0 0
  %295 = vmatprep.subr.bf16.mxu0 0
  %296 = vmatpush1.bf16.msra.mxu0 0
  %297 = vmatprep.subr.bf16.mxu0 0
  %298 = vmatpush1.bf16.msra.mxu0 0
  %299 = vmatprep.subr.bf16.mxu0 0
  %300 = vmatpush1.bf16.msra.mxu0 0
  %301 = vmatprep.subr.bf16.mxu0 0
  %302 = vmatpush1.bf16.msra.mxu0 0
  %303 = vmatprep.subr.bf16.mxu0 0
  %304 = vmatpush1.bf16.msra.mxu0 0
  %305 = vmatprep.mubr.bf16.mxu0 0
  %306 = vmatmul.mubr.bf16.gmra.mrb[0].mxu0 %v200
  %v307 = vpop.f32.mrb[0].mxu0
  %v308 = vadd.f32 0.0, %v307
  %v309 = vpop.f32.mrb[0].mxu0
  %v310 = vpop.f32.mrb[0].mxu0
  %v311 = vadd.f32 0.0, %v310
  %v312 = vpop.f32.mrb[0].mxu0
  %313 = vmatprep.mubr.bf16.mxu0 0
  %314 = vmatmul.mubr.bf16.gmra.mrb[0].mxu0 %v201
  %v315 = vpop.f32.mrb[0].mxu0
  %v316 = vadd.f32 0.0, %v315
  %v317 = vpop.f32.mrb[0].mxu0
  %v318 = vpop.f32.mrb[0].mxu0
  %v319 = vadd.f32 0.0, %v318
  %v320 = vpop.f32.mrb[0].mxu0
  %321 = vmatprep.mubr.bf16.mxu0 0
  %322 = vmatmul.mubr.bf16.gmra.mrb[0].mxu0 %v202
  %v323 = vpop.f32.mrb[0].mxu0
  %v324 = vadd.f32 0.0, %v323
  %v325 = vpop.f32.mrb[0].mxu0
  %v326 = vpop.f32.mrb[0].mxu0
  %v327 = vadd.f32 0.0, %v326
  %v328 = vpop.f32.mrb[0].mxu0
  %329 = vmatprep.mubr.bf16.mxu0 0
  %330 = vmatmul.mubr.bf16.gmra.mrb[0].mxu0 %v203
  %v331 = vpop.f32.mrb[0].mxu0
  %v332 = vadd.f32 0.0, %v331
  %v333 = vpop.f32.mrb[0].mxu0
  %v334 = vpop.f32.mrb[0].mxu0
  %v335 = vadd.f32 0.0, %v334
  %v336 = vpop.f32.mrb[0].mxu0
  %337 = vmatprep.mubr.bf16.mxu0 0
  %338 = vmatmul.mubr.bf16.gmra.mrb[0].mxu0 %v204
  %v339 = vpop.f32.mrb[0].mxu0
  %v340 = vadd.f32 0.0, %v339
  %v341 = vpop.f32.mrb[0].mxu0
  %v342 = vpop.f32.mrb[0].mxu0
  %v343 = vadd.f32 0.0, %v342
  %v344 = vpop.f32.mrb[0].mxu0
  %345 = vmatprep.mubr.bf16.mxu0 0
  %346 = vmatmul.mubr.bf16.gmra.mrb[0].mxu0 %v205
  %v347 = vpop.f32.mrb[0].mxu0
  %v348 = vadd.f32 0.0, %v347
  %v349 = vpop.f32.mrb[0].mxu0
  %v350 = vpop.f32.mrb[0].mxu0
  %v351 = vadd.f32 0.0, %v350
  %v352 = vpop.f32.mrb[0].mxu0
  %353 = vmatprep.mubr.bf16.mxu0 0
  %354 = vmatmul.mubr.bf16.gmra.mrb[0].mxu0 %v206
  %v355 = vpop.f32.mrb[0].mxu0
  %v356 = vadd.f32 0.0, %v355
  %v357 = vpop.f32.mrb[0].mxu0
  %v358 = vpop.f32.mrb[0].mxu0
  %v359 = vadd.f32 0.0, %v358
  %v360 = vpop.f32.mrb[0].mxu0
  %361 = vmatprep.mubr.bf16.mxu0 0
  %362 = vmatmul.mubr.bf16.gmra.mrb[0].mxu0 %v207
  %v363 = vpop.f32.mrb[0].mxu0
  %v364 = vadd.f32 0.0, %v363
  %v365 = vpop.f32.mrb[0].mxu0
  %v366 = vpop.f32.mrb[0].mxu0
  %v367 = vadd.f32 0.0, %v366
  %v368 = vpop.f32.mrb[0].mxu0
  %369 = vdwg.mxu0
  %v386 = vunpack.c.l.b16 %v55
  %v387 = vunpack.c.l.b16 %v56
  %v388 = vunpack.c.l.b16 %v57
  %v389 = vunpack.c.l.b16 %v58
  %v390 = vunpack.c.l.b16 %v59
  %v391 = vunpack.c.l.b16 %v60
  %v392 = vunpack.c.l.b16 %v61
  %v393 = vunpack.c.l.b16 %v62
  %v394 = vunpack.c.l.b16 %v63
  %v395 = vunpack.c.l.b16 %v64
  %v396 = vunpack.c.l.b16 %v65
  %v397 = vunpack.c.l.b16 %v66
  %v398 = vunpack.c.l.b16 %v67
  %v399 = vunpack.c.l.b16 %v68
  %v400 = vunpack.c.l.b16 %v69
  %v401 = vunpack.c.l.b16 %v70
  %v402 = vpack.c.b16 %v387, %v386
  %v403 = vpack.c.b16 %v389, %v388
  %v404 = vpack.c.b16 %v391, %v390
  %v405 = vpack.c.b16 %v393, %v392
  %v406 = vpack.c.b16 %v395, %v394
  %v407 = vpack.c.b16 %v397, %v396
  %v408 = vpack.c.b16 %v399, %v398
  %v409 = vpack.c.b16 %v401, %v400
  %418 = vmatprep.subr.bf16.mxu0 0
  %419 = vmatpush1.bf16.msra.mxu0 %v402
  %420 = vmatprep.subr.bf16.mxu0 0
  %421 = vmatpush1.bf16.msra.mxu0 %v403
  %422 = vmatprep.subr.bf16.mxu0 0
  %423 = vmatpush1.bf16.msra.mxu0 %v404
  %424 = vmatprep.subr.bf16.mxu0 0
  %425 = vmatpush1.bf16.msra.mxu0 %v405
  %426 = vmatprep.subr.bf16.mxu0 0
  %427 = vmatpush1.bf16.msra.mxu0 %v406
  %428 = vmatprep.subr.bf16.mxu0 0
  %429 = vmatpush1.bf16.msra.mxu0 %v407
  %430 = vmatprep.subr.bf16.mxu0 0
  %431 = vmatpush1.bf16.msra.mxu0 %v408
  %432 = vmatprep.subr.bf16.mxu0 0
  %433 = vmatpush1.bf16.msra.mxu0 %v409
  %434 = vmatprep.subr.bf16.mxu0 0
  %435 = vmatpush1.bf16.msra.mxu0 0
  %436 = vmatprep.subr.bf16.mxu0 0
  %437 = vmatpush1.bf16.msra.mxu0 0
  %438 = vmatprep.subr.bf16.mxu0 0
  %439 = vmatpush1.bf16.msra.mxu0 0
  %440 = vmatprep.subr.bf16.mxu0 0
  %441 = vmatpush1.bf16.msra.mxu0 0
  %442 = vmatprep.subr.bf16.mxu0 0
  %443 = vmatpush1.bf16.msra.mxu0 0
  %444 = vmatprep.subr.bf16.mxu0 0
  %445 = vmatpush1.bf16.msra.mxu0 0
  %446 = vmatprep.subr.bf16.mxu0 0
  %447 = vmatpush1.bf16.msra.mxu0 0
  %448 = vmatprep.subr.bf16.mxu0 0
  %449 = vmatpush1.bf16.msra.mxu0 0
  %450 = vmatprep.mubr.bf16.mxu0 0
  %451 = vmatmul.mubr.bf16.gmra.mrb[0].mxu0 %v47
  %v452 = vpop.f32.mrb[0].mxu0
  %v453 = vadd.f32 %v308, %v452
  %v454 = vpop.f32.mrb[0].mxu0
  %v455 = vpop.f32.mrb[0].mxu0
  %v456 = vadd.f32 %v311, %v455
  %v457 = vpop.f32.mrb[0].mxu0
  %458 = vmatprep.mubr.bf16.mxu0 0
  %459 = vmatmul.mubr.bf16.gmra.mrb[0].mxu0 %v48
  %v460 = vpop.f32.mrb[0].mxu0
  %v461 = vadd.f32 %v316, %v460
  %v462 = vpop.f32.mrb[0].mxu0
  %v463 = vpop.f32.mrb[0].mxu0
  %v464 = vadd.f32 %v319, %v463
  %v465 = vpop.f32.mrb[0].mxu0
  %466 = vmatprep.mubr.bf16.mxu0 0
  %467 = vmatmul.mubr.bf16.gmra.mrb[0].mxu0 %v49
  %v468 = vpop.f32.mrb[0].mxu0
  %v469 = vadd.f32 %v324, %v468
  %v470 = vpop.f32.mrb[0].mxu0
  %v471 = vpop.f32.mrb[0].mxu0
  %v472 = vadd.f32 %v327, %v471
  %v473 = vpop.f32.mrb[0].mxu0
  %474 = vmatprep.mubr.bf16.mxu0 0
  %475 = vmatmul.mubr.bf16.gmra.mrb[0].mxu0 %v50
  %v476 = vpop.f32.mrb[0].mxu0
  %v477 = vadd.f32 %v332, %v476
  %v478 = vpop.f32.mrb[0].mxu0
  %v479 = vpop.f32.mrb[0].mxu0
  %v480 = vadd.f32 %v335, %v479
  %v481 = vpop.f32.mrb[0].mxu0
  %482 = vmatprep.mubr.bf16.mxu0 0
  %483 = vmatmul.mubr.bf16.gmra.mrb[0].mxu0 %v51
  %v484 = vpop.f32.mrb[0].mxu0
  %v485 = vadd.f32 %v340, %v484
  %v486 = vpop.f32.mrb[0].mxu0
  %v487 = vpop.f32.mrb[0].mxu0
  %v488 = vadd.f32 %v343, %v487
  %v489 = vpop.f32.mrb[0].mxu0
  %490 = vmatprep.mubr.bf16.mxu0 0
  %491 = vmatmul.mubr.bf16.gmra.mrb[0].mxu0 %v52
  %v492 = vpop.f32.mrb[0].mxu0
  %v493 = vadd.f32 %v348, %v492
  %v494 = vpop.f32.mrb[0].mxu0
  %v495 = vpop.f32.mrb[0].mxu0
  %v496 = vadd.f32 %v351, %v495
  %v497 = vpop.f32.mrb[0].mxu0
  %498 = vmatprep.mubr.bf16.mxu0 0
  %499 = vmatmul.mubr.bf16.gmra.mrb[0].mxu0 %v53
  %v500 = vpop.f32.mrb[0].mxu0
  %v501 = vadd.f32 %v356, %v500
  %v502 = vpop.f32.mrb[0].mxu0
  %v503 = vpop.f32.mrb[0].mxu0
  %v504 = vadd.f32 %v359, %v503
  %v505 = vpop.f32.mrb[0].mxu0
  %506 = vmatprep.mubr.bf16.mxu0 0
  %507 = vmatmul.mubr.bf16.gmra.mrb[0].mxu0 %v54
  %v508 = vpop.f32.mrb[0].mxu0
  %v509 = vadd.f32 %v364, %v508
  %v510 = vpop.f32.mrb[0].mxu0
  %v511 = vpop.f32.mrb[0].mxu0
  %v512 = vadd.f32 %v367, %v511
  %v513 = vpop.f32.mrb[0].mxu0
  %514 = vdwg.mxu0
  %v515 = vld [vmem:[%s0] sm:$0xe]
  %v516 = vld [vmem:[%s0 + $0x8] sm:$0xe]
  %v517 = vld [vmem:[%s0 + $0x10] sm:$0xe]
  %v518 = vld [vmem:[%s0 + $0x18] sm:$0xe]
  %v519 = vld [vmem:[%s0 + $0x20] sm:$0xe]
  %v520 = vld [vmem:[%s0 + $0x28] sm:$0xe]
  %v521 = vld [vmem:[%s0 + $0x30] sm:$0xe]
  %v522 = vld [vmem:[%s0 + $0x38] sm:$0xe]
  %v523 = vld [vmem:[%s0 + $0x50] sm:$0xe]
  %v524 = vld [vmem:[%s0 + $0x58] sm:$0xe]
  %v525 = vld [vmem:[%s0 + $0x60] sm:$0xe]
  %v526 = vld [vmem:[%s0 + $0x68] sm:$0xe]
  %v527 = vld [vmem:[%s0 + $0x70] sm:$0xe]
  %v528 = vld [vmem:[%s0 + $0x78] sm:$0xe]
  %v529 = vld [vmem:[%s0 + $0x80] sm:$0xe]
  %v530 = vld [vmem:[%s0 + $0x88] sm:$0xe]
  %v531 = vunpack.c.l.bf16 %v515
  %v532 = vunpack.c.l.bf16 %v516
  %v533 = vunpack.c.l.bf16 %v517
  %v534 = vunpack.c.l.bf16 %v518
  %v535 = vunpack.c.l.bf16 %v519
  %v536 = vunpack.c.l.bf16 %v520
  %v537 = vunpack.c.l.bf16 %v521
  %v538 = vunpack.c.l.bf16 %v522
  %v539 = vunpack.c.l.bf16 %v523
  %v540 = vunpack.c.l.bf16 %v524
  %v541 = vunpack.c.l.bf16 %v525
  %v542 = vunpack.c.l.bf16 %v526
  %v543 = vunpack.c.l.bf16 %v527
  %v544 = vunpack.c.l.bf16 %v528
  %v545 = vunpack.c.l.bf16 %v529
  %v546 = vunpack.c.l.bf16 %v530
  %vm563 = vcmask 1045504
  %v564 = vrot.slane %v531, 2
  %v565 = vrot.slane %v87, 2
  %v566 = vsel %vm563, %v564, %v565
  %v567 = vrot.slane %v532, 2
  %v568 = vrot.slane %v88, 2
  %v569 = vsel %vm563, %v567, %v568
  %v570 = vrot.slane %v533, 2
  %v571 = vrot.slane %v89, 2
  %v572 = vsel %vm563, %v570, %v571
  %v573 = vrot.slane %v534, 2
  %v574 = vrot.slane %v90, 2
  %v575 = vsel %vm563, %v573, %v574
  %v576 = vrot.slane %v535, 2
  %v577 = vrot.slane %v91, 2
  %v578 = vsel %vm563, %v576, %v577
  %v579 = vrot.slane %v536, 2
  %v580 = vrot.slane %v92, 2
  %v581 = vsel %vm563, %v579, %v580
  %v582 = vrot.slane %v537, 2
  %v583 = vrot.slane %v93, 2
  %v584 = vsel %vm563, %v582, %v583
  %v585 = vrot.slane %v538, 2
  %v586 = vrot.slane %v94, 2
  %v587 = vsel %vm563, %v585, %v586
  %v588 = vrot.slane %v539, 2
  %v589 = vrot.slane %v95, 2
  %v590 = vsel %vm563, %v588, %v589
  %v591 = vrot.slane %v540, 2
  %v592 = vrot.slane %v96, 2
  %v593 = vsel %vm563, %v591, %v592
  %v594 = vrot.slane %v541, 2
  %v595 = vrot.slane %v97, 2
  %v596 = vsel %vm563, %v594, %v595
  %v597 = vrot.slane %v542, 2
  %v598 = vrot.slane %v98, 2
  %v599 = vsel %vm563, %v597, %v598
  %v600 = vrot.slane %v543, 2
  %v601 = vrot.slane %v99, 2
  %v602 = vsel %vm563, %v600, %v601
  %v603 = vrot.slane %v544, 2
  %v604 = vrot.slane %v100, 2
  %v605 = vsel %vm563, %v603, %v604
  %v606 = vrot.slane %v545, 2
  %v607 = vrot.slane %v101, 2
  %v608 = vsel %vm563, %v606, %v607
  %v609 = vrot.slane %v546, 2
  %v610 = vrot.slane %v102, 2
  %v611 = vsel %vm563, %v609, %v610
  %v628 = vpack.c.bf16 %v569, %v566
  %v629 = vpack.c.bf16 %v575, %v572
  %v630 = vpack.c.bf16 %v581, %v578
  %v631 = vpack.c.bf16 %v587, %v584
  %v632 = vpack.c.bf16 %v593, %v590
  %v633 = vpack.c.bf16 %v599, %v596
  %v634 = vpack.c.bf16 %v605, %v602
  %v635 = vpack.c.bf16 %v611, %v608
  %s636 = scalar_lea.vmem %s1, 128
  %v637 = vld [vmem:[%s636] sm:$0xf]
  %v638 = vld [vmem:[%s636 + $0x4] sm:$0xf]
  %v639 = vld [vmem:[%s636 + $0x8] sm:$0xf]
  %v640 = vld [vmem:[%s636 + $0xc] sm:$0xf]
  %v641 = vld [vmem:[%s636 + $0x10] sm:$0xf]
  %v642 = vld [vmem:[%s636 + $0x14] sm:$0xf]
  %v643 = vld [vmem:[%s636 + $0x18] sm:$0xf]
  %v644 = vld [vmem:[%s636 + $0x1c] sm:$0xf]
  %v645 = vld [vmem:[%s636 + $0x20] sm:$0xf]
  %v646 = vld [vmem:[%s636 + $0x24] sm:$0xf]
  %v647 = vld [vmem:[%s636 + $0x28] sm:$0xf]
  %v648 = vld [vmem:[%s636 + $0x2c] sm:$0xf]
  %v649 = vld [vmem:[%s636 + $0x30] sm:$0xf]
  %v650 = vld [vmem:[%s636 + $0x34] sm:$0xf]
  %v651 = vld [vmem:[%s636 + $0x38] sm:$0xf]
  %v652 = vld [vmem:[%s636 + $0x3c] sm:$0xf]
  %v669 = vunpack.c.l.b16 %v637
  %v670 = vunpack.c.l.b16 %v638
  %v671 = vunpack.c.l.b16 %v639
  %v672 = vunpack.c.l.b16 %v640
  %v673 = vunpack.c.l.b16 %v641
  %v674 = vunpack.c.l.b16 %v642
  %v675 = vunpack.c.l.b16 %v643
  %v676 = vunpack.c.l.b16 %v644
  %v677 = vunpack.c.l.b16 %v645
  %v678 = vunpack.c.l.b16 %v646
  %v679 = vunpack.c.l.b16 %v647
  %v680 = vunpack.c.l.b16 %v648
  %v681 = vunpack.c.l.b16 %v649
  %v682 = vunpack.c.l.b16 %v650
  %v683 = vunpack.c.l.b16 %v651
  %v684 = vunpack.c.l.b16 %v652
  %v685 = vpack.c.b16 %v670, %v669
  %v686 = vpack.c.b16 %v672, %v671
  %v687 = vpack.c.b16 %v674, %v673
  %v688 = vpack.c.b16 %v676, %v675
  %v689 = vpack.c.b16 %v678, %v677
  %v690 = vpack.c.b16 %v680, %v679
  %v691 = vpack.c.b16 %v682, %v681
  %v692 = vpack.c.b16 %v684, %v683
  %701 = vmatprep.subr.bf16.mxu0 0
  %702 = vmatpush1.bf16.msra.mxu0 %v685
  %703 = vmatprep.subr.bf16.mxu0 0
  %704 = vmatpush1.bf16.msra.mxu0 %v686
  %705 = vmatprep.subr.bf16.mxu0 0
  %706 = vmatpush1.bf16.msra.mxu0 %v687
  %707 = vmatprep.subr.bf16.mxu0 0
  %708 = vmatpush1.bf16.msra.mxu0 %v688
  %709 = vmatprep.subr.bf16.mxu0 0
  %710 = vmatpush1.bf16.msra.mxu0 %v689
  %711 = vmatprep.subr.bf16.mxu0 0
  %712 = vmatpush1.bf16.msra.mxu0 %v690
  %713 = vmatprep.subr.bf16.mxu0 0
  %714 = vmatpush1.bf16.msra.mxu0 %v691
  %715 = vmatprep.subr.bf16.mxu0 0
  %716 = vmatpush1.bf16.msra.mxu0 %v692
  %717 = vmatprep.subr.bf16.mxu0 0
  %718 = vmatpush1.bf16.msra.mxu0 0
  %719 = vmatprep.subr.bf16.mxu0 0
  %720 = vmatpush1.bf16.msra.mxu0 0
  %721 = vmatprep.subr.bf16.mxu0 0
  %722 = vmatpush1.bf16.msra.mxu0 0
  %723 = vmatprep.subr.bf16.mxu0 0
  %724 = vmatpush1.bf16.msra.mxu0 0
  %725 = vmatprep.subr.bf16.mxu0 0
  %726 = vmatpush1.bf16.msra.mxu0 0
  %727 = vmatprep.subr.bf16.mxu0 0
  %728 = vmatpush1.bf16.msra.mxu0 0
  %729 = vmatprep.subr.bf16.mxu0 0
  %730 = vmatpush1.bf16.msra.mxu0 0
  %731 = vmatprep.subr.bf16.mxu0 0
  %732 = vmatpush1.bf16.msra.mxu0 0
  %733 = vmatprep.mubr.bf16.mxu0 0
  %734 = vmatmul.mubr.bf16.gmra.mrb[0].mxu0 %v628
  %v735 = vpop.f32.mrb[0].mxu0
  %v736 = vadd.f32 0.0, %v735
  %v737 = vpop.f32.mrb[0].mxu0
  %v738 = vpop.f32.mrb[0].mxu0
  %v739 = vadd.f32 0.0, %v738
  %v740 = vpop.f32.mrb[0].mxu0
  %741 = vmatprep.mubr.bf16.mxu0 0
  %742 = vmatmul.mubr.bf16.gmra.mrb[0].mxu0 %v629
  %v743 = vpop.f32.mrb[0].mxu0
  %v744 = vadd.f32 0.0, %v743
  %v745 = vpop.f32.mrb[0].mxu0
  %v746 = vpop.f32.mrb[0].mxu0
  %v747 = vadd.f32 0.0, %v746
  %v748 = vpop.f32.mrb[0].mxu0
  %749 = vmatprep.mubr.bf16.mxu0 0
  %750 = vmatmul.mubr.bf16.gmra.mrb[0].mxu0 %v630
  %v751 = vpop.f32.mrb[0].mxu0
  %v752 = vadd.f32 0.0, %v751
  %v753 = vpop.f32.mrb[0].mxu0
  %v754 = vpop.f32.mrb[0].mxu0
  %v755 = vadd.f32 0.0, %v754
  %v756 = vpop.f32.mrb[0].mxu0
  %757 = vmatprep.mubr.bf16.mxu0 0
  %758 = vmatmul.mubr.bf16.gmra.mrb[0].mxu0 %v631
  %v759 = vpop.f32.mrb[0].mxu0
  %v760 = vadd.f32 0.0, %v759
  %v761 = vpop.f32.mrb[0].mxu0
  %v762 = vpop.f32.mrb[0].mxu0
  %v763 = vadd.f32 0.0, %v762
  %v764 = vpop.f32.mrb[0].mxu0
  %765 = vmatprep.mubr.bf16.mxu0 0
  %766 = vmatmul.mubr.bf16.gmra.mrb[0].mxu0 %v632
  %v767 = vpop.f32.mrb[0].mxu0
  %v768 = vadd.f32 0.0, %v767
  %v769 = vpop.f32.mrb[0].mxu0
  %v770 = vpop.f32.mrb[0].mxu0
  %v771 = vadd.f32 0.0, %v770
  %v772 = vpop.f32.mrb[0].mxu0
  %773 = vmatprep.mubr.bf16.mxu0 0
  %774 = vmatmul.mubr.bf16.gmra.mrb[0].mxu0 %v633
  %v775 = vpop.f32.mrb[0].mxu0
  %v776 = vadd.f32 0.0, %v775
  %v777 = vpop.f32.mrb[0].mxu0
  %v778 = vpop.f32.mrb[0].mxu0
  %v779 = vadd.f32 0.0, %v778
  %v780 = vpop.f32.mrb[0].mxu0
  %781 = vmatprep.mubr.bf16.mxu0 0
  %782 = vmatmul.mubr.bf16.gmra.mrb[0].mxu0 %v634
  %v783 = vpop.f32.mrb[0].mxu0
  %v784 = vadd.f32 0.0, %v783
  %v785 = vpop.f32.mrb[0].mxu0
  %v786 = vpop.f32.mrb[0].mxu0
  %v787 = vadd.f32 0.0, %v786
  %v788 = vpop.f32.mrb[0].mxu0
  %789 = vmatprep.mubr.bf16.mxu0 0
  %790 = vmatmul.mubr.bf16.gmra.mrb[0].mxu0 %v635
  %v791 = vpop.f32.mrb[0].mxu0
  %v792 = vadd.f32 0.0, %v791
  %v793 = vpop.f32.mrb[0].mxu0
  %v794 = vpop.f32.mrb[0].mxu0
  %v795 = vadd.f32 0.0, %v794
  %v796 = vpop.f32.mrb[0].mxu0
  %797 = vdwg.mxu0
  %v798 = vadd.f32 %v453, %v736
  %v799 = vadd.f32 %v456, %v739
  %v800 = vadd.f32 %v461, %v744
  %v801 = vadd.f32 %v464, %v747
  %v802 = vadd.f32 %v469, %v752
  %v803 = vadd.f32 %v472, %v755
  %v804 = vadd.f32 %v477, %v760
  %v805 = vadd.f32 %v480, %v763
  %v806 = vadd.f32 %v485, %v768
  %v807 = vadd.f32 %v488, %v771
  %v808 = vadd.f32 %v493, %v776
  %v809 = vadd.f32 %v496, %v779
  %v810 = vadd.f32 %v501, %v784
  %v811 = vadd.f32 %v504, %v787
  %v812 = vadd.f32 %v509, %v792
  %v813 = vadd.f32 %v512, %v795
  %s814 = scalar_lea.vmem %s0, 8
  %v815 = vld [vmem:[%s814] sm:$0xf]
  %v816 = vld [vmem:[%s814 + $0x8] sm:$0xf]
  %v817 = vld [vmem:[%s814 + $0x10] sm:$0xf]
  %v818 = vld [vmem:[%s814 + $0x18] sm:$0xf]
  %v819 = vld [vmem:[%s814 + $0x20] sm:$0xf]
  %v820 = vld [vmem:[%s814 + $0x28] sm:$0xf]
  %v821 = vld [vmem:[%s814 + $0x30] sm:$0xf]
  %v822 = vld [vmem:[%s814 + $0x38] sm:$0xf]
  %v823 = vld [vmem:[%s814 + $0x50] sm:$0xf]
  %v824 = vld [vmem:[%s814 + $0x58] sm:$0xf]
  %v825 = vld [vmem:[%s814 + $0x60] sm:$0xf]
  %v826 = vld [vmem:[%s814 + $0x68] sm:$0xf]
  %v827 = vld [vmem:[%s814 + $0x70] sm:$0xf]
  %v828 = vld [vmem:[%s814 + $0x78] sm:$0xf]
  %v829 = vld [vmem:[%s814 + $0x80] sm:$0xf]
  %v830 = vld [vmem:[%s814 + $0x88] sm:$0xf]
  %v831 = vunpack.c.l.bf16 %v815
  %v832 = vunpack.c.l.bf16 %v816
  %v833 = vunpack.c.l.bf16 %v817
  %v834 = vunpack.c.l.bf16 %v818
  %v835 = vunpack.c.l.bf16 %v819
  %v836 = vunpack.c.l.bf16 %v820
  %v837 = vunpack.c.l.bf16 %v821
  %v838 = vunpack.c.l.bf16 %v822
  %v839 = vunpack.c.l.bf16 %v823
  %v840 = vunpack.c.l.bf16 %v824
  %v841 = vunpack.c.l.bf16 %v825
  %v842 = vunpack.c.l.bf16 %v826
  %v843 = vunpack.c.l.bf16 %v827
  %v844 = vunpack.c.l.bf16 %v828
  %v845 = vunpack.c.l.bf16 %v829
  %v846 = vunpack.c.l.bf16 %v830
  %v847 = vpack.c.bf16 %v832, %v831
  %v848 = vpack.c.bf16 %v834, %v833
  %v849 = vpack.c.bf16 %v836, %v835
  %v850 = vpack.c.bf16 %v838, %v837
  %v851 = vpack.c.bf16 %v840, %v839
  %v852 = vpack.c.bf16 %v842, %v841
  %v853 = vpack.c.bf16 %v844, %v843
  %v854 = vpack.c.bf16 %v846, %v845
  %s855 = scalar_lea.vmem %s1, 192
  %v856 = vld [vmem:[%s855] sm:$0xf]
  %v857 = vld [vmem:[%s855 + $0x4] sm:$0xf]
  %v858 = vld [vmem:[%s855 + $0x8] sm:$0xf]
  %v859 = vld [vmem:[%s855 + $0xc] sm:$0xf]
  %v860 = vld [vmem:[%s855 + $0x10] sm:$0xf]
  %v861 = vld [vmem:[%s855 + $0x14] sm:$0xf]
  %v862 = vld [vmem:[%s855 + $0x18] sm:$0xf]
  %v863 = vld [vmem:[%s855 + $0x1c] sm:$0xf]
  %v864 = vld [vmem:[%s855 + $0x20] sm:$0xf]
  %v865 = vld [vmem:[%s855 + $0x24] sm:$0xf]
  %v866 = vld [vmem:[%s855 + $0x28] sm:$0xf]
  %v867 = vld [vmem:[%s855 + $0x2c] sm:$0xf]
  %v868 = vld [vmem:[%s855 + $0x30] sm:$0xf]
  %v869 = vld [vmem:[%s855 + $0x34] sm:$0xf]
  %v870 = vld [vmem:[%s855 + $0x38] sm:$0xf]
  %v871 = vld [vmem:[%s855 + $0x3c] sm:$0xf]
  %v888 = vunpack.c.l.b16 %v856
  %v889 = vunpack.c.l.b16 %v857
  %v890 = vunpack.c.l.b16 %v858
  %v891 = vunpack.c.l.b16 %v859
  %v892 = vunpack.c.l.b16 %v860
  %v893 = vunpack.c.l.b16 %v861
  %v894 = vunpack.c.l.b16 %v862
  %v895 = vunpack.c.l.b16 %v863
  %v896 = vunpack.c.l.b16 %v864
  %v897 = vunpack.c.l.b16 %v865
  %v898 = vunpack.c.l.b16 %v866
  %v899 = vunpack.c.l.b16 %v867
  %v900 = vunpack.c.l.b16 %v868
  %v901 = vunpack.c.l.b16 %v869
  %v902 = vunpack.c.l.b16 %v870
  %v903 = vunpack.c.l.b16 %v871
  %v904 = vpack.c.b16 %v889, %v888
  %v905 = vpack.c.b16 %v891, %v890
  %v906 = vpack.c.b16 %v893, %v892
  %v907 = vpack.c.b16 %v895, %v894
  %v908 = vpack.c.b16 %v897, %v896
  %v909 = vpack.c.b16 %v899, %v898
  %v910 = vpack.c.b16 %v901, %v900
  %v911 = vpack.c.b16 %v903, %v902
  %920 = vmatprep.subr.bf16.mxu0 0
  %921 = vmatpush1.bf16.msra.mxu0 %v904
  %922 = vmatprep.subr.bf16.mxu0 0
  %923 = vmatpush1.bf16.msra.mxu0 %v905
  %924 = vmatprep.subr.bf16.mxu0 0
  %925 = vmatpush1.bf16.msra.mxu0 %v906
  %926 = vmatprep.subr.bf16.mxu0 0
  %927 = vmatpush1.bf16.msra.mxu0 %v907
  %928 = vmatprep.subr.bf16.mxu0 0
  %929 = vmatpush1.bf16.msra.mxu0 %v908
  %930 = vmatprep.subr.bf16.mxu0 0
  %931 = vmatpush1.bf16.msra.mxu0 %v909
  %932 = vmatprep.subr.bf16.mxu0 0
  %933 = vmatpush1.bf16.msra.mxu0 %v910
  %934 = vmatprep.subr.bf16.mxu0 0
  %935 = vmatpush1.bf16.msra.mxu0 %v911
  %936 = vmatprep.subr.bf16.mxu0 0
  %937 = vmatpush1.bf16.msra.mxu0 0
  %938 = vmatprep.subr.bf16.mxu0 0
  %939 = vmatpush1.bf16.msra.mxu0 0
  %940 = vmatprep.subr.bf16.mxu0 0
  %941 = vmatpush1.bf16.msra.mxu0 0
  %942 = vmatprep.subr.bf16.mxu0 0
  %943 = vmatpush1.bf16.msra.mxu0 0
  %944 = vmatprep.subr.bf16.mxu0 0
  %945 = vmatpush1.bf16.msra.mxu0 0
  %946 = vmatprep.subr.bf16.mxu0 0
  %947 = vmatpush1.bf16.msra.mxu0 0
  %948 = vmatprep.subr.bf16.mxu0 0
  %949 = vmatpush1.bf16.msra.mxu0 0
  %950 = vmatprep.subr.bf16.mxu0 0
  %951 = vmatpush1.bf16.msra.mxu0 0
  %952 = vmatprep.mubr.bf16.mxu0 0
  %953 = vmatmul.mubr.bf16.gmra.mrb[0].mxu0 %v847
  %v954 = vpop.f32.mrb[0].mxu0
  %v955 = vadd.f32 0.0, %v954
  %v956 = vpop.f32.mrb[0].mxu0
  %v957 = vpop.f32.mrb[0].mxu0
  %v958 = vadd.f32 0.0, %v957
  %v959 = vpop.f32.mrb[0].mxu0
  %960 = vmatprep.mubr.bf16.mxu0 0
  %961 = vmatmul.mubr.bf16.gmra.mrb[0].mxu0 %v848
  %v962 = vpop.f32.mrb[0].mxu0
  %v963 = vadd.f32 0.0, %v962
  %v964 = vpop.f32.mrb[0].mxu0
  %v965 = vpop.f32.mrb[0].mxu0
  %v966 = vadd.f32 0.0, %v965
  %v967 = vpop.f32.mrb[0].mxu0
  %968 = vmatprep.mubr.bf16.mxu0 0
  %969 = vmatmul.mubr.bf16.gmra.mrb[0].mxu0 %v849
  %v970 = vpop.f32.mrb[0].mxu0
  %v971 = vadd.f32 0.0, %v970
  %v972 = vpop.f32.mrb[0].mxu0
  %v973 = vpop.f32.mrb[0].mxu0
  %v974 = vadd.f32 0.0, %v973
  %v975 = vpop.f32.mrb[0].mxu0
  %976 = vmatprep.mubr.bf16.mxu0 0
  %977 = vmatmul.mubr.bf16.gmra.mrb[0].mxu0 %v850
  %v978 = vpop.f32.mrb[0].mxu0
  %v979 = vadd.f32 0.0, %v978
  %v980 = vpop.f32.mrb[0].mxu0
  %v981 = vpop.f32.mrb[0].mxu0
  %v982 = vadd.f32 0.0, %v981
  %v983 = vpop.f32.mrb[0].mxu0
  %984 = vmatprep.mubr.bf16.mxu0 0
  %985 = vmatmul.mubr.bf16.gmra.mrb[0].mxu0 %v851
  %v986 = vpop.f32.mrb[0].mxu0
  %v987 = vadd.f32 0.0, %v986
  %v988 = vpop.f32.mrb[0].mxu0
  %v989 = vpop.f32.mrb[0].mxu0
  %v990 = vadd.f32 0.0, %v989
  %v991 = vpop.f32.mrb[0].mxu0
  %992 = vmatprep.mubr.bf16.mxu0 0
  %993 = vmatmul.mubr.bf16.gmra.mrb[0].mxu0 %v852
  %v994 = vpop.f32.mrb[0].mxu0
  %v995 = vadd.f32 0.0, %v994
  %v996 = vpop.f32.mrb[0].mxu0
  %v997 = vpop.f32.mrb[0].mxu0
  %v998 = vadd.f32 0.0, %v997
  %v999 = vpop.f32.mrb[0].mxu0
  %1000 = vmatprep.mubr.bf16.mxu0 0
  %1001 = vmatmul.mubr.bf16.gmra.mrb[0].mxu0 %v853
  %v1002 = vpop.f32.mrb[0].mxu0
  %v1003 = vadd.f32 0.0, %v1002
  %v1004 = vpop.f32.mrb[0].mxu0
  %v1005 = vpop.f32.mrb[0].mxu0
  %v1006 = vadd.f32 0.0, %v1005
  %v1007 = vpop.f32.mrb[0].mxu0
  %1008 = vmatprep.mubr.bf16.mxu0 0
  %1009 = vmatmul.mubr.bf16.gmra.mrb[0].mxu0 %v854
  %v1010 = vpop.f32.mrb[0].mxu0
  %v1011 = vadd.f32 0.0, %v1010
  %v1012 = vpop.f32.mrb[0].mxu0
  %v1013 = vpop.f32.mrb[0].mxu0
  %v1014 = vadd.f32 0.0, %v1013
  %v1015 = vpop.f32.mrb[0].mxu0
  %1016 = vdwg.mxu0
  %v1017 = vadd.f32 %v798, %v955
  %v1018 = vadd.f32 %v799, %v958
  %v1019 = vadd.f32 %v800, %v963
  %v1020 = vadd.f32 %v801, %v966
  %v1021 = vadd.f32 %v802, %v971
  %v1022 = vadd.f32 %v803, %v974
  %v1023 = vadd.f32 %v804, %v979
  %v1024 = vadd.f32 %v805, %v982
  %v1025 = vadd.f32 %v806, %v987
  %v1026 = vadd.f32 %v807, %v990
  %v1027 = vadd.f32 %v808, %v995
  %v1028 = vadd.f32 %v809, %v998
  %v1029 = vadd.f32 %v810, %v1003
  %v1030 = vadd.f32 %v811, %v1006
  %v1031 = vadd.f32 %v812, %v1011
  %v1032 = vadd.f32 %v813, %v1014
  %v1033 = vld [vmem:[%s814] sm:$0xf]
  %v1034 = vld [vmem:[%s814 + $0x4] sm:$0x1]
  %v1035 = vld [vmem:[%s814 + $0x8] sm:$0xf]
  %v1036 = vld [vmem:[%s814 + $0xc] sm:$0x1]
  %v1037 = vld [vmem:[%s814 + $0x10] sm:$0xf]
  %v1038 = vld [vmem:[%s814 + $0x14] sm:$0x1]
  %v1039 = vld [vmem:[%s814 + $0x18] sm:$0xf]
  %v1040 = vld [vmem:[%s814 + $0x1c] sm:$0x1]
  %v1041 = vld [vmem:[%s814 + $0x20] sm:$0xf]
  %v1042 = vld [vmem:[%s814 + $0x24] sm:$0x1]
  %v1043 = vld [vmem:[%s814 + $0x28] sm:$0xf]
  %v1044 = vld [vmem:[%s814 + $0x2c] sm:$0x1]
  %v1045 = vld [vmem:[%s814 + $0x30] sm:$0xf]
  %v1046 = vld [vmem:[%s814 + $0x34] sm:$0x1]
  %v1047 = vld [vmem:[%s814 + $0x38] sm:$0xf]
  %v1048 = vld [vmem:[%s814 + $0x3c] sm:$0x1]
  %v1049 = vld [vmem:[%s814 + $0x50] sm:$0xf]
  %v1050 = vld [vmem:[%s814 + $0x54] sm:$0x1]
  %v1051 = vld [vmem:[%s814 + $0x58] sm:$0xf]
  %v1052 = vld [vmem:[%s814 + $0x5c] sm:$0x1]
  %v1053 = vld [vmem:[%s814 + $0x60] sm:$0xf]
  %v1054 = vld [vmem:[%s814 + $0x64] sm:$0x1]
  %v1055 = vld [vmem:[%s814 + $0x68] sm:$0xf]
  %v1056 = vld [vmem:[%s814 + $0x6c] sm:$0x1]
  %v1057 = vld [vmem:[%s814 + $0x70] sm:$0xf]
  %v1058 = vld [vmem:[%s814 + $0x74] sm:$0x1]
  %v1059 = vld [vmem:[%s814 + $0x78] sm:$0xf]
  %v1060 = vld [vmem:[%s814 + $0x7c] sm:$0x1]
  %v1061 = vld [vmem:[%s814 + $0x80] sm:$0xf]
  %v1062 = vld [vmem:[%s814 + $0x84] sm:$0x1]
  %v1063 = vld [vmem:[%s814 + $0x88] sm:$0xf]
  %v1064 = vld [vmem:[%s814 + $0x8c] sm:$0x1]
  %v1065 = vunpack.c.l.bf16 %v1033
  %v1066 = vunpack.c.l.bf16 %v1034
  %v1067 = vunpack.c.l.bf16 %v1035
  %v1068 = vunpack.c.l.bf16 %v1036
  %v1069 = vunpack.c.l.bf16 %v1037
  %v1070 = vunpack.c.l.bf16 %v1038
  %v1071 = vunpack.c.l.bf16 %v1039
  %v1072 = vunpack.c.l.bf16 %v1040
  %v1073 = vunpack.c.l.bf16 %v1041
  %v1074 = vunpack.c.l.bf16 %v1042
  %v1075 = vunpack.c.l.bf16 %v1043
  %v1076 = vunpack.c.l.bf16 %v1044
  %v1077 = vunpack.c.l.bf16 %v1045
  %v1078 = vunpack.c.l.bf16 %v1046
  %v1079 = vunpack.c.l.bf16 %v1047
  %v1080 = vunpack.c.l.bf16 %v1048
  %v1081 = vunpack.c.l.bf16 %v1049
  %v1082 = vunpack.c.l.bf16 %v1050
  %v1083 = vunpack.c.l.bf16 %v1051
  %v1084 = vunpack.c.l.bf16 %v1052
  %v1085 = vunpack.c.l.bf16 %v1053
  %v1086 = vunpack.c.l.bf16 %v1054
  %v1087 = vunpack.c.l.bf16 %v1055
  %v1088 = vunpack.c.l.bf16 %v1056
  %v1089 = vunpack.c.l.bf16 %v1057
  %v1090 = vunpack.c.l.bf16 %v1058
  %v1091 = vunpack.c.l.bf16 %v1059
  %v1092 = vunpack.c.l.bf16 %v1060
  %v1093 = vunpack.c.l.bf16 %v1061
  %v1094 = vunpack.c.l.bf16 %v1062
  %v1095 = vunpack.c.l.bf16 %v1063
  %v1096 = vunpack.c.l.bf16 %v1064
  %v1129 = vrot.slane %v1065, 1
  %v1130 = vrot.slane %v1066, 1
  %v1131 = vsel %vm135, %v1129, %v1130
  %v1132 = vrot.slane %v1067, 1
  %v1133 = vrot.slane %v1068, 1
  %v1134 = vsel %vm135, %v1132, %v1133
  %v1135 = vrot.slane %v1069, 1
  %v1136 = vrot.slane %v1070, 1
  %v1137 = vsel %vm135, %v1135, %v1136
  %v1138 = vrot.slane %v1071, 1
  %v1139 = vrot.slane %v1072, 1
  %v1140 = vsel %vm135, %v1138, %v1139
  %v1141 = vrot.slane %v1073, 1
  %v1142 = vrot.slane %v1074, 1
  %v1143 = vsel %vm135, %v1141, %v1142
  %v1144 = vrot.slane %v1075, 1
  %v1145 = vrot.slane %v1076, 1
  %v1146 = vsel %vm135, %v1144, %v1145
  %v1147 = vrot.slane %v1077, 1
  %v1148 = vrot.slane %v1078, 1
  %v1149 = vsel %vm135, %v1147, %v1148
  %v1150 = vrot.slane %v1079, 1
  %v1151 = vrot.slane %v1080, 1
  %v1152 = vsel %vm135, %v1150, %v1151
  %v1153 = vrot.slane %v1081, 1
  %v1154 = vrot.slane %v1082, 1
  %v1155 = vsel %vm135, %v1153, %v1154
  %v1156 = vrot.slane %v1083, 1
  %v1157 = vrot.slane %v1084, 1
  %v1158 = vsel %vm135, %v1156, %v1157
  %v1159 = vrot.slane %v1085, 1
  %v1160 = vrot.slane %v1086, 1
  %v1161 = vsel %vm135, %v1159, %v1160
  %v1162 = vrot.slane %v1087, 1
  %v1163 = vrot.slane %v1088, 1
  %v1164 = vsel %vm135, %v1162, %v1163
  %v1165 = vrot.slane %v1089, 1
  %v1166 = vrot.slane %v1090, 1
  %v1167 = vsel %vm135, %v1165, %v1166
  %v1168 = vrot.slane %v1091, 1
  %v1169 = vrot.slane %v1092, 1
  %v1170 = vsel %vm135, %v1168, %v1169
  %v1171 = vrot.slane %v1093, 1
  %v1172 = vrot.slane %v1094, 1
  %v1173 = vsel %vm135, %v1171, %v1172
  %v1174 = vrot.slane %v1095, 1
  %v1175 = vrot.slane %v1096, 1
  %v1176 = vsel %vm135, %v1174, %v1175
  %v1193 = vpack.c.bf16 %v1134, %v1131
  %v1194 = vpack.c.bf16 %v1140, %v1137
  %v1195 = vpack.c.bf16 %v1146, %v1143
  %v1196 = vpack.c.bf16 %v1152, %v1149
  %v1197 = vpack.c.bf16 %v1158, %v1155
  %v1198 = vpack.c.bf16 %v1164, %v1161
  %v1199 = vpack.c.bf16 %v1170, %v1167
  %v1200 = vpack.c.bf16 %v1176, %v1173
  %s1201 = scalar_lea.vmem %s1, 256
  %v1202 = vld [vmem:[%s1201] sm:$0xf]
  %v1203 = vld [vmem:[%s1201 + $0x4] sm:$0xf]
  %v1204 = vld [vmem:[%s1201 + $0x8] sm:$0xf]
  %v1205 = vld [vmem:[%s1201 + $0xc] sm:$0xf]
  %v1206 = vld [vmem:[%s1201 + $0x10] sm:$0xf]
  %v1207 = vld [vmem:[%s1201 + $0x14] sm:$0xf]
  %v1208 = vld [vmem:[%s1201 + $0x18] sm:$0xf]
  %v1209 = vld [vmem:[%s1201 + $0x1c] sm:$0xf]
  %v1210 = vld [vmem:[%s1201 + $0x20] sm:$0xf]
  %v1211 = vld [vmem:[%s1201 + $0x24] sm:$0xf]
  %v1212 = vld [vmem:[%s1201 + $0x28] sm:$0xf]
  %v1213 = vld [vmem:[%s1201 + $0x2c] sm:$0xf]
  %v1214 = vld [vmem:[%s1201 + $0x30] sm:$0xf]
  %v1215 = vld [vmem:[%s1201 + $0x34] sm:$0xf]
  %v1216 = vld [vmem:[%s1201 + $0x38] sm:$0xf]
  %v1217 = vld [vmem:[%s1201 + $0x3c] sm:$0xf]
  %v1234 = vunpack.c.l.b16 %v1202
  %v1235 = vunpack.c.l.b16 %v1203
  %v1236 = vunpack.c.l.b16 %v1204
  %v1237 = vunpack.c.l.b16 %v1205
  %v1238 = vunpack.c.l.b16 %v1206
  %v1239 = vunpack.c.l.b16 %v1207
  %v1240 = vunpack.c.l.b16 %v1208
  %v1241 = vunpack.c.l.b16 %v1209
  %v1242 = vunpack.c.l.b16 %v1210
  %v1243 = vunpack.c.l.b16 %v1211
  %v1244 = vunpack.c.l.b16 %v1212
  %v1245 = vunpack.c.l.b16 %v1213
  %v1246 = vunpack.c.l.b16 %v1214
  %v1247 = vunpack.c.l.b16 %v1215
  %v1248 = vunpack.c.l.b16 %v1216
  %v1249 = vunpack.c.l.b16 %v1217
  %v1250 = vpack.c.b16 %v1235, %v1234
  %v1251 = vpack.c.b16 %v1237, %v1236
  %v1252 = vpack.c.b16 %v1239, %v1238
  %v1253 = vpack.c.b16 %v1241, %v1240
  %v1254 = vpack.c.b16 %v1243, %v1242
  %v1255 = vpack.c.b16 %v1245, %v1244
  %v1256 = vpack.c.b16 %v1247, %v1246
  %v1257 = vpack.c.b16 %v1249, %v1248
  %1266 = vmatprep.subr.bf16.mxu0 0
  %1267 = vmatpush1.bf16.msra.mxu0 %v1250
  %1268 = vmatprep.subr.bf16.mxu0 0
  %1269 = vmatpush1.bf16.msra.mxu0 %v1251
  %1270 = vmatprep.subr.bf16.mxu0 0
  %1271 = vmatpush1.bf16.msra.mxu0 %v1252
  %1272 = vmatprep.subr.bf16.mxu0 0
  %1273 = vmatpush1.bf16.msra.mxu0 %v1253
  %1274 = vmatprep.subr.bf16.mxu0 0
  %1275 = vmatpush1.bf16.msra.mxu0 %v1254
  %1276 = vmatprep.subr.bf16.mxu0 0
  %1277 = vmatpush1.bf16.msra.mxu0 %v1255
  %1278 = vmatprep.subr.bf16.mxu0 0
  %1279 = vmatpush1.bf16.msra.mxu0 %v1256
  %1280 = vmatprep.subr.bf16.mxu0 0
  %1281 = vmatpush1.bf16.msra.mxu0 %v1257
  %1282 = vmatprep.subr.bf16.mxu0 0
  %1283 = vmatpush1.bf16.msra.mxu0 0
  %1284 = vmatprep.subr.bf16.mxu0 0
  %1285 = vmatpush1.bf16.msra.mxu0 0
  %1286 = vmatprep.subr.bf16.mxu0 0
  %1287 = vmatpush1.bf16.msra.mxu0 0
  %1288 = vmatprep.subr.bf16.mxu0 0
  %1289 = vmatpush1.bf16.msra.mxu0 0
  %1290 = vmatprep.subr.bf16.mxu0 0
  %1291 = vmatpush1.bf16.msra.mxu0 0
  %1292 = vmatprep.subr.bf16.mxu0 0
  %1293 = vmatpush1.bf16.msra.mxu0 0
  %1294 = vmatprep.subr.bf16.mxu0 0
  %1295 = vmatpush1.bf16.msra.mxu0 0
  %1296 = vmatprep.subr.bf16.mxu0 0
  %1297 = vmatpush1.bf16.msra.mxu0 0
  %1298 = vmatprep.mubr.bf16.mxu0 0
  %1299 = vmatmul.mubr.bf16.gmra.mrb[0].mxu0 %v1193
  %v1300 = vpop.f32.mrb[0].mxu0
  %v1301 = vadd.f32 0.0, %v1300
  %v1302 = vpop.f32.mrb[0].mxu0
  %v1303 = vpop.f32.mrb[0].mxu0
  %v1304 = vadd.f32 0.0, %v1303
  %v1305 = vpop.f32.mrb[0].mxu0
  %1306 = vmatprep.mubr.bf16.mxu0 0
  %1307 = vmatmul.mubr.bf16.gmra.mrb[0].mxu0 %v1194
  %v1308 = vpop.f32.mrb[0].mxu0
  %v1309 = vadd.f32 0.0, %v1308
  %v1310 = vpop.f32.mrb[0].mxu0
  %v1311 = vpop.f32.mrb[0].mxu0
  %v1312 = vadd.f32 0.0, %v1311
  %v1313 = vpop.f32.mrb[0].mxu0
  %1314 = vmatprep.mubr.bf16.mxu0 0
  %1315 = vmatmul.mubr.bf16.gmra.mrb[0].mxu0 %v1195
  %v1316 = vpop.f32.mrb[0].mxu0
  %v1317 = vadd.f32 0.0, %v1316
  %v1318 = vpop.f32.mrb[0].mxu0
  %v1319 = vpop.f32.mrb[0].mxu0
  %v1320 = vadd.f32 0.0, %v1319
  %v1321 = vpop.f32.mrb[0].mxu0
  %1322 = vmatprep.mubr.bf16.mxu0 0
  %1323 = vmatmul.mubr.bf16.gmra.mrb[0].mxu0 %v1196
  %v1324 = vpop.f32.mrb[0].mxu0
  %v1325 = vadd.f32 0.0, %v1324
  %v1326 = vpop.f32.mrb[0].mxu0
  %v1327 = vpop.f32.mrb[0].mxu0
  %v1328 = vadd.f32 0.0, %v1327
  %v1329 = vpop.f32.mrb[0].mxu0
  %1330 = vmatprep.mubr.bf16.mxu0 0
  %1331 = vmatmul.mubr.bf16.gmra.mrb[0].mxu0 %v1197
  %v1332 = vpop.f32.mrb[0].mxu0
  %v1333 = vadd.f32 0.0, %v1332
  %v1334 = vpop.f32.mrb[0].mxu0
  %v1335 = vpop.f32.mrb[0].mxu0
  %v1336 = vadd.f32 0.0, %v1335
  %v1337 = vpop.f32.mrb[0].mxu0
  %1338 = vmatprep.mubr.bf16.mxu0 0
  %1339 = vmatmul.mubr.bf16.gmra.mrb[0].mxu0 %v1198
  %v1340 = vpop.f32.mrb[0].mxu0
  %v1341 = vadd.f32 0.0, %v1340
  %v1342 = vpop.f32.mrb[0].mxu0
  %v1343 = vpop.f32.mrb[0].mxu0
  %v1344 = vadd.f32 0.0, %v1343
  %v1345 = vpop.f32.mrb[0].mxu0
  %1346 = vmatprep.mubr.bf16.mxu0 0
  %1347 = vmatmul.mubr.bf16.gmra.mrb[0].mxu0 %v1199
  %v1348 = vpop.f32.mrb[0].mxu0
  %v1349 = vadd.f32 0.0, %v1348
  %v1350 = vpop.f32.mrb[0].mxu0
  %v1351 = vpop.f32.mrb[0].mxu0
  %v1352 = vadd.f32 0.0, %v1351
  %v1353 = vpop.f32.mrb[0].mxu0
  %1354 = vmatprep.mubr.bf16.mxu0 0
  %1355 = vmatmul.mubr.bf16.gmra.mrb[0].mxu0 %v1200
  %v1356 = vpop.f32.mrb[0].mxu0
  %v1357 = vadd.f32 0.0, %v1356
  %v1358 = vpop.f32.mrb[0].mxu0
  %v1359 = vpop.f32.mrb[0].mxu0
  %v1360 = vadd.f32 0.0, %v1359
  %v1361 = vpop.f32.mrb[0].mxu0
  %1362 = vdwg.mxu0
  %v1363 = vadd.f32 %v1017, %v1301
  %v1364 = vadd.f32 %v1018, %v1304
  %v1365 = vadd.f32 %v1019, %v1309
  %v1366 = vadd.f32 %v1020, %v1312
  %v1367 = vadd.f32 %v1021, %v1317
  %v1368 = vadd.f32 %v1022, %v1320
  %v1369 = vadd.f32 %v1023, %v1325
  %v1370 = vadd.f32 %v1024, %v1328
  %v1371 = vadd.f32 %v1025, %v1333
  %v1372 = vadd.f32 %v1026, %v1336
  %v1373 = vadd.f32 %v1027, %v1341
  %v1374 = vadd.f32 %v1028, %v1344
  %v1375 = vadd.f32 %v1029, %v1349
  %v1376 = vadd.f32 %v1030, %v1352
  %v1377 = vadd.f32 %v1031, %v1357
  %v1378 = vadd.f32 %v1032, %v1360
  %v1379 = vld [vmem:[%s814] sm:$0xe]
  %v1380 = vld [vmem:[%s814 + $0x8] sm:$0xe]
  %v1381 = vld [vmem:[%s814 + $0x10] sm:$0xe]
  %v1382 = vld [vmem:[%s814 + $0x18] sm:$0xe]
  %v1383 = vld [vmem:[%s814 + $0x20] sm:$0xe]
  %v1384 = vld [vmem:[%s814 + $0x28] sm:$0xe]
  %v1385 = vld [vmem:[%s814 + $0x30] sm:$0xe]
  %v1386 = vld [vmem:[%s814 + $0x38] sm:$0xe]
  %v1387 = vld [vmem:[%s814 + $0x50] sm:$0xe]
  %v1388 = vld [vmem:[%s814 + $0x58] sm:$0xe]
  %v1389 = vld [vmem:[%s814 + $0x60] sm:$0xe]
  %v1390 = vld [vmem:[%s814 + $0x68] sm:$0xe]
  %v1391 = vld [vmem:[%s814 + $0x70] sm:$0xe]
  %v1392 = vld [vmem:[%s814 + $0x78] sm:$0xe]
  %v1393 = vld [vmem:[%s814 + $0x80] sm:$0xe]
  %v1394 = vld [vmem:[%s814 + $0x88] sm:$0xe]
  %v1395 = vunpack.c.l.bf16 %v1379
  %v1396 = vunpack.c.l.bf16 %v1380
  %v1397 = vunpack.c.l.bf16 %v1381
  %v1398 = vunpack.c.l.bf16 %v1382
  %v1399 = vunpack.c.l.bf16 %v1383
  %v1400 = vunpack.c.l.bf16 %v1384
  %v1401 = vunpack.c.l.bf16 %v1385
  %v1402 = vunpack.c.l.bf16 %v1386
  %v1403 = vunpack.c.l.bf16 %v1387
  %v1404 = vunpack.c.l.bf16 %v1388
  %v1405 = vunpack.c.l.bf16 %v1389
  %v1406 = vunpack.c.l.bf16 %v1390
  %v1407 = vunpack.c.l.bf16 %v1391
  %v1408 = vunpack.c.l.bf16 %v1392
  %v1409 = vunpack.c.l.bf16 %v1393
  %v1410 = vunpack.c.l.bf16 %v1394
  %v1427 = vrot.slane %v1395, 2
  %v1428 = vrot.slane %v1066, 2
  %v1429 = vsel %vm563, %v1427, %v1428
  %v1430 = vrot.slane %v1396, 2
  %v1431 = vrot.slane %v1068, 2
  %v1432 = vsel %vm563, %v1430, %v1431
  %v1433 = vrot.slane %v1397, 2
  %v1434 = vrot.slane %v1070, 2
  %v1435 = vsel %vm563, %v1433, %v1434
  %v1436 = vrot.slane %v1398, 2
  %v1437 = vrot.slane %v1072, 2
  %v1438 = vsel %vm563, %v1436, %v1437
  %v1439 = vrot.slane %v1399, 2
  %v1440 = vrot.slane %v1074, 2
  %v1441 = vsel %vm563, %v1439, %v1440
  %v1442 = vrot.slane %v1400, 2
  %v1443 = vrot.slane %v1076, 2
  %v1444 = vsel %vm563, %v1442, %v1443
  %v1445 = vrot.slane %v1401, 2
  %v1446 = vrot.slane %v1078, 2
  %v1447 = vsel %vm563, %v1445, %v1446
  %v1448 = vrot.slane %v1402, 2
  %v1449 = vrot.slane %v1080, 2
  %v1450 = vsel %vm563, %v1448, %v1449
  %v1451 = vrot.slane %v1403, 2
  %v1452 = vrot.slane %v1082, 2
  %v1453 = vsel %vm563, %v1451, %v1452
  %v1454 = vrot.slane %v1404, 2
  %v1455 = vrot.slane %v1084, 2
  %v1456 = vsel %vm563, %v1454, %v1455
  %v1457 = vrot.slane %v1405, 2
  %v1458 = vrot.slane %v1086, 2
  %v1459 = vsel %vm563, %v1457, %v1458
  %v1460 = vrot.slane %v1406, 2
  %v1461 = vrot.slane %v1088, 2
  %v1462 = vsel %vm563, %v1460, %v1461
  %v1463 = vrot.slane %v1407, 2
  %v1464 = vrot.slane %v1090, 2
  %v1465 = vsel %vm563, %v1463, %v1464
  %v1466 = vrot.slane %v1408, 2
  %v1467 = vrot.slane %v1092, 2
  %v1468 = vsel %vm563, %v1466, %v1467
  %v1469 = vrot.slane %v1409, 2
  %v1470 = vrot.slane %v1094, 2
  %v1471 = vsel %vm563, %v1469, %v1470
  %v1472 = vrot.slane %v1410, 2
  %v1473 = vrot.slane %v1096, 2
  %v1474 = vsel %vm563, %v1472, %v1473
  %v1491 = vpack.c.bf16 %v1432, %v1429
  %v1492 = vpack.c.bf16 %v1438, %v1435
  %v1493 = vpack.c.bf16 %v1444, %v1441
  %v1494 = vpack.c.bf16 %v1450, %v1447
  %v1495 = vpack.c.bf16 %v1456, %v1453
  %v1496 = vpack.c.bf16 %v1462, %v1459
  %v1497 = vpack.c.bf16 %v1468, %v1465
  %v1498 = vpack.c.bf16 %v1474, %v1471
  %s1499 = scalar_lea.vmem %s1, 320
  %v1500 = vld [vmem:[%s1499] sm:$0xf]
  %v1501 = vld [vmem:[%s1499 + $0x4] sm:$0xf]
  %v1502 = vld [vmem:[%s1499 + $0x8] sm:$0xf]
  %v1503 = vld [vmem:[%s1499 + $0xc] sm:$0xf]
  %v1504 = vld [vmem:[%s1499 + $0x10] sm:$0xf]
  %v1505 = vld [vmem:[%s1499 + $0x14] sm:$0xf]
  %v1506 = vld [vmem:[%s1499 + $0x18] sm:$0xf]
  %v1507 = vld [vmem:[%s1499 + $0x1c] sm:$0xf]
  %v1508 = vld [vmem:[%s1499 + $0x20] sm:$0xf]
  %v1509 = vld [vmem:[%s1499 + $0x24] sm:$0xf]
  %v1510 = vld [vmem:[%s1499 + $0x28] sm:$0xf]
  %v1511 = vld [vmem:[%s1499 + $0x2c] sm:$0xf]
  %v1512 = vld [vmem:[%s1499 + $0x30] sm:$0xf]
  %v1513 = vld [vmem:[%s1499 + $0x34] sm:$0xf]
  %v1514 = vld [vmem:[%s1499 + $0x38] sm:$0xf]
  %v1515 = vld [vmem:[%s1499 + $0x3c] sm:$0xf]
  %v1532 = vunpack.c.l.b16 %v1500
  %v1533 = vunpack.c.l.b16 %v1501
  %v1534 = vunpack.c.l.b16 %v1502
  %v1535 = vunpack.c.l.b16 %v1503
  %v1536 = vunpack.c.l.b16 %v1504
  %v1537 = vunpack.c.l.b16 %v1505
  %v1538 = vunpack.c.l.b16 %v1506
  %v1539 = vunpack.c.l.b16 %v1507
  %v1540 = vunpack.c.l.b16 %v1508
  %v1541 = vunpack.c.l.b16 %v1509
  %v1542 = vunpack.c.l.b16 %v1510
  %v1543 = vunpack.c.l.b16 %v1511
  %v1544 = vunpack.c.l.b16 %v1512
  %v1545 = vunpack.c.l.b16 %v1513
  %v1546 = vunpack.c.l.b16 %v1514
  %v1547 = vunpack.c.l.b16 %v1515
  %v1548 = vpack.c.b16 %v1533, %v1532
  %v1549 = vpack.c.b16 %v1535, %v1534
  %v1550 = vpack.c.b16 %v1537, %v1536
  %v1551 = vpack.c.b16 %v1539, %v1538
  %v1552 = vpack.c.b16 %v1541, %v1540
  %v1553 = vpack.c.b16 %v1543, %v1542
  %v1554 = vpack.c.b16 %v1545, %v1544
  %v1555 = vpack.c.b16 %v1547, %v1546
  %1564 = vmatprep.subr.bf16.mxu0 0
  %1565 = vmatpush1.bf16.msra.mxu0 %v1548
  %1566 = vmatprep.subr.bf16.mxu0 0
  %1567 = vmatpush1.bf16.msra.mxu0 %v1549
  %1568 = vmatprep.subr.bf16.mxu0 0
  %1569 = vmatpush1.bf16.msra.mxu0 %v1550
  %1570 = vmatprep.subr.bf16.mxu0 0
  %1571 = vmatpush1.bf16.msra.mxu0 %v1551
  %1572 = vmatprep.subr.bf16.mxu0 0
  %1573 = vmatpush1.bf16.msra.mxu0 %v1552
  %1574 = vmatprep.subr.bf16.mxu0 0
  %1575 = vmatpush1.bf16.msra.mxu0 %v1553
  %1576 = vmatprep.subr.bf16.mxu0 0
  %1577 = vmatpush1.bf16.msra.mxu0 %v1554
  %1578 = vmatprep.subr.bf16.mxu0 0
  %1579 = vmatpush1.bf16.msra.mxu0 %v1555
  %1580 = vmatprep.subr.bf16.mxu0 0
  %1581 = vmatpush1.bf16.msra.mxu0 0
  %1582 = vmatprep.subr.bf16.mxu0 0
  %1583 = vmatpush1.bf16.msra.mxu0 0
  %1584 = vmatprep.subr.bf16.mxu0 0
  %1585 = vmatpush1.bf16.msra.mxu0 0
  %1586 = vmatprep.subr.bf16.mxu0 0
  %1587 = vmatpush1.bf16.msra.mxu0 0
  %1588 = vmatprep.subr.bf16.mxu0 0
  %1589 = vmatpush1.bf16.msra.mxu0 0
  %1590 = vmatprep.subr.bf16.mxu0 0
  %1591 = vmatpush1.bf16.msra.mxu0 0
  %1592 = vmatprep.subr.bf16.mxu0 0
  %1593 = vmatpush1.bf16.msra.mxu0 0
  %1594 = vmatprep.subr.bf16.mxu0 0
  %1595 = vmatpush1.bf16.msra.mxu0 0
  %1596 = vmatprep.mubr.bf16.mxu0 0
  %1597 = vmatmul.mubr.bf16.gmra.mrb[0].mxu0 %v1491
  %v1598 = vpop.f32.mrb[0].mxu0
  %v1599 = vadd.f32 0.0, %v1598
  %v1600 = vpop.f32.mrb[0].mxu0
  %v1601 = vpop.f32.mrb[0].mxu0
  %v1602 = vadd.f32 0.0, %v1601
  %v1603 = vpop.f32.mrb[0].mxu0
  %1604 = vmatprep.mubr.bf16.mxu0 0
  %1605 = vmatmul.mubr.bf16.gmra.mrb[0].mxu0 %v1492
  %v1606 = vpop.f32.mrb[0].mxu0
  %v1607 = vadd.f32 0.0, %v1606
  %v1608 = vpop.f32.mrb[0].mxu0
  %v1609 = vpop.f32.mrb[0].mxu0
  %v1610 = vadd.f32 0.0, %v1609
  %v1611 = vpop.f32.mrb[0].mxu0
  %1612 = vmatprep.mubr.bf16.mxu0 0
  %1613 = vmatmul.mubr.bf16.gmra.mrb[0].mxu0 %v1493
  %v1614 = vpop.f32.mrb[0].mxu0
  %v1615 = vadd.f32 0.0, %v1614
  %v1616 = vpop.f32.mrb[0].mxu0
  %v1617 = vpop.f32.mrb[0].mxu0
  %v1618 = vadd.f32 0.0, %v1617
  %v1619 = vpop.f32.mrb[0].mxu0
  %1620 = vmatprep.mubr.bf16.mxu0 0
  %1621 = vmatmul.mubr.bf16.gmra.mrb[0].mxu0 %v1494
  %v1622 = vpop.f32.mrb[0].mxu0
  %v1623 = vadd.f32 0.0, %v1622
  %v1624 = vpop.f32.mrb[0].mxu0
  %v1625 = vpop.f32.mrb[0].mxu0
  %v1626 = vadd.f32 0.0, %v1625
  %v1627 = vpop.f32.mrb[0].mxu0
  %1628 = vmatprep.mubr.bf16.mxu0 0
  %1629 = vmatmul.mubr.bf16.gmra.mrb[0].mxu0 %v1495
  %v1630 = vpop.f32.mrb[0].mxu0
  %v1631 = vadd.f32 0.0, %v1630
  %v1632 = vpop.f32.mrb[0].mxu0
  %v1633 = vpop.f32.mrb[0].mxu0
  %v1634 = vadd.f32 0.0, %v1633
  %v1635 = vpop.f32.mrb[0].mxu0
  %1636 = vmatprep.mubr.bf16.mxu0 0
  %1637 = vmatmul.mubr.bf16.gmra.mrb[0].mxu0 %v1496
  %v1638 = vpop.f32.mrb[0].mxu0
  %v1639 = vadd.f32 0.0, %v1638
  %v1640 = vpop.f32.mrb[0].mxu0
  %v1641 = vpop.f32.mrb[0].mxu0
  %v1642 = vadd.f32 0.0, %v1641
  %v1643 = vpop.f32.mrb[0].mxu0
  %1644 = vmatprep.mubr.bf16.mxu0 0
  %1645 = vmatmul.mubr.bf16.gmra.mrb[0].mxu0 %v1497
  %v1646 = vpop.f32.mrb[0].mxu0
  %v1647 = vadd.f32 0.0, %v1646
  %v1648 = vpop.f32.mrb[0].mxu0
  %v1649 = vpop.f32.mrb[0].mxu0
  %v1650 = vadd.f32 0.0, %v1649
  %v1651 = vpop.f32.mrb[0].mxu0
  %1652 = vmatprep.mubr.bf16.mxu0 0
  %1653 = vmatmul.mubr.bf16.gmra.mrb[0].mxu0 %v1498
  %v1654 = vpop.f32.mrb[0].mxu0
  %v1655 = vadd.f32 0.0, %v1654
  %v1656 = vpop.f32.mrb[0].mxu0
  %v1657 = vpop.f32.mrb[0].mxu0
  %v1658 = vadd.f32 0.0, %v1657
  %v1659 = vpop.f32.mrb[0].mxu0
  %1660 = vdwg.mxu0
  %v1661 = vadd.f32 %v1363, %v1599
  %v1662 = vadd.f32 %v1364, %v1602
  %v1663 = vadd.f32 %v1365, %v1607
  %v1664 = vadd.f32 %v1366, %v1610
  %v1665 = vadd.f32 %v1367, %v1615
  %v1666 = vadd.f32 %v1368, %v1618
  %v1667 = vadd.f32 %v1369, %v1623
  %v1668 = vadd.f32 %v1370, %v1626
  %v1669 = vadd.f32 %v1371, %v1631
  %v1670 = vadd.f32 %v1372, %v1634
  %v1671 = vadd.f32 %v1373, %v1639
  %v1672 = vadd.f32 %v1374, %v1642
  %v1673 = vadd.f32 %v1375, %v1647
  %v1674 = vadd.f32 %v1376, %v1650
  %v1675 = vadd.f32 %v1377, %v1655
  %v1676 = vadd.f32 %v1378, %v1658
  %s1677 = scalar_lea.vmem %s0, 16
  %v1678 = vld [vmem:[%s1677] sm:$0xf]
  %v1679 = vld [vmem:[%s1677 + $0x8] sm:$0xf]
  %v1680 = vld [vmem:[%s1677 + $0x10] sm:$0xf]
  %v1681 = vld [vmem:[%s1677 + $0x18] sm:$0xf]
  %v1682 = vld [vmem:[%s1677 + $0x20] sm:$0xf]
  %v1683 = vld [vmem:[%s1677 + $0x28] sm:$0xf]
  %v1684 = vld [vmem:[%s1677 + $0x30] sm:$0xf]
  %v1685 = vld [vmem:[%s1677 + $0x38] sm:$0xf]
  %v1686 = vld [vmem:[%s1677 + $0x50] sm:$0xf]
  %v1687 = vld [vmem:[%s1677 + $0x58] sm:$0xf]
  %v1688 = vld [vmem:[%s1677 + $0x60] sm:$0xf]
  %v1689 = vld [vmem:[%s1677 + $0x68] sm:$0xf]
  %v1690 = vld [vmem:[%s1677 + $0x70] sm:$0xf]
  %v1691 = vld [vmem:[%s1677 + $0x78] sm:$0xf]
  %v1692 = vld [vmem:[%s1677 + $0x80] sm:$0xf]
  %v1693 = vld [vmem:[%s1677 + $0x88] sm:$0xf]
  %v1694 = vunpack.c.l.bf16 %v1678
  %v1695 = vunpack.c.l.bf16 %v1679
  %v1696 = vunpack.c.l.bf16 %v1680
  %v1697 = vunpack.c.l.bf16 %v1681
  %v1698 = vunpack.c.l.bf16 %v1682
  %v1699 = vunpack.c.l.bf16 %v1683
  %v1700 = vunpack.c.l.bf16 %v1684
  %v1701 = vunpack.c.l.bf16 %v1685
  %v1702 = vunpack.c.l.bf16 %v1686
  %v1703 = vunpack.c.l.bf16 %v1687
  %v1704 = vunpack.c.l.bf16 %v1688
  %v1705 = vunpack.c.l.bf16 %v1689
  %v1706 = vunpack.c.l.bf16 %v1690
  %v1707 = vunpack.c.l.bf16 %v1691
  %v1708 = vunpack.c.l.bf16 %v1692
  %v1709 = vunpack.c.l.bf16 %v1693
  %v1710 = vpack.c.bf16 %v1695, %v1694
  %v1711 = vpack.c.bf16 %v1697, %v1696
  %v1712 = vpack.c.bf16 %v1699, %v1698
  %v1713 = vpack.c.bf16 %v1701, %v1700
  %v1714 = vpack.c.bf16 %v1703, %v1702
  %v1715 = vpack.c.bf16 %v1705, %v1704
  %v1716 = vpack.c.bf16 %v1707, %v1706
  %v1717 = vpack.c.bf16 %v1709, %v1708
  %s1718 = scalar_lea.vmem %s1, 384
  %v1719 = vld [vmem:[%s1718] sm:$0xf]
  %v1720 = vld [vmem:[%s1718 + $0x4] sm:$0xf]
  %v1721 = vld [vmem:[%s1718 + $0x8] sm:$0xf]
  %v1722 = vld [vmem:[%s1718 + $0xc] sm:$0xf]
  %v1723 = vld [vmem:[%s1718 + $0x10] sm:$0xf]
  %v1724 = vld [vmem:[%s1718 + $0x14] sm:$0xf]
  %v1725 = vld [vmem:[%s1718 + $0x18] sm:$0xf]
  %v1726 = vld [vmem:[%s1718 + $0x1c] sm:$0xf]
  %v1727 = vld [vmem:[%s1718 + $0x20] sm:$0xf]
  %v1728 = vld [vmem:[%s1718 + $0x24] sm:$0xf]
  %v1729 = vld [vmem:[%s1718 + $0x28] sm:$0xf]
  %v1730 = vld [vmem:[%s1718 + $0x2c] sm:$0xf]
  %v1731 = vld [vmem:[%s1718 + $0x30] sm:$0xf]
  %v1732 = vld [vmem:[%s1718 + $0x34] sm:$0xf]
  %v1733 = vld [vmem:[%s1718 + $0x38] sm:$0xf]
  %v1734 = vld [vmem:[%s1718 + $0x3c] sm:$0xf]
  %v1751 = vunpack.c.l.b16 %v1719
  %v1752 = vunpack.c.l.b16 %v1720
  %v1753 = vunpack.c.l.b16 %v1721
  %v1754 = vunpack.c.l.b16 %v1722
  %v1755 = vunpack.c.l.b16 %v1723
  %v1756 = vunpack.c.l.b16 %v1724
  %v1757 = vunpack.c.l.b16 %v1725
  %v1758 = vunpack.c.l.b16 %v1726
  %v1759 = vunpack.c.l.b16 %v1727
  %v1760 = vunpack.c.l.b16 %v1728
  %v1761 = vunpack.c.l.b16 %v1729
  %v1762 = vunpack.c.l.b16 %v1730
  %v1763 = vunpack.c.l.b16 %v1731
  %v1764 = vunpack.c.l.b16 %v1732
  %v1765 = vunpack.c.l.b16 %v1733
  %v1766 = vunpack.c.l.b16 %v1734
  %v1767 = vpack.c.b16 %v1752, %v1751
  %v1768 = vpack.c.b16 %v1754, %v1753
  %v1769 = vpack.c.b16 %v1756, %v1755
  %v1770 = vpack.c.b16 %v1758, %v1757
  %v1771 = vpack.c.b16 %v1760, %v1759
  %v1772 = vpack.c.b16 %v1762, %v1761
  %v1773 = vpack.c.b16 %v1764, %v1763
  %v1774 = vpack.c.b16 %v1766, %v1765
  %1783 = vmatprep.subr.bf16.mxu0 0
  %1784 = vmatpush1.bf16.msra.mxu0 %v1767
  %1785 = vmatprep.subr.bf16.mxu0 0
  %1786 = vmatpush1.bf16.msra.mxu0 %v1768
  %1787 = vmatprep.subr.bf16.mxu0 0
  %1788 = vmatpush1.bf16.msra.mxu0 %v1769
  %1789 = vmatprep.subr.bf16.mxu0 0
  %1790 = vmatpush1.bf16.msra.mxu0 %v1770
  %1791 = vmatprep.subr.bf16.mxu0 0
  %1792 = vmatpush1.bf16.msra.mxu0 %v1771
  %1793 = vmatprep.subr.bf16.mxu0 0
  %1794 = vmatpush1.bf16.msra.mxu0 %v1772
  %1795 = vmatprep.subr.bf16.mxu0 0
  %1796 = vmatpush1.bf16.msra.mxu0 %v1773
  %1797 = vmatprep.subr.bf16.mxu0 0
  %1798 = vmatpush1.bf16.msra.mxu0 %v1774
  %1799 = vmatprep.subr.bf16.mxu0 0
  %1800 = vmatpush1.bf16.msra.mxu0 0
  %1801 = vmatprep.subr.bf16.mxu0 0
  %1802 = vmatpush1.bf16.msra.mxu0 0
  %1803 = vmatprep.subr.bf16.mxu0 0
  %1804 = vmatpush1.bf16.msra.mxu0 0
  %1805 = vmatprep.subr.bf16.mxu0 0
  %1806 = vmatpush1.bf16.msra.mxu0 0
  %1807 = vmatprep.subr.bf16.mxu0 0
  %1808 = vmatpush1.bf16.msra.mxu0 0
  %1809 = vmatprep.subr.bf16.mxu0 0
  %1810 = vmatpush1.bf16.msra.mxu0 0
  %1811 = vmatprep.subr.bf16.mxu0 0
  %1812 = vmatpush1.bf16.msra.mxu0 0
  %1813 = vmatprep.subr.bf16.mxu0 0
  %1814 = vmatpush1.bf16.msra.mxu0 0
  %1815 = vmatprep.mubr.bf16.mxu0 0
  %1816 = vmatmul.mubr.bf16.gmra.mrb[0].mxu0 %v1710
  %v1817 = vpop.f32.mrb[0].mxu0
  %v1818 = vadd.f32 0.0, %v1817
  %v1819 = vpop.f32.mrb[0].mxu0
  %v1820 = vpop.f32.mrb[0].mxu0
  %v1821 = vadd.f32 0.0, %v1820
  %v1822 = vpop.f32.mrb[0].mxu0
  %1823 = vmatprep.mubr.bf16.mxu0 0
  %1824 = vmatmul.mubr.bf16.gmra.mrb[0].mxu0 %v1711
  %v1825 = vpop.f32.mrb[0].mxu0
  %v1826 = vadd.f32 0.0, %v1825
  %v1827 = vpop.f32.mrb[0].mxu0
  %v1828 = vpop.f32.mrb[0].mxu0
  %v1829 = vadd.f32 0.0, %v1828
  %v1830 = vpop.f32.mrb[0].mxu0
  %1831 = vmatprep.mubr.bf16.mxu0 0
  %1832 = vmatmul.mubr.bf16.gmra.mrb[0].mxu0 %v1712
  %v1833 = vpop.f32.mrb[0].mxu0
  %v1834 = vadd.f32 0.0, %v1833
  %v1835 = vpop.f32.mrb[0].mxu0
  %v1836 = vpop.f32.mrb[0].mxu0
  %v1837 = vadd.f32 0.0, %v1836
  %v1838 = vpop.f32.mrb[0].mxu0
  %1839 = vmatprep.mubr.bf16.mxu0 0
  %1840 = vmatmul.mubr.bf16.gmra.mrb[0].mxu0 %v1713
  %v1841 = vpop.f32.mrb[0].mxu0
  %v1842 = vadd.f32 0.0, %v1841
  %v1843 = vpop.f32.mrb[0].mxu0
  %v1844 = vpop.f32.mrb[0].mxu0
  %v1845 = vadd.f32 0.0, %v1844
  %v1846 = vpop.f32.mrb[0].mxu0
  %1847 = vmatprep.mubr.bf16.mxu0 0
  %1848 = vmatmul.mubr.bf16.gmra.mrb[0].mxu0 %v1714
  %v1849 = vpop.f32.mrb[0].mxu0
  %v1850 = vadd.f32 0.0, %v1849
  %v1851 = vpop.f32.mrb[0].mxu0
  %v1852 = vpop.f32.mrb[0].mxu0
  %v1853 = vadd.f32 0.0, %v1852
  %v1854 = vpop.f32.mrb[0].mxu0
  %1855 = vmatprep.mubr.bf16.mxu0 0
  %1856 = vmatmul.mubr.bf16.gmra.mrb[0].mxu0 %v1715
  %v1857 = vpop.f32.mrb[0].mxu0
  %v1858 = vadd.f32 0.0, %v1857
  %v1859 = vpop.f32.mrb[0].mxu0
  %v1860 = vpop.f32.mrb[0].mxu0
  %v1861 = vadd.f32 0.0, %v1860
  %v1862 = vpop.f32.mrb[0].mxu0
  %1863 = vmatprep.mubr.bf16.mxu0 0
  %1864 = vmatmul.mubr.bf16.gmra.mrb[0].mxu0 %v1716
  %v1865 = vpop.f32.mrb[0].mxu0
  %v1866 = vadd.f32 0.0, %v1865
  %v1867 = vpop.f32.mrb[0].mxu0
  %v1868 = vpop.f32.mrb[0].mxu0
  %v1869 = vadd.f32 0.0, %v1868
  %v1870 = vpop.f32.mrb[0].mxu0
  %1871 = vmatprep.mubr.bf16.mxu0 0
  %1872 = vmatmul.mubr.bf16.gmra.mrb[0].mxu0 %v1717
  %v1873 = vpop.f32.mrb[0].mxu0
  %v1874 = vadd.f32 0.0, %v1873
  %v1875 = vpop.f32.mrb[0].mxu0
  %v1876 = vpop.f32.mrb[0].mxu0
  %v1877 = vadd.f32 0.0, %v1876
  %v1878 = vpop.f32.mrb[0].mxu0
  %1879 = vdwg.mxu0
  %v1880 = vadd.f32 %v1661, %v1818
  %v1881 = vadd.f32 %v1662, %v1821
  %v1882 = vadd.f32 %v1663, %v1826
  %v1883 = vadd.f32 %v1664, %v1829
  %v1884 = vadd.f32 %v1665, %v1834
  %v1885 = vadd.f32 %v1666, %v1837
  %v1886 = vadd.f32 %v1667, %v1842
  %v1887 = vadd.f32 %v1668, %v1845
  %v1888 = vadd.f32 %v1669, %v1850
  %v1889 = vadd.f32 %v1670, %v1853
  %v1890 = vadd.f32 %v1671, %v1858
  %v1891 = vadd.f32 %v1672, %v1861
  %v1892 = vadd.f32 %v1673, %v1866
  %v1893 = vadd.f32 %v1674, %v1869
  %v1894 = vadd.f32 %v1675, %v1874
  %v1895 = vadd.f32 %v1676, %v1877
  %v1896 = vld [vmem:[%s1677] sm:$0xf]
  %v1897 = vld [vmem:[%s1677 + $0x4] sm:$0x1]
  %v1898 = vld [vmem:[%s1677 + $0x8] sm:$0xf]
  %v1899 = vld [vmem:[%s1677 + $0xc] sm:$0x1]
  %v1900 = vld [vmem:[%s1677 + $0x10] sm:$0xf]
  %v1901 = vld [vmem:[%s1677 + $0x14] sm:$0x1]
  %v1902 = vld [vmem:[%s1677 + $0x18] sm:$0xf]
  %v1903 = vld [vmem:[%s1677 + $0x1c] sm:$0x1]
  %v1904 = vld [vmem:[%s1677 + $0x20] sm:$0xf]
  %v1905 = vld [vmem:[%s1677 + $0x24] sm:$0x1]
  %v1906 = vld [vmem:[%s1677 + $0x28] sm:$0xf]
  %v1907 = vld [vmem:[%s1677 + $0x2c] sm:$0x1]
  %v1908 = vld [vmem:[%s1677 + $0x30] sm:$0xf]
  %v1909 = vld [vmem:[%s1677 + $0x34] sm:$0x1]
  %v1910 = vld [vmem:[%s1677 + $0x38] sm:$0xf]
  %v1911 = vld [vmem:[%s1677 + $0x3c] sm:$0x1]
  %v1912 = vld [vmem:[%s1677 + $0x50] sm:$0xf]
  %v1913 = vld [vmem:[%s1677 + $0x54] sm:$0x1]
  %v1914 = vld [vmem:[%s1677 + $0x58] sm:$0xf]
  %v1915 = vld [vmem:[%s1677 + $0x5c] sm:$0x1]
  %v1916 = vld [vmem:[%s1677 + $0x60] sm:$0xf]
  %v1917 = vld [vmem:[%s1677 + $0x64] sm:$0x1]
  %v1918 = vld [vmem:[%s1677 + $0x68] sm:$0xf]
  %v1919 = vld [vmem:[%s1677 + $0x6c] sm:$0x1]
  %v1920 = vld [vmem:[%s1677 + $0x70] sm:$0xf]
  %v1921 = vld [vmem:[%s1677 + $0x74] sm:$0x1]
  %v1922 = vld [vmem:[%s1677 + $0x78] sm:$0xf]
  %v1923 = vld [vmem:[%s1677 + $0x7c] sm:$0x1]
  %v1924 = vld [vmem:[%s1677 + $0x80] sm:$0xf]
  %v1925 = vld [vmem:[%s1677 + $0x84] sm:$0x1]
  %v1926 = vld [vmem:[%s1677 + $0x88] sm:$0xf]
  %v1927 = vld [vmem:[%s1677 + $0x8c] sm:$0x1]
  %v1928 = vunpack.c.l.bf16 %v1896
  %v1929 = vunpack.c.l.bf16 %v1897
  %v1930 = vunpack.c.l.bf16 %v1898
  %v1931 = vunpack.c.l.bf16 %v1899
  %v1932 = vunpack.c.l.bf16 %v1900
  %v1933 = vunpack.c.l.bf16 %v1901
  %v1934 = vunpack.c.l.bf16 %v1902
  %v1935 = vunpack.c.l.bf16 %v1903
  %v1936 = vunpack.c.l.bf16 %v1904
  %v1937 = vunpack.c.l.bf16 %v1905
  %v1938 = vunpack.c.l.bf16 %v1906
  %v1939 = vunpack.c.l.bf16 %v1907
  %v1940 = vunpack.c.l.bf16 %v1908
  %v1941 = vunpack.c.l.bf16 %v1909
  %v1942 = vunpack.c.l.bf16 %v1910
  %v1943 = vunpack.c.l.bf16 %v1911
  %v1944 = vunpack.c.l.bf16 %v1912
  %v1945 = vunpack.c.l.bf16 %v1913
  %v1946 = vunpack.c.l.bf16 %v1914
  %v1947 = vunpack.c.l.bf16 %v1915
  %v1948 = vunpack.c.l.bf16 %v1916
  %v1949 = vunpack.c.l.bf16 %v1917
  %v1950 = vunpack.c.l.bf16 %v1918
  %v1951 = vunpack.c.l.bf16 %v1919
  %v1952 = vunpack.c.l.bf16 %v1920
  %v1953 = vunpack.c.l.bf16 %v1921
  %v1954 = vunpack.c.l.bf16 %v1922
  %v1955 = vunpack.c.l.bf16 %v1923
  %v1956 = vunpack.c.l.bf16 %v1924
  %v1957 = vunpack.c.l.bf16 %v1925
  %v1958 = vunpack.c.l.bf16 %v1926
  %v1959 = vunpack.c.l.bf16 %v1927
  %v1992 = vrot.slane %v1928, 1
  %v1993 = vrot.slane %v1929, 1
  %v1994 = vsel %vm135, %v1992, %v1993
  %v1995 = vrot.slane %v1930, 1
  %v1996 = vrot.slane %v1931, 1
  %v1997 = vsel %vm135, %v1995, %v1996
  %v1998 = vrot.slane %v1932, 1
  %v1999 = vrot.slane %v1933, 1
  %v2000 = vsel %vm135, %v1998, %v1999
  %v2001 = vrot.slane %v1934, 1
  %v2002 = vrot.slane %v1935, 1
  %v2003 = vsel %vm135, %v2001, %v2002
  %v2004 = vrot.slane %v1936, 1
  %v2005 = vrot.slane %v1937, 1
  %v2006 = vsel %vm135, %v2004, %v2005
  %v2007 = vrot.slane %v1938, 1
  %v2008 = vrot.slane %v1939, 1
  %v2009 = vsel %vm135, %v2007, %v2008
  %v2010 = vrot.slane %v1940, 1
  %v2011 = vrot.slane %v1941, 1
  %v2012 = vsel %vm135, %v2010, %v2011
  %v2013 = vrot.slane %v1942, 1
  %v2014 = vrot.slane %v1943, 1
  %v2015 = vsel %vm135, %v2013, %v2014
  %v2016 = vrot.slane %v1944, 1
  %v2017 = vrot.slane %v1945, 1
  %v2018 = vsel %vm135, %v2016, %v2017
  %v2019 = vrot.slane %v1946, 1
  %v2020 = vrot.slane %v1947, 1
  %v2021 = vsel %vm135, %v2019, %v2020
  %v2022 = vrot.slane %v1948, 1
  %v2023 = vrot.slane %v1949, 1
  %v2024 = vsel %vm135, %v2022, %v2023
  %v2025 = vrot.slane %v1950, 1
  %v2026 = vrot.slane %v1951, 1
  %v2027 = vsel %vm135, %v2025, %v2026
  %v2028 = vrot.slane %v1952, 1
  %v2029 = vrot.slane %v1953, 1
  %v2030 = vsel %vm135, %v2028, %v2029
  %v2031 = vrot.slane %v1954, 1
  %v2032 = vrot.slane %v1955, 1
  %v2033 = vsel %vm135, %v2031, %v2032
  %v2034 = vrot.slane %v1956, 1
  %v2035 = vrot.slane %v1957, 1
  %v2036 = vsel %vm135, %v2034, %v2035
  %v2037 = vrot.slane %v1958, 1
  %v2038 = vrot.slane %v1959, 1
  %v2039 = vsel %vm135, %v2037, %v2038
  %v2056 = vpack.c.bf16 %v1997, %v1994
  %v2057 = vpack.c.bf16 %v2003, %v2000
  %v2058 = vpack.c.bf16 %v2009, %v2006
  %v2059 = vpack.c.bf16 %v2015, %v2012
  %v2060 = vpack.c.bf16 %v2021, %v2018
  %v2061 = vpack.c.bf16 %v2027, %v2024
  %v2062 = vpack.c.bf16 %v2033, %v2030
  %v2063 = vpack.c.bf16 %v2039, %v2036
  %s2064 = scalar_lea.vmem %s1, 448
  %v2065 = vld [vmem:[%s2064] sm:$0xf]
  %v2066 = vld [vmem:[%s2064 + $0x4] sm:$0xf]
  %v2067 = vld [vmem:[%s2064 + $0x8] sm:$0xf]
  %v2068 = vld [vmem:[%s2064 + $0xc] sm:$0xf]
  %v2069 = vld [vmem:[%s2064 + $0x10] sm:$0xf]
  %v2070 = vld [vmem:[%s2064 + $0x14] sm:$0xf]
  %v2071 = vld [vmem:[%s2064 + $0x18] sm:$0xf]
  %v2072 = vld [vmem:[%s2064 + $0x1c] sm:$0xf]
  %v2073 = vld [vmem:[%s2064 + $0x20] sm:$0xf]
  %v2074 = vld [vmem:[%s2064 + $0x24] sm:$0xf]
  %v2075 = vld [vmem:[%s2064 + $0x28] sm:$0xf]
  %v2076 = vld [vmem:[%s2064 + $0x2c] sm:$0xf]
  %v2077 = vld [vmem:[%s2064 + $0x30] sm:$0xf]
  %v2078 = vld [vmem:[%s2064 + $0x34] sm:$0xf]
  %v2079 = vld [vmem:[%s2064 + $0x38] sm:$0xf]
  %v2080 = vld [vmem:[%s2064 + $0x3c] sm:$0xf]
  %v2097 = vunpack.c.l.b16 %v2065
  %v2098 = vunpack.c.l.b16 %v2066
  %v2099 = vunpack.c.l.b16 %v2067
  %v2100 = vunpack.c.l.b16 %v2068
  %v2101 = vunpack.c.l.b16 %v2069
  %v2102 = vunpack.c.l.b16 %v2070
  %v2103 = vunpack.c.l.b16 %v2071
  %v2104 = vunpack.c.l.b16 %v2072
  %v2105 = vunpack.c.l.b16 %v2073
  %v2106 = vunpack.c.l.b16 %v2074
  %v2107 = vunpack.c.l.b16 %v2075
  %v2108 = vunpack.c.l.b16 %v2076
  %v2109 = vunpack.c.l.b16 %v2077
  %v2110 = vunpack.c.l.b16 %v2078
  %v2111 = vunpack.c.l.b16 %v2079
  %v2112 = vunpack.c.l.b16 %v2080
  %v2113 = vpack.c.b16 %v2098, %v2097
  %v2114 = vpack.c.b16 %v2100, %v2099
  %v2115 = vpack.c.b16 %v2102, %v2101
  %v2116 = vpack.c.b16 %v2104, %v2103
  %v2117 = vpack.c.b16 %v2106, %v2105
  %v2118 = vpack.c.b16 %v2108, %v2107
  %v2119 = vpack.c.b16 %v2110, %v2109
  %v2120 = vpack.c.b16 %v2112, %v2111
  %2129 = vmatprep.subr.bf16.mxu0 0
  %2130 = vmatpush1.bf16.msra.mxu0 %v2113
  %2131 = vmatprep.subr.bf16.mxu0 0
  %2132 = vmatpush1.bf16.msra.mxu0 %v2114
  %2133 = vmatprep.subr.bf16.mxu0 0
  %2134 = vmatpush1.bf16.msra.mxu0 %v2115
  %2135 = vmatprep.subr.bf16.mxu0 0
  %2136 = vmatpush1.bf16.msra.mxu0 %v2116
  %2137 = vmatprep.subr.bf16.mxu0 0
  %2138 = vmatpush1.bf16.msra.mxu0 %v2117
  %2139 = vmatprep.subr.bf16.mxu0 0
  %2140 = vmatpush1.bf16.msra.mxu0 %v2118
  %2141 = vmatprep.subr.bf16.mxu0 0
  %2142 = vmatpush1.bf16.msra.mxu0 %v2119
  %2143 = vmatprep.subr.bf16.mxu0 0
  %2144 = vmatpush1.bf16.msra.mxu0 %v2120
  %2145 = vmatprep.subr.bf16.mxu0 0
  %2146 = vmatpush1.bf16.msra.mxu0 0
  %2147 = vmatprep.subr.bf16.mxu0 0
  %2148 = vmatpush1.bf16.msra.mxu0 0
  %2149 = vmatprep.subr.bf16.mxu0 0
  %2150 = vmatpush1.bf16.msra.mxu0 0
  %2151 = vmatprep.subr.bf16.mxu0 0
  %2152 = vmatpush1.bf16.msra.mxu0 0
  %2153 = vmatprep.subr.bf16.mxu0 0
  %2154 = vmatpush1.bf16.msra.mxu0 0
  %2155 = vmatprep.subr.bf16.mxu0 0
  %2156 = vmatpush1.bf16.msra.mxu0 0
  %2157 = vmatprep.subr.bf16.mxu0 0
  %2158 = vmatpush1.bf16.msra.mxu0 0
  %2159 = vmatprep.subr.bf16.mxu0 0
  %2160 = vmatpush1.bf16.msra.mxu0 0
  %2161 = vmatprep.mubr.bf16.mxu0 0
  %2162 = vmatmul.mubr.bf16.gmra.mrb[0].mxu0 %v2056
  %v2163 = vpop.f32.mrb[0].mxu0
  %v2164 = vadd.f32 0.0, %v2163
  %v2165 = vpop.f32.mrb[0].mxu0
  %v2166 = vpop.f32.mrb[0].mxu0
  %v2167 = vadd.f32 0.0, %v2166
  %v2168 = vpop.f32.mrb[0].mxu0
  %2169 = vmatprep.mubr.bf16.mxu0 0
  %2170 = vmatmul.mubr.bf16.gmra.mrb[0].mxu0 %v2057
  %v2171 = vpop.f32.mrb[0].mxu0
  %v2172 = vadd.f32 0.0, %v2171
  %v2173 = vpop.f32.mrb[0].mxu0
  %v2174 = vpop.f32.mrb[0].mxu0
  %v2175 = vadd.f32 0.0, %v2174
  %v2176 = vpop.f32.mrb[0].mxu0
  %2177 = vmatprep.mubr.bf16.mxu0 0
  %2178 = vmatmul.mubr.bf16.gmra.mrb[0].mxu0 %v2058
  %v2179 = vpop.f32.mrb[0].mxu0
  %v2180 = vadd.f32 0.0, %v2179
  %v2181 = vpop.f32.mrb[0].mxu0
  %v2182 = vpop.f32.mrb[0].mxu0
  %v2183 = vadd.f32 0.0, %v2182
  %v2184 = vpop.f32.mrb[0].mxu0
  %2185 = vmatprep.mubr.bf16.mxu0 0
  %2186 = vmatmul.mubr.bf16.gmra.mrb[0].mxu0 %v2059
  %v2187 = vpop.f32.mrb[0].mxu0
  %v2188 = vadd.f32 0.0, %v2187
  %v2189 = vpop.f32.mrb[0].mxu0
  %v2190 = vpop.f32.mrb[0].mxu0
  %v2191 = vadd.f32 0.0, %v2190
  %v2192 = vpop.f32.mrb[0].mxu0
  %2193 = vmatprep.mubr.bf16.mxu0 0
  %2194 = vmatmul.mubr.bf16.gmra.mrb[0].mxu0 %v2060
  %v2195 = vpop.f32.mrb[0].mxu0
  %v2196 = vadd.f32 0.0, %v2195
  %v2197 = vpop.f32.mrb[0].mxu0
  %v2198 = vpop.f32.mrb[0].mxu0
  %v2199 = vadd.f32 0.0, %v2198
  %v2200 = vpop.f32.mrb[0].mxu0
  %2201 = vmatprep.mubr.bf16.mxu0 0
  %2202 = vmatmul.mubr.bf16.gmra.mrb[0].mxu0 %v2061
  %v2203 = vpop.f32.mrb[0].mxu0
  %v2204 = vadd.f32 0.0, %v2203
  %v2205 = vpop.f32.mrb[0].mxu0
  %v2206 = vpop.f32.mrb[0].mxu0
  %v2207 = vadd.f32 0.0, %v2206
  %v2208 = vpop.f32.mrb[0].mxu0
  %2209 = vmatprep.mubr.bf16.mxu0 0
  %2210 = vmatmul.mubr.bf16.gmra.mrb[0].mxu0 %v2062
  %v2211 = vpop.f32.mrb[0].mxu0
  %v2212 = vadd.f32 0.0, %v2211
  %v2213 = vpop.f32.mrb[0].mxu0
  %v2214 = vpop.f32.mrb[0].mxu0
  %v2215 = vadd.f32 0.0, %v2214
  %v2216 = vpop.f32.mrb[0].mxu0
  %2217 = vmatprep.mubr.bf16.mxu0 0
  %2218 = vmatmul.mubr.bf16.gmra.mrb[0].mxu0 %v2063
  %v2219 = vpop.f32.mrb[0].mxu0
  %v2220 = vadd.f32 0.0, %v2219
  %v2221 = vpop.f32.mrb[0].mxu0
  %v2222 = vpop.f32.mrb[0].mxu0
  %v2223 = vadd.f32 0.0, %v2222
  %v2224 = vpop.f32.mrb[0].mxu0
  %2225 = vdwg.mxu0
  %v2226 = vadd.f32 %v1880, %v2164
  %v2227 = vadd.f32 %v1881, %v2167
  %v2228 = vadd.f32 %v1882, %v2172
  %v2229 = vadd.f32 %v1883, %v2175
  %v2230 = vadd.f32 %v1884, %v2180
  %v2231 = vadd.f32 %v1885, %v2183
  %v2232 = vadd.f32 %v1886, %v2188
  %v2233 = vadd.f32 %v1887, %v2191
  %v2234 = vadd.f32 %v1888, %v2196
  %v2235 = vadd.f32 %v1889, %v2199
  %v2236 = vadd.f32 %v1890, %v2204
  %v2237 = vadd.f32 %v1891, %v2207
  %v2238 = vadd.f32 %v1892, %v2212
  %v2239 = vadd.f32 %v1893, %v2215
  %v2240 = vadd.f32 %v1894, %v2220
  %v2241 = vadd.f32 %v1895, %v2223
  %v2242 = vld [vmem:[%s1677] sm:$0xe]
  %v2243 = vld [vmem:[%s1677 + $0x8] sm:$0xe]
  %v2244 = vld [vmem:[%s1677 + $0x10] sm:$0xe]
  %v2245 = vld [vmem:[%s1677 + $0x18] sm:$0xe]
  %v2246 = vld [vmem:[%s1677 + $0x20] sm:$0xe]
  %v2247 = vld [vmem:[%s1677 + $0x28] sm:$0xe]
  %v2248 = vld [vmem:[%s1677 + $0x30] sm:$0xe]
  %v2249 = vld [vmem:[%s1677 + $0x38] sm:$0xe]
  %v2250 = vld [vmem:[%s1677 + $0x50] sm:$0xe]
  %v2251 = vld [vmem:[%s1677 + $0x58] sm:$0xe]
  %v2252 = vld [vmem:[%s1677 + $0x60] sm:$0xe]
  %v2253 = vld [vmem:[%s1677 + $0x68] sm:$0xe]
  %v2254 = vld [vmem:[%s1677 + $0x70] sm:$0xe]
  %v2255 = vld [vmem:[%s1677 + $0x78] sm:$0xe]
  %v2256 = vld [vmem:[%s1677 + $0x80] sm:$0xe]
  %v2257 = vld [vmem:[%s1677 + $0x88] sm:$0xe]
  %v2258 = vunpack.c.l.bf16 %v2242
  %v2259 = vunpack.c.l.bf16 %v2243
  %v2260 = vunpack.c.l.bf16 %v2244
  %v2261 = vunpack.c.l.bf16 %v2245
  %v2262 = vunpack.c.l.bf16 %v2246
  %v2263 = vunpack.c.l.bf16 %v2247
  %v2264 = vunpack.c.l.bf16 %v2248
  %v2265 = vunpack.c.l.bf16 %v2249
  %v2266 = vunpack.c.l.bf16 %v2250
  %v2267 = vunpack.c.l.bf16 %v2251
  %v2268 = vunpack.c.l.bf16 %v2252
  %v2269 = vunpack.c.l.bf16 %v2253
  %v2270 = vunpack.c.l.bf16 %v2254
  %v2271 = vunpack.c.l.bf16 %v2255
  %v2272 = vunpack.c.l.bf16 %v2256
  %v2273 = vunpack.c.l.bf16 %v2257
  %v2290 = vrot.slane %v2258, 2
  %v2291 = vrot.slane %v1929, 2
  %v2292 = vsel %vm563, %v2290, %v2291
  %v2293 = vrot.slane %v2259, 2
  %v2294 = vrot.slane %v1931, 2
  %v2295 = vsel %vm563, %v2293, %v2294
  %v2296 = vrot.slane %v2260, 2
  %v2297 = vrot.slane %v1933, 2
  %v2298 = vsel %vm563, %v2296, %v2297
  %v2299 = vrot.slane %v2261, 2
  %v2300 = vrot.slane %v1935, 2
  %v2301 = vsel %vm563, %v2299, %v2300
  %v2302 = vrot.slane %v2262, 2
  %v2303 = vrot.slane %v1937, 2
  %v2304 = vsel %vm563, %v2302, %v2303
  %v2305 = vrot.slane %v2263, 2
  %v2306 = vrot.slane %v1939, 2
  %v2307 = vsel %vm563, %v2305, %v2306
  %v2308 = vrot.slane %v2264, 2
  %v2309 = vrot.slane %v1941, 2
  %v2310 = vsel %vm563, %v2308, %v2309
  %v2311 = vrot.slane %v2265, 2
  %v2312 = vrot.slane %v1943, 2
  %v2313 = vsel %vm563, %v2311, %v2312
  %v2314 = vrot.slane %v2266, 2
  %v2315 = vrot.slane %v1945, 2
  %v2316 = vsel %vm563, %v2314, %v2315
  %v2317 = vrot.slane %v2267, 2
  %v2318 = vrot.slane %v1947, 2
  %v2319 = vsel %vm563, %v2317, %v2318
  %v2320 = vrot.slane %v2268, 2
  %v2321 = vrot.slane %v1949, 2
  %v2322 = vsel %vm563, %v2320, %v2321
  %v2323 = vrot.slane %v2269, 2
  %v2324 = vrot.slane %v1951, 2
  %v2325 = vsel %vm563, %v2323, %v2324
  %v2326 = vrot.slane %v2270, 2
  %v2327 = vrot.slane %v1953, 2
  %v2328 = vsel %vm563, %v2326, %v2327
  %v2329 = vrot.slane %v2271, 2
  %v2330 = vrot.slane %v1955, 2
  %v2331 = vsel %vm563, %v2329, %v2330
  %v2332 = vrot.slane %v2272, 2
  %v2333 = vrot.slane %v1957, 2
  %v2334 = vsel %vm563, %v2332, %v2333
  %v2335 = vrot.slane %v2273, 2
  %v2336 = vrot.slane %v1959, 2
  %v2337 = vsel %vm563, %v2335, %v2336
  %v2354 = vpack.c.bf16 %v2295, %v2292
  %v2355 = vpack.c.bf16 %v2301, %v2298
  %v2356 = vpack.c.bf16 %v2307, %v2304
  %v2357 = vpack.c.bf16 %v2313, %v2310
  %v2358 = vpack.c.bf16 %v2319, %v2316
  %v2359 = vpack.c.bf16 %v2325, %v2322
  %v2360 = vpack.c.bf16 %v2331, %v2328
  %v2361 = vpack.c.bf16 %v2337, %v2334
  %s2362 = scalar_lea.vmem %s1, 512
  %v2363 = vld [vmem:[%s2362] sm:$0xf]
  %v2364 = vld [vmem:[%s2362 + $0x4] sm:$0xf]
  %v2365 = vld [vmem:[%s2362 + $0x8] sm:$0xf]
  %v2366 = vld [vmem:[%s2362 + $0xc] sm:$0xf]
  %v2367 = vld [vmem:[%s2362 + $0x10] sm:$0xf]
  %v2368 = vld [vmem:[%s2362 + $0x14] sm:$0xf]
  %v2369 = vld [vmem:[%s2362 + $0x18] sm:$0xf]
  %v2370 = vld [vmem:[%s2362 + $0x1c] sm:$0xf]
  %v2371 = vld [vmem:[%s2362 + $0x20] sm:$0xf]
  %v2372 = vld [vmem:[%s2362 + $0x24] sm:$0xf]
  %v2373 = vld [vmem:[%s2362 + $0x28] sm:$0xf]
  %v2374 = vld [vmem:[%s2362 + $0x2c] sm:$0xf]
  %v2375 = vld [vmem:[%s2362 + $0x30] sm:$0xf]
  %v2376 = vld [vmem:[%s2362 + $0x34] sm:$0xf]
  %v2377 = vld [vmem:[%s2362 + $0x38] sm:$0xf]
  %v2378 = vld [vmem:[%s2362 + $0x3c] sm:$0xf]
  %v2395 = vunpack.c.l.b16 %v2363
  %v2396 = vunpack.c.l.b16 %v2364
  %v2397 = vunpack.c.l.b16 %v2365
  %v2398 = vunpack.c.l.b16 %v2366
  %v2399 = vunpack.c.l.b16 %v2367
  %v2400 = vunpack.c.l.b16 %v2368
  %v2401 = vunpack.c.l.b16 %v2369
  %v2402 = vunpack.c.l.b16 %v2370
  %v2403 = vunpack.c.l.b16 %v2371
  %v2404 = vunpack.c.l.b16 %v2372
  %v2405 = vunpack.c.l.b16 %v2373
  %v2406 = vunpack.c.l.b16 %v2374
  %v2407 = vunpack.c.l.b16 %v2375
  %v2408 = vunpack.c.l.b16 %v2376
  %v2409 = vunpack.c.l.b16 %v2377
  %v2410 = vunpack.c.l.b16 %v2378
  %v2411 = vpack.c.b16 %v2396, %v2395
  %v2412 = vpack.c.b16 %v2398, %v2397
  %v2413 = vpack.c.b16 %v2400, %v2399
  %v2414 = vpack.c.b16 %v2402, %v2401
  %v2415 = vpack.c.b16 %v2404, %v2403
  %v2416 = vpack.c.b16 %v2406, %v2405
  %v2417 = vpack.c.b16 %v2408, %v2407
  %v2418 = vpack.c.b16 %v2410, %v2409
  %2427 = vmatprep.subr.bf16.mxu0 0
  %2428 = vmatpush1.bf16.msra.mxu0 %v2411
  %2429 = vmatprep.subr.bf16.mxu0 0
  %2430 = vmatpush1.bf16.msra.mxu0 %v2412
  %2431 = vmatprep.subr.bf16.mxu0 0
  %2432 = vmatpush1.bf16.msra.mxu0 %v2413
  %2433 = vmatprep.subr.bf16.mxu0 0
  %2434 = vmatpush1.bf16.msra.mxu0 %v2414
  %2435 = vmatprep.subr.bf16.mxu0 0
  %2436 = vmatpush1.bf16.msra.mxu0 %v2415
  %2437 = vmatprep.subr.bf16.mxu0 0
  %2438 = vmatpush1.bf16.msra.mxu0 %v2416
  %2439 = vmatprep.subr.bf16.mxu0 0
  %2440 = vmatpush1.bf16.msra.mxu0 %v2417
  %2441 = vmatprep.subr.bf16.mxu0 0
  %2442 = vmatpush1.bf16.msra.mxu0 %v2418
  %2443 = vmatprep.subr.bf16.mxu0 0
  %2444 = vmatpush1.bf16.msra.mxu0 0
  %2445 = vmatprep.subr.bf16.mxu0 0
  %2446 = vmatpush1.bf16.msra.mxu0 0
  %2447 = vmatprep.subr.bf16.mxu0 0
  %2448 = vmatpush1.bf16.msra.mxu0 0
  %2449 = vmatprep.subr.bf16.mxu0 0
  %2450 = vmatpush1.bf16.msra.mxu0 0
  %2451 = vmatprep.subr.bf16.mxu0 0
  %2452 = vmatpush1.bf16.msra.mxu0 0
  %2453 = vmatprep.subr.bf16.mxu0 0
  %2454 = vmatpush1.bf16.msra.mxu0 0
  %2455 = vmatprep.subr.bf16.mxu0 0
  %2456 = vmatpush1.bf16.msra.mxu0 0
  %2457 = vmatprep.subr.bf16.mxu0 0
  %2458 = vmatpush1.bf16.msra.mxu0 0
  %2459 = vmatprep.mubr.bf16.mxu0 0
  %2460 = vmatmul.mubr.bf16.gmra.mrb[0].mxu0 %v2354
  %v2461 = vpop.f32.mrb[0].mxu0
  %v2462 = vadd.f32 0.0, %v2461
  %v2463 = vpop.f32.mrb[0].mxu0
  %v2464 = vpop.f32.mrb[0].mxu0
  %v2465 = vadd.f32 0.0, %v2464
  %v2466 = vpop.f32.mrb[0].mxu0
  %2467 = vmatprep.mubr.bf16.mxu0 0
  %2468 = vmatmul.mubr.bf16.gmra.mrb[0].mxu0 %v2355
  %v2469 = vpop.f32.mrb[0].mxu0
  %v2470 = vadd.f32 0.0, %v2469
  %v2471 = vpop.f32.mrb[0].mxu0
  %v2472 = vpop.f32.mrb[0].mxu0
  %v2473 = vadd.f32 0.0, %v2472
  %v2474 = vpop.f32.mrb[0].mxu0
  %2475 = vmatprep.mubr.bf16.mxu0 0
  %2476 = vmatmul.mubr.bf16.gmra.mrb[0].mxu0 %v2356
  %v2477 = vpop.f32.mrb[0].mxu0
  %v2478 = vadd.f32 0.0, %v2477
  %v2479 = vpop.f32.mrb[0].mxu0
  %v2480 = vpop.f32.mrb[0].mxu0
  %v2481 = vadd.f32 0.0, %v2480
  %v2482 = vpop.f32.mrb[0].mxu0
  %2483 = vmatprep.mubr.bf16.mxu0 0
  %2484 = vmatmul.mubr.bf16.gmra.mrb[0].mxu0 %v2357
  %v2485 = vpop.f32.mrb[0].mxu0
  %v2486 = vadd.f32 0.0, %v2485
  %v2487 = vpop.f32.mrb[0].mxu0
  %v2488 = vpop.f32.mrb[0].mxu0
  %v2489 = vadd.f32 0.0, %v2488
  %v2490 = vpop.f32.mrb[0].mxu0
  %2491 = vmatprep.mubr.bf16.mxu0 0
  %2492 = vmatmul.mubr.bf16.gmra.mrb[0].mxu0 %v2358
  %v2493 = vpop.f32.mrb[0].mxu0
  %v2494 = vadd.f32 0.0, %v2493
  %v2495 = vpop.f32.mrb[0].mxu0
  %v2496 = vpop.f32.mrb[0].mxu0
  %v2497 = vadd.f32 0.0, %v2496
  %v2498 = vpop.f32.mrb[0].mxu0
  %2499 = vmatprep.mubr.bf16.mxu0 0
  %2500 = vmatmul.mubr.bf16.gmra.mrb[0].mxu0 %v2359
  %v2501 = vpop.f32.mrb[0].mxu0
  %v2502 = vadd.f32 0.0, %v2501
  %v2503 = vpop.f32.mrb[0].mxu0
  %v2504 = vpop.f32.mrb[0].mxu0
  %v2505 = vadd.f32 0.0, %v2504
  %v2506 = vpop.f32.mrb[0].mxu0
  %2507 = vmatprep.mubr.bf16.mxu0 0
  %2508 = vmatmul.mubr.bf16.gmra.mrb[0].mxu0 %v2360
  %v2509 = vpop.f32.mrb[0].mxu0
  %v2510 = vadd.f32 0.0, %v2509
  %v2511 = vpop.f32.mrb[0].mxu0
  %v2512 = vpop.f32.mrb[0].mxu0
  %v2513 = vadd.f32 0.0, %v2512
  %v2514 = vpop.f32.mrb[0].mxu0
  %2515 = vmatprep.mubr.bf16.mxu0 0
  %2516 = vmatmul.mubr.bf16.gmra.mrb[0].mxu0 %v2361
  %v2517 = vpop.f32.mrb[0].mxu0
  %v2518 = vadd.f32 0.0, %v2517
  %v2519 = vpop.f32.mrb[0].mxu0
  %v2520 = vpop.f32.mrb[0].mxu0
  %v2521 = vadd.f32 0.0, %v2520
  %v2522 = vpop.f32.mrb[0].mxu0
  %2523 = vdwg.mxu0
  %v2524 = vadd.f32 %v2226, %v2462
  %v2525 = vadd.f32 %v2227, %v2465
  %v2526 = vadd.f32 %v2228, %v2470
  %v2527 = vadd.f32 %v2229, %v2473
  %v2528 = vadd.f32 %v2230, %v2478
  %v2529 = vadd.f32 %v2231, %v2481
  %v2530 = vadd.f32 %v2232, %v2486
  %v2531 = vadd.f32 %v2233, %v2489
  %v2532 = vadd.f32 %v2234, %v2494
  %v2533 = vadd.f32 %v2235, %v2497
  %v2534 = vadd.f32 %v2236, %v2502
  %v2535 = vadd.f32 %v2237, %v2505
  %v2536 = vadd.f32 %v2238, %v2510
  %v2537 = vadd.f32 %v2239, %v2513
  %v2538 = vadd.f32 %v2240, %v2518
  %v2539 = vadd.f32 %v2241, %v2521
  %v2540 = vpack.c.bf16 %v2524, %v2524
  %v2541 = vpack.c.bf16 %v2525, %v2525
  %v2542 = vpack.c.bf16 %v2526, %v2526
  %v2543 = vpack.c.bf16 %v2527, %v2527
  %v2544 = vpack.c.bf16 %v2528, %v2528
  %v2545 = vpack.c.bf16 %v2529, %v2529
  %v2546 = vpack.c.bf16 %v2530, %v2530
  %v2547 = vpack.c.bf16 %v2531, %v2531
  %v2548 = vpack.c.bf16 %v2532, %v2532
  %v2549 = vpack.c.bf16 %v2533, %v2533
  %v2550 = vpack.c.bf16 %v2534, %v2534
  %v2551 = vpack.c.bf16 %v2535, %v2535
  %v2552 = vpack.c.bf16 %v2536, %v2536
  %v2553 = vpack.c.bf16 %v2537, %v2537
  %v2554 = vpack.c.bf16 %v2538, %v2538
  %v2555 = vpack.c.bf16 %v2539, %v2539
  %2556 = vst [vmem:[%s2] sm:$0xf] %v2540
  %2557 = vst [vmem:[%s2 + $0x4] sm:$0xf] %v2541
  %2558 = vst [vmem:[%s2 + $0x8] sm:$0xf] %v2542
  %2559 = vst [vmem:[%s2 + $0xc] sm:$0xf] %v2543
  %2560 = vst [vmem:[%s2 + $0x10] sm:$0xf] %v2544
  %2561 = vst [vmem:[%s2 + $0x14] sm:$0xf] %v2545
  %2562 = vst [vmem:[%s2 + $0x18] sm:$0xf] %v2546
  %2563 = vst [vmem:[%s2 + $0x1c] sm:$0xf] %v2547
  %2564 = vst [vmem:[%s2 + $0x20] sm:$0xf] %v2548
  %2565 = vst [vmem:[%s2 + $0x24] sm:$0xf] %v2549
  %2566 = vst [vmem:[%s2 + $0x28] sm:$0xf] %v2550
  %2567 = vst [vmem:[%s2 + $0x2c] sm:$0xf] %v2551
  %2568 = vst [vmem:[%s2 + $0x30] sm:$0xf] %v2552
  %2569 = vst [vmem:[%s2 + $0x34] sm:$0xf] %v2553
  %2570 = vst [vmem:[%s2 + $0x38] sm:$0xf] %v2554
  %2571 = vst [vmem:[%s2 + $0x3c] sm:$0xf] %v2555
  %v2572 = vadd.f32 %v2524, %v2525
  %v2573 = vadd.f32 %v2572, %v2526
  %v2574 = vadd.f32 %v2573, %v2527
  %v2575 = vadd.f32 %v2574, %v2528
  %v2576 = vadd.f32 %v2575, %v2529
  %v2577 = vadd.f32 %v2576, %v2530
  %v2578 = vadd.f32 %v2577, %v2531
  %v2579 = vadd.f32 %v2578, %v2532
  %v2580 = vadd.f32 %v2579, %v2533
  %v2581 = vadd.f32 %v2580, %v2534
  %v2582 = vadd.f32 %v2581, %v2535
  %v2583 = vadd.f32 %v2582, %v2536
  %v2584 = vadd.f32 %v2583, %v2537
  %v2585 = vadd.f32 %v2584, %v2538
  %v2586 = vadd.f32 %v2585, %v2539
  %v2587 = vrot.slane %v2586, 4
  %v2588 = vadd.f32 %v2586, %v2587
  %v2589 = vrot.slane %v2588, 2
  %v2590 = vadd.f32 %v2588, %v2589
  %v2591 = vrot.slane %v2590, 1
  %v2592 = vadd.f32 %v2590, %v2591
  %2593 = vst [vmem:[%s3] sm:$0x1] %v2592
  %v2594 = vmul.f32 %v2524, %v2524
  %v2595 = vmul.f32 %v2525, %v2525
  %v2596 = vmul.f32 %v2526, %v2526
  %v2597 = vmul.f32 %v2527, %v2527
  %v2598 = vmul.f32 %v2528, %v2528
  %v2599 = vmul.f32 %v2529, %v2529
  %v2600 = vmul.f32 %v2530, %v2530
  %v2601 = vmul.f32 %v2531, %v2531
  %v2602 = vmul.f32 %v2532, %v2532
  %v2603 = vmul.f32 %v2533, %v2533
  %v2604 = vmul.f32 %v2534, %v2534
  %v2605 = vmul.f32 %v2535, %v2535
  %v2606 = vmul.f32 %v2536, %v2536
  %v2607 = vmul.f32 %v2537, %v2537
  %v2608 = vmul.f32 %v2538, %v2538
  %v2609 = vmul.f32 %v2539, %v2539
  %v2610 = vadd.f32 %v2594, %v2595
  %v2611 = vadd.f32 %v2610, %v2596
  %v2612 = vadd.f32 %v2611, %v2597
  %v2613 = vadd.f32 %v2612, %v2598
  %v2614 = vadd.f32 %v2613, %v2599
  %v2615 = vadd.f32 %v2614, %v2600
  %v2616 = vadd.f32 %v2615, %v2601
  %v2617 = vadd.f32 %v2616, %v2602
  %v2618 = vadd.f32 %v2617, %v2603
  %v2619 = vadd.f32 %v2618, %v2604
  %v2620 = vadd.f32 %v2619, %v2605
  %v2621 = vadd.f32 %v2620, %v2606
  %v2622 = vadd.f32 %v2621, %v2607
  %v2623 = vadd.f32 %v2622, %v2608
  %v2624 = vadd.f32 %v2623, %v2609
  %v2625 = vrot.slane %v2624, 4
  %v2626 = vadd.f32 %v2624, %v2625
  %v2627 = vrot.slane %v2626, 2
  %v2628 = vadd.f32 %v2626, %v2627
  %v2629 = vrot.slane %v2628, 1
  %v2630 = vadd.f32 %v2628, %v2629
  %2631 = vst [vmem:[%s4] sm:$0x1] %v2630
  // Predicated region
  $region10: #{resnet_layer_forward.7} parent=0 // pred_check
    _
  $region11: #{resnet_layer_forward.7} parent=0 // pred_check_branch
    %2633 = sbr.rel (0) target = $region13
  $region12: #{resnet_layer_forward.7} parent=0 // pred_region
    _
  $region13: #{resnet_layer_forward.7} parent=0 // pred_fallthru
    _
  // Predicated region
  $region14: #{resnet_layer_forward.7} parent=0 // pred_check
    _
  $region15: #{resnet_layer_forward.7} parent=0 // pred_check_branch
    %2635 = sbr.rel (0) target = $region17
  $region16: #{resnet_layer_forward.7} parent=0 // pred_region
    _
  $region17: #{resnet_layer_forward.7} parent=0 // pred_fallthru
    _
  // Predicated region
  $region18: #{resnet_layer_forward.7} parent=0 // pred_check
    _
  $region19: #{resnet_layer_forward.7} parent=0 // pred_check_branch
    %2637 = sbr.rel (0) target = $region21
  $region20: #{resnet_layer_forward.7} parent=0 // pred_region
    _
  $region21: #{resnet_layer_forward.7} parent=0 // pred_fallthru
    _
  // Predicated region
  $region22: #{resnet_layer_forward.7} parent=0 // pred_check
    _
  $region23: #{resnet_layer_forward.7} parent=0 // pred_check_branch
    %2639 = sbr.rel (0) target = $region25
  $region24: #{resnet_layer_forward.7} parent=0 // pred_region
    _
  $region25: #{resnet_layer_forward.7} parent=0 // pred_fallthru
    _
  // Predicated region
  $region26: #{resnet_layer_forward.7} parent=0 // pred_check
    _
  $region27: #{resnet_layer_forward.7} parent=0 // pred_check_branch
    %2641 = sbr.rel (0) target = $region29
  $region28: #{resnet_layer_forward.7} parent=0 // pred_region
    _
  $region29: #{resnet_layer_forward.7} parent=0 // pred_fallthru
    _
  // Predicated region
  $region30: #{resnet_layer_forward.7} parent=0 // pred_check
    _
  $region31: #{resnet_layer_forward.7} parent=0 // pred_check_branch
    %2643 = sbr.rel (0) target = $region33
  $region32: #{resnet_layer_forward.7} parent=0 // pred_region
    _
  $region33: #{resnet_layer_forward.7} parent=0 // pred_fallthru
    _

</llo_original>
